<compile_context>
chip_gen: v7x
topology: tpu7x:2x2x1
jax: 0.10.0
libtpu: 0.0.40
codegen_flags: <defaults>
</compile_context>

<pallas_src>
import functools

import jax
import jax.numpy as jnp
from jax.experimental import pallas as pl
from jax.experimental.pallas import tpu as pltpu

LANE = 128


def _round_up(x, m):
    return ((x + m - 1) // m) * m


# ---------------------------------------------------------------------------
# Kernel 1: edge MLP + scatter-add aggregation (node axis on lanes)
#   grid = (num_splits [parallel], edge tiles per split [arbitrary / reduction])
#   output block (1, FAGG, Npad) is a resident accumulator per split.
# ---------------------------------------------------------------------------
def msg_agg_kernel(x_ref, rec_ref, w1_ref, b1_ref, w2_ref, b2_ref, w3_ref, b3_ref,
                   agg_ref):
    @pl.when(pl.program_id(1) == 0)
    def _():
        agg_ref[...] = jnp.zeros_like(agg_ref)

    # 3-layer SiLU MLP (phi_I_Real): bf16 MXU inputs, f32 accumulation/activations.
    x = x_ref[...]                                                         # (TE, DINP) bf16
    h1 = jnp.dot(x, w1_ref[...], preferred_element_type=jnp.float32) + b1_ref[...]
    h1 = h1 * jax.nn.sigmoid(h1)                                           # SiLU (f32)
    h2 = jnp.dot(h1.astype(jnp.bfloat16), w2_ref[...],
                 preferred_element_type=jnp.float32) + b2_ref[...]
    h2 = h2 * jax.nn.sigmoid(h2)                                           # SiLU (f32)
    m = jnp.dot(h2.astype(jnp.bfloat16), w3_ref[...],
                preferred_element_type=jnp.float32) + b3_ref[...]          # (TE, FAGG) f32
    # Column F of (w3, b3) is (zero weights, bias 1), so m[:, F] == 1 and the per-receiver
    # message count falls out of the same aggregation matmul below.

    # One-hot(receiver) built in-kernel from int32 ids; padding edges have id == Npad and
    # therefore a zero row -> they contribute nothing to messages or counts.
    rec = rec_ref[...]                                                     # (TE, 1) int32
    lane_ids = jax.lax.broadcasted_iota(jnp.int32,
                                        (rec.shape[0], agg_ref.shape[2]), 1)
    onehot = (rec == lane_ids).astype(jnp.float32)                         # (TE, Npad)

    # scatter-add over receivers, nodes on lanes: agg[f, n] += sum_e m[e, f] * oh[e, n]
    upd = jnp.einsum('ef,en->fn', m, onehot, preferred_element_type=jnp.float32)
    agg_ref[...] += upd[None]


# ---------------------------------------------------------------------------
# Kernel 2: per-node normalization, matrix exponential, unitary rotation of h.
#   All tensors are (C, C, TN) with the node axis on lanes -> pure VPU work.
# ---------------------------------------------------------------------------
def node_update_kernel(agg_ref, aggt_ref, cnt_ref, h_ref, out_ref):
    agg = agg_ref[...]                                   # (C, C, TN) summed messages
    aggt = aggt_ref[...]                                 # per-node transpose (from wrapper)
    c, _, tn = agg.shape

    cnt = jnp.maximum(cnt_ref[...], 1.0)[None]           # (1, 1, TN); count 0 -> 1
    agg = agg / cnt
    aggt = aggt / cnt

    # lane-broadcast identity built from a sublane iota (no in-kernel transposes needed)
    sub = jax.lax.broadcasted_iota(jnp.int32, (c, tn), 0)          # (C, TN) row index
    eye = jnp.concatenate(
        [(sub == i).astype(jnp.float32)[None] for i in range(c)], axis=0)  # (C, C, TN)

    abs_sum = jnp.abs(agg).sum(axis=0).sum(axis=0, keepdims=True)[None]    # (1, 1, TN)
    is_zero = abs_sum == 0.0
    agg = jnp.where(is_zero, eye, agg)                   # zero-message nodes -> identity
    aggt = jnp.where(is_zero, eye, aggt)

    skew = 0.5 * (agg - aggt)                            # real skew-symmetric part

    def lane_mm(x, y):
        # per-node matmul over the lane (node) axis: z[i,k,n] = sum_j x[i,j,n]*y[j,k,n]
        acc = x[:, 0:1, :] * y[0:1, :, :]
        for j in range(1, c):
            acc = acc + x[:, j:j + 1, :] * y[j:j + 1, :, :]
        return acc

    # Matrix exponential: scaling-and-squaring + Horner-evaluated Taylor (lane-parallel).
    # TODO(synk): torch.matrix_exp uses a Pade approximant; this is a close approximation.
    SQ, K = 6, 8

    def lane_expm(a):
        u = eye + a * (1.0 / K)
        for k in range(K - 1, 0, -1):
            u = eye + lane_mm(a, u) * (1.0 / k)
        for _ in range(SQ):
            u = lane_mm(u, u)
        return u

    a = skew * (1.0 / 2.0 ** SQ)
    u = lane_expm(a)             # U   = expm(skew)
    u_dag = lane_expm(-a)        # U^T = expm(-skew)   (skew^T == -skew exactly, real case)

    out_ref[...] = lane_mm(u, lane_mm(h_ref[...], u_dag))


# ---------------------------------------------------------------------------
# Wrapper: gathers / padding / layout transposes in plain JAX, hot paths in Pallas
# ---------------------------------------------------------------------------
@functools.partial(jax.jit, static_argnames=("edge_tile", "num_splits"))
def qgnn_rot_perminv_layer(h_i, edge_index, node_params, edge_params, params,
                           edge_tile=256, num_splits=2):
    N, C, _ = h_i.shape
    F = C * C
    E = edge_index.shape[1]
    sender, receiver = edge_index[0], edge_index[1]

    # --- per-edge input features (same semantics as the torch forward, E > 1 branch) ---
    h_flat = h_i.reshape(N, F).astype(jnp.float32)
    ep = edge_params[edge_index].reshape(E, -1)           # row-major, == torch .view(E, -1)
    x = jnp.concatenate([h_flat[sender], h_flat[receiver],
                         node_params[sender], node_params[receiver], ep],
                        axis=1).astype(jnp.float32)       # (E, DIN)
    DIN = x.shape[1]

    w1, b1, w2, b2, w3, b3 = params
    H = w1.shape[1]

    # --- lane/sublane-dense padding -----------------------------------------------------
    DINP = _round_up(DIN, LANE)
    HP = _round_up(H, LANE)
    FAGG = _round_up(F + 1, LANE)          # extra column carries the message counts
    Npad = _round_up(N, LANE)
    TE = edge_tile
    Epad = _round_up(max(E, 1), num_splits * TE)
    tiles_per_split = Epad // (num_splits * TE)

    x_pad = jnp.zeros((Epad, DINP), jnp.float32).at[:E, :DIN].set(x).astype(jnp.bfloat16)
    rec_pad = jnp.full((Epad, 1), Npad, jnp.int32).at[:E, 0].set(receiver.astype(jnp.int32))

    w1p = jnp.zeros((DINP, HP), jnp.float32).at[:DIN, :H].set(w1).astype(jnp.bfloat16)
    w2p = jnp.zeros((HP, HP), jnp.float32).at[:H, :H].set(w2).astype(jnp.bfloat16)
    w3p = jnp.zeros((HP, FAGG), jnp.float32).at[:H, :F].set(w3).astype(jnp.bfloat16)
    b1p = jnp.zeros((1, HP), jnp.float32).at[:, :H].set(b1)
    b2p = jnp.zeros((1, HP), jnp.float32).at[:, :H].set(b2)
    b3p = jnp.zeros((1, FAGG), jnp.float32).at[:, :F].set(b3).at[0, F].set(1.0)

    # --- Pallas kernel 1: edge MLP + scatter-add aggregation ----------------------------
    agg_parts = pl.pallas_call(
        msg_agg_kernel,
        grid=(num_splits, tiles_per_split),
        in_specs=[
            pl.BlockSpec((TE, DINP), lambda p, t: (p * tiles_per_split + t, 0)),
            pl.BlockSpec((TE, 1), lambda p, t: (p * tiles_per_split + t, 0)),
            pl.BlockSpec((DINP, HP), lambda p, t: (0, 0)),
            pl.BlockSpec((1, HP), lambda p, t: (0, 0)),
            pl.BlockSpec((HP, HP), lambda p, t: (0, 0)),
            pl.BlockSpec((1, HP), lambda p, t: (0, 0)),
            pl.BlockSpec((HP, FAGG), lambda p, t: (0, 0)),
            pl.BlockSpec((1, FAGG), lambda p, t: (0, 0)),
        ],
        out_specs=pl.BlockSpec((1, FAGG, Npad), lambda p, t: (p, 0, 0)),
        out_shape=jax.ShapeDtypeStruct((num_splits, FAGG, Npad), jnp.float32),
        compiler_params=pltpu.CompilerParams(
            dimension_semantics=("parallel", "arbitrary"),
            vmem_limit_bytes=32 * 1024 * 1024),
    )(x_pad, rec_pad, w1p, b1p, w2p, b2p, w3p, b3p)

    agg_full = jnp.sum(agg_parts, axis=0)                 # (FAGG, Npad): combine TC splits

    # --- glue (layout only): node-on-lane tensors for kernel 2 --------------------------
    agg_cn = agg_full[:F].reshape(C, C, Npad)             # agg[i, j, n]
    agg_cn_t = jnp.transpose(agg_cn, (1, 0, 2))           # per-node transpose (wrapper-side)
    cnt = agg_full[F:F + 1]                               # (1, Npad) message counts
    h_cn = jnp.zeros((C, C, Npad), jnp.float32).at[:, :, :N].set(
        jnp.transpose(h_i.astype(jnp.float32), (1, 2, 0)))

    TN = LANE
    out_cn = pl.pallas_call(
        node_update_kernel,
        grid=(Npad // TN,),
        in_specs=[
            pl.BlockSpec((C, C, TN), lambda t: (0, 0, t)),
            pl.BlockSpec((C, C, TN), lambda t: (0, 0, t)),
            pl.BlockSpec((1, TN), lambda t: (0, t)),
            pl.BlockSpec((C, C, TN), lambda t: (0, 0, t)),
        ],
        out_specs=pl.BlockSpec((C, C, TN), lambda t: (0, 0, t)),
        out_shape=jax.ShapeDtypeStruct((C, C, Npad), jnp.float32),
        compiler_params=pltpu.CompilerParams(
            dimension_semantics=("parallel",),
            vmem_limit_bytes=32 * 1024 * 1024),
    )(agg_cn, agg_cn_t, cnt, h_cn)

    return jnp.transpose(out_cn, (2, 0, 1))[:N]           # (N, C, C)


# ---------------------------------------------------------------------------
# Deterministic parameter init (mimics nn.Linear shapes of phi_I_Real; stored (in, out))
# ---------------------------------------------------------------------------
def init_phi_params(key, din, hidden, dout):
    def linear(key, fan_in, fan_out):
        kw, kb = jax.random.split(key)
        bound = 1.0 / jnp.sqrt(fan_in)
        w = jax.random.uniform(kw, (fan_in, fan_out), jnp.float32, -bound, bound)
        b = jax.random.uniform(kb, (1, fan_out), jnp.float32, -bound, bound)
        return w, b

    k1, k2, k3 = jax.random.split(key, 3)
    w1, b1 = linear(k1, din, hidden)
    w2, b2 = linear(k2, hidden, hidden)
    w3, b3 = linear(k3, hidden, dout)
    return (w1, b1, w2, b2, w3, b3)


if __name__ == "__main__":
    # node_channels_in = (4, 4) -> F = 16, node_attribute_size = 2, edge_attribute_size = 1,
    # hidden_dim = 32, N = 8 nodes, E = 16 edges.
    N, C, H = 8, 4, 32
    NODE_ATTR, EDGE_ATTR = 2, 1
    F = C * C
    DIN = 2 * F + 2 * NODE_ATTR + 2 * EDGE_ATTR   # 38
    E = 16

    key = jax.random.PRNGKey(0)
    kh, knp, kep, kparam = jax.random.split(key, 4)

    h_i = jax.random.normal(kh, (N, C, C), jnp.float32)
    node_params = jax.random.normal(knp, (N, NODE_ATTR), jnp.float32)
    edge_params = jax.random.normal(kep, (N, EDGE_ATTR), jnp.float32)

    # Deterministic edge list; receivers only hit nodes 0..5 so nodes 6,7 exercise the
    # zero-message -> identity (h unchanged) path.
    sender = jnp.arange(E, dtype=jnp.int32) % N
    receiver = (jnp.arange(E, dtype=jnp.int32) * 3 + 1) % 6
    edge_index = jnp.stack([sender, receiver], axis=0)    # (2, E)

    phi_params = init_phi_params(kparam, DIN, H, F)

    out = qgnn_rot_perminv_layer(h_i, edge_index, node_params, edge_params, phi_params)
    out = jax.block_until_ready(out)

    assert out.shape == (N, C, C)
    assert bool(jnp.all(jnp.isfinite(out)))
    print("KERNEL_OK")
</pallas_src>

<mosaic_0001>
module attributes {stable_mosaic.version = 11 : i64} {
  func.func @msg_agg_kernel(%arg0: i32, %arg1: i32, %arg2: memref<256x128xbf16, #tpu.memory_space<vmem>>, %arg3: memref<256x1xi32, #tpu.memory_space<vmem>>, %arg4: memref<128x128xbf16, #tpu.memory_space<vmem>>, %arg5: memref<1x128xf32, #tpu.memory_space<vmem>>, %arg6: memref<128x128xbf16, #tpu.memory_space<vmem>>, %arg7: memref<1x128xf32, #tpu.memory_space<vmem>>, %arg8: memref<128x128xbf16, #tpu.memory_space<vmem>>, %arg9: memref<1x128xf32, #tpu.memory_space<vmem>>, %arg10: memref<1x128x128xf32, #tpu.memory_space<vmem>>) attributes {dimension_semantics = [#tpu.dimension_semantics<parallel>, #tpu.dimension_semantics<arbitrary>], iteration_bounds = array<i64: 2, 1>, scalar_prefetch = 0 : i64, scratch_operands = 0 : i64, tpu.core_type = #tpu.core_type<tc>, window_params = [{transform_indices = @transform_0, window_bounds = array<i64: 256, 128>}, {transform_indices = @transform_1, window_bounds = array<i64: 256, 1>}, {pipeline_mode = #tpu.pipeline_mode<synchronous>, transform_indices = @transform_2, window_bounds = array<i64: 128, 128>}, {pipeline_mode = #tpu.pipeline_mode<synchronous>, transform_indices = @transform_3, window_bounds = array<i64: 1, 128>}, {pipeline_mode = #tpu.pipeline_mode<synchronous>, transform_indices = @transform_4, window_bounds = array<i64: 128, 128>}, {pipeline_mode = #tpu.pipeline_mode<synchronous>, transform_indices = @transform_5, window_bounds = array<i64: 1, 128>}, {pipeline_mode = #tpu.pipeline_mode<synchronous>, transform_indices = @transform_6, window_bounds = array<i64: 128, 128>}, {pipeline_mode = #tpu.pipeline_mode<synchronous>, transform_indices = @transform_7, window_bounds = array<i64: 1, 128>}, {transform_indices = @transform_8, window_bounds = array<i64: 1, 128, 128>}]} {
    %c0_i32 = arith.constant 0 : i32
    %0 = arith.cmpi eq, %arg1, %c0_i32 : i32
    %1 = arith.extui %0 : i1 to i32
    %c0_i32_0 = arith.constant 0 : i32
    %2 = arith.cmpi ne, %1, %c0_i32_0 : i32
    scf.if %2 {
      %cst_27 = arith.constant 0.000000e+00 : f32
      %44 = vector.broadcast %cst_27 : f32 to vector<1x128x128xf32>
      %c0_28 = arith.constant 0 : index
      %c0_29 = arith.constant 0 : index
      %c0_30 = arith.constant 0 : index
      %45 = vector.load %arg10[%c0_28, %c0_29, %c0_30] : memref<1x128x128xf32, #tpu.memory_space<vmem>>, vector<1x128x128xf32>
      tpu.vector_store %arg10[%c0_28, %c0_29, %c0_30], %44 {strides = array<i32>} : memref<1x128x128xf32, #tpu.memory_space<vmem>>, vector<1x128x128xf32>,
    } else {
    }
    %c0 = arith.constant 0 : index
    %c0_1 = arith.constant 0 : index
    %3 = vector.load %arg2[%c0, %c0_1] : memref<256x128xbf16, #tpu.memory_space<vmem>>, vector<256x128xbf16>
    %c0_2 = arith.constant 0 : index
    %c0_3 = arith.constant 0 : index
    %4 = vector.load %arg4[%c0_2, %c0_3] : memref<128x128xbf16, #tpu.memory_space<vmem>>, vector<128x128xbf16>
    %cst = arith.constant dense<0.000000e+00> : vector<256x128xf32>
    %5 = tpu.matmul %3, %4, %cst {dimension_numbers = #tpu.dot_dimension_numbers<[1], [0], [0], [1], [0, 0, 1, 1], [], []>} : vector<256x128xbf16>, vector<128x128xbf16>, vector<256x128xf32> -> vector<256x128xf32>
    %c0_4 = arith.constant 0 : index
    %c0_5 = arith.constant 0 : index
    %6 = vector.load %arg5[%c0_4, %c0_5] : memref<1x128xf32, #tpu.memory_space<vmem>>, vector<1x128xf32>
    %7 = vector.broadcast %6 : vector<1x128xf32> to vector<256x128xf32>
    %8 = arith.addf %5, %7 : vector<256x128xf32>
    %9 = arith.negf %8 : vector<256x128xf32>
    %10 = math.exp %9 : vector<256x128xf32>
    %cst_6 = arith.constant 1.000000e+00 : f32
    %11 = vector.broadcast %cst_6 : f32 to vector<256x128xf32>
    %12 = arith.addf %11, %10 : vector<256x128xf32>
    %13 = arith.divf %11, %12 : vector<256x128xf32>
    %14 = arith.mulf %8, %13 : vector<256x128xf32>
    %15 = arith.truncf %14 : vector<256x128xf32> to vector<256x128xbf16>
    %c0_7 = arith.constant 0 : index
    %c0_8 = arith.constant 0 : index
    %16 = vector.load %arg6[%c0_7, %c0_8] : memref<128x128xbf16, #tpu.memory_space<vmem>>, vector<128x128xbf16>
    %cst_9 = arith.constant dense<0.000000e+00> : vector<256x128xf32>
    %17 = tpu.matmul %15, %16, %cst_9 {dimension_numbers = #tpu.dot_dimension_numbers<[1], [0], [0], [1], [0, 0, 1, 1], [], []>} : vector<256x128xbf16>, vector<128x128xbf16>, vector<256x128xf32> -> vector<256x128xf32>
    %c0_10 = arith.constant 0 : index
    %c0_11 = arith.constant 0 : index
    %18 = vector.load %arg7[%c0_10, %c0_11] : memref<1x128xf32, #tpu.memory_space<vmem>>, vector<1x128xf32>
    %19 = vector.broadcast %18 : vector<1x128xf32> to vector<256x128xf32>
    %20 = arith.addf %17, %19 : vector<256x128xf32>
    %21 = arith.negf %20 : vector<256x128xf32>
    %22 = math.exp %21 : vector<256x128xf32>
    %cst_12 = arith.constant 1.000000e+00 : f32
    %23 = vector.broadcast %cst_12 : f32 to vector<256x128xf32>
    %24 = arith.addf %23, %22 : vector<256x128xf32>
    %25 = arith.divf %23, %24 : vector<256x128xf32>
    %26 = arith.mulf %20, %25 : vector<256x128xf32>
    %27 = arith.truncf %26 : vector<256x128xf32> to vector<256x128xbf16>
    %c0_13 = arith.constant 0 : index
    %c0_14 = arith.constant 0 : index
    %28 = vector.load %arg8[%c0_13, %c0_14] : memref<128x128xbf16, #tpu.memory_space<vmem>>, vector<128x128xbf16>
    %cst_15 = arith.constant dense<0.000000e+00> : vector<256x128xf32>
    %29 = tpu.matmul %27, %28, %cst_15 {dimension_numbers = #tpu.dot_dimension_numbers<[1], [0], [0], [1], [0, 0, 1, 1], [], []>} : vector<256x128xbf16>, vector<128x128xbf16>, vector<256x128xf32> -> vector<256x128xf32>
    %c0_16 = arith.constant 0 : index
    %c0_17 = arith.constant 0 : index
    %30 = vector.load %arg9[%c0_16, %c0_17] : memref<1x128xf32, #tpu.memory_space<vmem>>, vector<1x128xf32>
    %31 = vector.broadcast %30 : vector<1x128xf32> to vector<256x128xf32>
    %32 = arith.addf %29, %31 : vector<256x128xf32>
    %c0_18 = arith.constant 0 : index
    %c0_19 = arith.constant 0 : index
    %33 = vector.load %arg3[%c0_18, %c0_19] : memref<256x1xi32, #tpu.memory_space<vmem>>, vector<256x1xi32>
    %34 = tpu.iota {dimensions = array<i32: 1>} : vector<256x128xi32>
    %35 = vector.broadcast %33 : vector<256x1xi32> to vector<256x128xi32>
    %36 = arith.cmpi eq, %35, %34 : vector<256x128xi32>
    %37 = arith.extui %36 : vector<256x128xi1> to vector<256x128xi32>
    %38 = arith.sitofp %37 : vector<256x128xi32> to vector<256x128xf32>
    "tpu.trace_start"() <{level = 10 : i32, message = "ef,en->fn"}> : () -> ()
    %cst_20 = arith.constant dense<0.000000e+00> : vector<128x128xf32>
    %39 = tpu.matmul %32, %38, %cst_20 {dimension_numbers = #tpu.dot_dimension_numbers<[0], [0], [1], [1], [0, 1, 1, 1], [], []>} : vector<256x128xf32>, vector<256x128xf32>, vector<128x128xf32> -> vector<128x128xf32>
    "tpu.trace_stop"() : () -> ()
    %c0_21 = arith.constant 0 : index
    %c0_22 = arith.constant 0 : index
    %c0_23 = arith.constant 0 : index
    %40 = vector.load %arg10[%c0_21, %c0_22, %c0_23] : memref<1x128x128xf32, #tpu.memory_space<vmem>>, vector<1x128x128xf32>
    %41 = vector.shape_cast %39 : vector<128x128xf32> to vector<1x128x128xf32>
    %42 = arith.addf %40, %41 : vector<1x128x128xf32>
    %c0_24 = arith.constant 0 : index
    %c0_25 = arith.constant 0 : index
    %c0_26 = arith.constant 0 : index
    %43 = vector.load %arg10[%c0_24, %c0_25, %c0_26] : memref<1x128x128xf32, #tpu.memory_space<vmem>>, vector<1x128x128xf32>
    tpu.vector_store %arg10[%c0_24, %c0_25, %c0_26], %42 {strides = array<i32>} : memref<1x128x128xf32, #tpu.memory_space<vmem>>, vector<1x128x128xf32>,
    return
  }
  func.func @transform_0(%arg0: i32, %arg1: i32) -> (i32, i32) {
    %c1_i32 = arith.constant 1 : i32
    %0 = arith.muli %arg0, %c1_i32 : i32
    %1 = arith.addi %0, %arg1 : i32
    %c0_i32 = arith.constant 0 : i32
    %c0_i32_0 = arith.constant 0 : i32
    return %1, %c0_i32 : i32, i32
  }
  func.func @transform_1(%arg0: i32, %arg1: i32) -> (i32, i32) {
    %c1_i32 = arith.constant 1 : i32
    %0 = arith.muli %arg0, %c1_i32 : i32
    %1 = arith.addi %0, %arg1 : i32
    %c0_i32 = arith.constant 0 : i32
    %c0_i32_0 = arith.constant 0 : i32
    return %1, %c0_i32 : i32, i32
  }
  func.func @transform_2(%arg0: i32, %arg1: i32) -> (i32, i32) {
    %c0_i32 = arith.constant 0 : i32
    %c0_i32_0 = arith.constant 0 : i32
    %c0_i32_1 = arith.constant 0 : i32
    return %c0_i32, %c0_i32_0 : i32, i32
  }
  func.func @transform_3(%arg0: i32, %arg1: i32) -> (i32, i32) {
    %c0_i32 = arith.constant 0 : i32
    %c0_i32_0 = arith.constant 0 : i32
    %c0_i32_1 = arith.constant 0 : i32
    return %c0_i32, %c0_i32_0 : i32, i32
  }
  func.func @transform_4(%arg0: i32, %arg1: i32) -> (i32, i32) {
    %c0_i32 = arith.constant 0 : i32
    %c0_i32_0 = arith.constant 0 : i32
    %c0_i32_1 = arith.constant 0 : i32
    return %c0_i32, %c0_i32_0 : i32, i32
  }
  func.func @transform_5(%arg0: i32, %arg1: i32) -> (i32, i32) {
    %c0_i32 = arith.constant 0 : i32
    %c0_i32_0 = arith.constant 0 : i32
    %c0_i32_1 = arith.constant 0 : i32
    return %c0_i32, %c0_i32_0 : i32, i32
  }
  func.func @transform_6(%arg0: i32, %arg1: i32) -> (i32, i32) {
    %c0_i32 = arith.constant 0 : i32
    %c0_i32_0 = arith.constant 0 : i32
    %c0_i32_1 = arith.constant 0 : i32
    return %c0_i32, %c0_i32_0 : i32, i32
  }
  func.func @transform_7(%arg0: i32, %arg1: i32) -> (i32, i32) {
    %c0_i32 = arith.constant 0 : i32
    %c0_i32_0 = arith.constant 0 : i32
    %c0_i32_1 = arith.constant 0 : i32
    return %c0_i32, %c0_i32_0 : i32, i32
  }
  func.func @transform_8(%arg0: i32, %arg1: i32) -> (i32, i32, i32) {
    %c0_i32 = arith.constant 0 : i32
    %c0_i32_0 = arith.constant 0 : i32
    %c0_i32_1 = arith.constant 0 : i32
    return %arg0, %c0_i32, %c0_i32_0 : i32, i32, i32
  }
}

module attributes {stable_mosaic.version = 11 : i64} {
  func.func @node_update_kernel(%arg0: i32, %arg1: memref<4x4x128xf32, #tpu.memory_space<vmem>>, %arg2: memref<4x4x128xf32, #tpu.memory_space<vmem>>, %arg3: memref<1x128xf32, #tpu.memory_space<vmem>>, %arg4: memref<4x4x128xf32, #tpu.memory_space<vmem>>, %arg5: memref<4x4x128xf32, #tpu.memory_space<vmem>>) attributes {dimension_semantics = [#tpu.dimension_semantics<parallel>], iteration_bounds = array<i64: 1>, scalar_prefetch = 0 : i64, scratch_operands = 0 : i64, tpu.core_type = #tpu.core_type<tc>, window_params = [{transform_indices = @transform_0, window_bounds = array<i64: 4, 4, 128>}, {transform_indices = @transform_1, window_bounds = array<i64: 4, 4, 128>}, {transform_indices = @transform_2, window_bounds = array<i64: 1, 128>}, {transform_indices = @transform_3, window_bounds = array<i64: 4, 4, 128>}, {transform_indices = @transform_4, window_bounds = array<i64: 4, 4, 128>}]} {
    %c0 = arith.constant 0 : index
    %c0_0 = arith.constant 0 : index
    %c0_1 = arith.constant 0 : index
    %0 = vector.load %arg1[%c0, %c0_0, %c0_1] : memref<4x4x128xf32, #tpu.memory_space<vmem>>, vector<4x4x128xf32>
    %c0_2 = arith.constant 0 : index
    %c0_3 = arith.constant 0 : index
    %c0_4 = arith.constant 0 : index
    %1 = vector.load %arg2[%c0_2, %c0_3, %c0_4] : memref<4x4x128xf32, #tpu.memory_space<vmem>>, vector<4x4x128xf32>
    %c0_5 = arith.constant 0 : index
    %c0_6 = arith.constant 0 : index
    %2 = vector.load %arg3[%c0_5, %c0_6] : memref<1x128xf32, #tpu.memory_space<vmem>>, vector<1x128xf32>
    %cst = arith.constant 1.000000e+00 : f32
    %3 = vector.broadcast %cst : f32 to vector<1x128xf32>
    %4 = arith.maximumf %2, %3 : vector<1x128xf32>
    %5 = vector.shape_cast %4 : vector<1x128xf32> to vector<1x1x128xf32>
    %6 = vector.broadcast %5 : vector<1x1x128xf32> to vector<4x4x128xf32>
    %7 = arith.divf %0, %6 : vector<4x4x128xf32>
    %8 = vector.broadcast %5 : vector<1x1x128xf32> to vector<4x4x128xf32>
    %9 = arith.divf %1, %8 : vector<4x4x128xf32>
    %10 = tpu.iota {dimensions = array<i32: 0>} : vector<4x128xi32>
    %c0_i32 = arith.constant 0 : i32
    %11 = vector.broadcast %c0_i32 : i32 to vector<4x128xi32>
    %12 = arith.cmpi eq, %10, %11 : vector<4x128xi32>
    %13 = arith.extui %12 : vector<4x128xi1> to vector<4x128xi32>
    %14 = arith.sitofp %13 : vector<4x128xi32> to vector<4x128xf32>
    %15 = vector.shape_cast %14 : vector<4x128xf32> to vector<1x4x128xf32>
    %c1_i32 = arith.constant 1 : i32
    %16 = vector.broadcast %c1_i32 : i32 to vector<4x128xi32>
    %17 = arith.cmpi eq, %10, %16 : vector<4x128xi32>
    %18 = arith.extui %17 : vector<4x128xi1> to vector<4x128xi32>
    %19 = arith.sitofp %18 : vector<4x128xi32> to vector<4x128xf32>
    %20 = vector.shape_cast %19 : vector<4x128xf32> to vector<1x4x128xf32>
    %c2_i32 = arith.constant 2 : i32
    %21 = vector.broadcast %c2_i32 : i32 to vector<4x128xi32>
    %22 = arith.cmpi eq, %10, %21 : vector<4x128xi32>
    %23 = arith.extui %22 : vector<4x128xi1> to vector<4x128xi32>
    %24 = arith.sitofp %23 : vector<4x128xi32> to vector<4x128xf32>
    %25 = vector.shape_cast %24 : vector<4x128xf32> to vector<1x4x128xf32>
    %c3_i32 = arith.constant 3 : i32
    %26 = vector.broadcast %c3_i32 : i32 to vector<4x128xi32>
    %27 = arith.cmpi eq, %10, %26 : vector<4x128xi32>
    %28 = arith.extui %27 : vector<4x128xi1> to vector<4x128xi32>
    %29 = arith.sitofp %28 : vector<4x128xi32> to vector<4x128xf32>
    %30 = vector.shape_cast %29 : vector<4x128xf32> to vector<1x4x128xf32>
    %31 = tpu.concatenate %15, %20, %25, %30 in 0 : vector<1x4x128xf32>, vector<1x4x128xf32>, vector<1x4x128xf32>, vector<1x4x128xf32> -> vector<4x4x128xf32>
    %32 = math.absf %7 : vector<4x4x128xf32>
    %cst_7 = arith.constant dense<0.000000e+00> : vector<4x128xf32>
    %33 = vector.multi_reduction <add>, %32, %cst_7 [0] : vector<4x4x128xf32> to vector<4x128xf32>
    %cst_8 = arith.constant dense<0.000000e+00> : vector<128xf32>
    %34 = vector.multi_reduction <add>, %33, %cst_8 [0] : vector<4x128xf32> to vector<128xf32>
    %35 = vector.shape_cast %34 : vector<128xf32> to vector<1x128xf32>
    %36 = vector.shape_cast %35 : vector<1x128xf32> to vector<1x1x128xf32>
    %cst_9 = arith.constant 0.000000e+00 : f32
    %37 = vector.broadcast %cst_9 : f32 to vector<1x1x128xf32>
    %38 = arith.cmpf oeq, %36, %37 : vector<1x1x128xf32>
    %39 = vector.shape_cast %38 : vector<1x1x128xi1> to vector<1x1x128xi1>
    %40 = vector.broadcast %39 : vector<1x1x128xi1> to vector<4x4x128xi1>
    %41 = arith.select %40, %31, %7 : vector<4x4x128xi1>, vector<4x4x128xf32>
    %42 = vector.shape_cast %38 : vector<1x1x128xi1> to vector<1x1x128xi1>
    %43 = vector.broadcast %42 : vector<1x1x128xi1> to vector<4x4x128xi1>
    %44 = arith.select %43, %31, %9 : vector<4x4x128xi1>, vector<4x4x128xf32>
    %45 = arith.subf %41, %44 : vector<4x4x128xf32>
    %cst_10 = arith.constant 5.000000e-01 : f32
    %46 = vector.broadcast %cst_10 : f32 to vector<4x4x128xf32>
    %47 = arith.mulf %46, %45 : vector<4x4x128xf32>
    %cst_11 = arith.constant 1.562500e-02 : f32
    %48 = vector.broadcast %cst_11 : f32 to vector<4x4x128xf32>
    %49 = arith.mulf %47, %48 : vector<4x4x128xf32>
    %cst_12 = arith.constant 1.250000e-01 : f32
    %50 = vector.broadcast %cst_12 : f32 to vector<4x4x128xf32>
    %51 = arith.mulf %49, %50 : vector<4x4x128xf32>
    %52 = arith.addf %31, %51 : vector<4x4x128xf32>
    %53 = vector.extract_strided_slice %49 {offsets = [0, 0, 0], sizes = [4, 1, 128], strides = [1, 1, 1]} : vector<4x4x128xf32> to vector<4x1x128xf32>
    %54 = vector.extract_strided_slice %52 {offsets = [0, 0, 0], sizes = [1, 4, 128], strides = [1, 1, 1]} : vector<4x4x128xf32> to vector<1x4x128xf32>
    %55 = vector.broadcast %53 : vector<4x1x128xf32> to vector<4x4x128xf32>
    %56 = vector.broadcast %54 : vector<1x4x128xf32> to vector<4x4x128xf32>
    %57 = arith.mulf %55, %56 : vector<4x4x128xf32>
    %58 = vector.extract_strided_slice %49 {offsets = [0, 1, 0], sizes = [4, 1, 128], strides = [1, 1, 1]} : vector<4x4x128xf32> to vector<4x1x128xf32>
    %59 = vector.extract_strided_slice %52 {offsets = [1, 0, 0], sizes = [1, 4, 128], strides = [1, 1, 1]} : vector<4x4x128xf32> to vector<1x4x128xf32>
    %60 = vector.broadcast %58 : vector<4x1x128xf32> to vector<4x4x128xf32>
    %61 = vector.broadcast %59 : vector<1x4x128xf32> to vector<4x4x128xf32>
    %62 = arith.mulf %60, %61 : vector<4x4x128xf32>
    %63 = arith.addf %57, %62 : vector<4x4x128xf32>
    %64 = vector.extract_strided_slice %49 {offsets = [0, 2, 0], sizes = [4, 1, 128], strides = [1, 1, 1]} : vector<4x4x128xf32> to vector<4x1x128xf32>
    %65 = vector.extract_strided_slice %52 {offsets = [2, 0, 0], sizes = [1, 4, 128], strides = [1, 1, 1]} : vector<4x4x128xf32> to vector<1x4x128xf32>
    %66 = vector.broadcast %64 : vector<4x1x128xf32> to vector<4x4x128xf32>
    %67 = vector.broadcast %65 : vector<1x4x128xf32> to vector<4x4x128xf32>
    %68 = arith.mulf %66, %67 : vector<4x4x128xf32>
    %69 = arith.addf %63, %68 : vector<4x4x128xf32>
    %70 = vector.extract_strided_slice %49 {offsets = [0, 3, 0], sizes = [4, 1, 128], strides = [1, 1, 1]} : vector<4x4x128xf32> to vector<4x1x128xf32>
    %71 = vector.extract_strided_slice %52 {offsets = [3, 0, 0], sizes = [1, 4, 128], strides = [1, 1, 1]} : vector<4x4x128xf32> to vector<1x4x128xf32>
    %72 = vector.broadcast %70 : vector<4x1x128xf32> to vector<4x4x128xf32>
    %73 = vector.broadcast %71 : vector<1x4x128xf32> to vector<4x4x128xf32>
    %74 = arith.mulf %72, %73 : vector<4x4x128xf32>
    %75 = arith.addf %69, %74 : vector<4x4x128xf32>
    %cst_13 = arith.constant 0.142857149 : f32
    %76 = vector.broadcast %cst_13 : f32 to vector<4x4x128xf32>
    %77 = arith.mulf %75, %76 : vector<4x4x128xf32>
    %78 = arith.addf %31, %77 : vector<4x4x128xf32>
    %79 = vector.extract_strided_slice %49 {offsets = [0, 0, 0], sizes = [4, 1, 128], strides = [1, 1, 1]} : vector<4x4x128xf32> to vector<4x1x128xf32>
    %80 = vector.extract_strided_slice %78 {offsets = [0, 0, 0], sizes = [1, 4, 128], strides = [1, 1, 1]} : vector<4x4x128xf32> to vector<1x4x128xf32>
    %81 = vector.broadcast %79 : vector<4x1x128xf32> to vector<4x4x128xf32>
    %82 = vector.broadcast %80 : vector<1x4x128xf32> to vector<4x4x128xf32>
    %83 = arith.mulf %81, %82 : vector<4x4x128xf32>
    %84 = vector.extract_strided_slice %49 {offsets = [0, 1, 0], sizes = [4, 1, 128], strides = [1, 1, 1]} : vector<4x4x128xf32> to vector<4x1x128xf32>
    %85 = vector.extract_strided_slice %78 {offsets = [1, 0, 0], sizes = [1, 4, 128], strides = [1, 1, 1]} : vector<4x4x128xf32> to vector<1x4x128xf32>
    %86 = vector.broadcast %84 : vector<4x1x128xf32> to vector<4x4x128xf32>
    %87 = vector.broadcast %85 : vector<1x4x128xf32> to vector<4x4x128xf32>
    %88 = arith.mulf %86, %87 : vector<4x4x128xf32>
    %89 = arith.addf %83, %88 : vector<4x4x128xf32>
    %90 = vector.extract_strided_slice %49 {offsets = [0, 2, 0], sizes = [4, 1, 128], strides = [1, 1, 1]} : vector<4x4x128xf32> to vector<4x1x128xf32>
    %91 = vector.extract_strided_slice %78 {offsets = [2, 0, 0], sizes = [1, 4, 128], strides = [1, 1, 1]} : vector<4x4x128xf32> to vector<1x4x128xf32>
    %92 = vector.broadcast %90 : vector<4x1x128xf32> to vector<4x4x128xf32>
    %93 = vector.broadcast %91 : vector<1x4x128xf32> to vector<4x4x128xf32>
    %94 = arith.mulf %92, %93 : vector<4x4x128xf32>
    %95 = arith.addf %89, %94 : vector<4x4x128xf32>
    %96 = vector.extract_strided_slice %49 {offsets = [0, 3, 0], sizes = [4, 1, 128], strides = [1, 1, 1]} : vector<4x4x128xf32> to vector<4x1x128xf32>
    %97 = vector.extract_strided_slice %78 {offsets = [3, 0, 0], sizes = [1, 4, 128], strides = [1, 1, 1]} : vector<4x4x128xf32> to vector<1x4x128xf32>
    %98 = vector.broadcast %96 : vector<4x1x128xf32> to vector<4x4x128xf32>
    %99 = vector.broadcast %97 : vector<1x4x128xf32> to vector<4x4x128xf32>
    %100 = arith.mulf %98, %99 : vector<4x4x128xf32>
    %101 = arith.addf %95, %100 : vector<4x4x128xf32>
    %cst_14 = arith.constant 0.166666672 : f32
    %102 = vector.broadcast %cst_14 : f32 to vector<4x4x128xf32>
    %103 = arith.mulf %101, %102 : vector<4x4x128xf32>
    %104 = arith.addf %31, %103 : vector<4x4x128xf32>
    %105 = vector.extract_strided_slice %49 {offsets = [0, 0, 0], sizes = [4, 1, 128], strides = [1, 1, 1]} : vector<4x4x128xf32> to vector<4x1x128xf32>
    %106 = vector.extract_strided_slice %104 {offsets = [0, 0, 0], sizes = [1, 4, 128], strides = [1, 1, 1]} : vector<4x4x128xf32> to vector<1x4x128xf32>
    %107 = vector.broadcast %105 : vector<4x1x128xf32> to vector<4x4x128xf32>
    %108 = vector.broadcast %106 : vector<1x4x128xf32> to vector<4x4x128xf32>
    %109 = arith.mulf %107, %108 : vector<4x4x128xf32>
    %110 = vector.extract_strided_slice %49 {offsets = [0, 1, 0], sizes = [4, 1, 128], strides = [1, 1, 1]} : vector<4x4x128xf32> to vector<4x1x128xf32>
    %111 = vector.extract_strided_slice %104 {offsets = [1, 0, 0], sizes = [1, 4, 128], strides = [1, 1, 1]} : vector<4x4x128xf32> to vector<1x4x128xf32>
    %112 = vector.broadcast %110 : vector<4x1x128xf32> to vector<4x4x128xf32>
    %113 = vector.broadcast %111 : vector<1x4x128xf32> to vector<4x4x128xf32>
    %114 = arith.mulf %112, %113 : vector<4x4x128xf32>
    %115 = arith.addf %109, %114 : vector<4x4x128xf32>
    %116 = vector.extract_strided_slice %49 {offsets = [0, 2, 0], sizes = [4, 1, 128], strides = [1, 1, 1]} : vector<4x4x128xf32> to vector<4x1x128xf32>
    %117 = vector.extract_strided_slice %104 {offsets = [2, 0, 0], sizes = [1, 4, 128], strides = [1, 1, 1]} : vector<4x4x128xf32> to vector<1x4x128xf32>
    %118 = vector.broadcast %116 : vector<4x1x128xf32> to vector<4x4x128xf32>
    %119 = vector.broadcast %117 : vector<1x4x128xf32> to vector<4x4x128xf32>
    %120 = arith.mulf %118, %119 : vector<4x4x128xf32>
    %121 = arith.addf %115, %120 : vector<4x4x128xf32>
    %122 = vector.extract_strided_slice %49 {offsets = [0, 3, 0], sizes = [4, 1, 128], strides = [1, 1, 1]} : vector<4x4x128xf32> to vector<4x1x128xf32>
    %123 = vector.extract_strided_slice %104 {offsets = [3, 0, 0], sizes = [1, 4, 128], strides = [1, 1, 1]} : vector<4x4x128xf32> to vector<1x4x128xf32>
    %124 = vector.broadcast %122 : vector<4x1x128xf32> to vector<4x4x128xf32>
    %125 = vector.broadcast %123 : vector<1x4x128xf32> to vector<4x4x128xf32>
    %126 = arith.mulf %124, %125 : vector<4x4x128xf32>
    %127 = arith.addf %121, %126 : vector<4x4x128xf32>
    %cst_15 = arith.constant 2.000000e-01 : f32
    %128 = vector.broadcast %cst_15 : f32 to vector<4x4x128xf32>
    %129 = arith.mulf %127, %128 : vector<4x4x128xf32>
    %130 = arith.addf %31, %129 : vector<4x4x128xf32>
    %131 = vector.extract_strided_slice %49 {offsets = [0, 0, 0], sizes = [4, 1, 128], strides = [1, 1, 1]} : vector<4x4x128xf32> to vector<4x1x128xf32>
    %132 = vector.extract_strided_slice %130 {offsets = [0, 0, 0], sizes = [1, 4, 128], strides = [1, 1, 1]} : vector<4x4x128xf32> to vector<1x4x128xf32>
    %133 = vector.broadcast %131 : vector<4x1x128xf32> to vector<4x4x128xf32>
    %134 = vector.broadcast %132 : vector<1x4x128xf32> to vector<4x4x128xf32>
    %135 = arith.mulf %133, %134 : vector<4x4x128xf32>
    %136 = vector.extract_strided_slice %49 {offsets = [0, 1, 0], sizes = [4, 1, 128], strides = [1, 1, 1]} : vector<4x4x128xf32> to vector<4x1x128xf32>
    %137 = vector.extract_strided_slice %130 {offsets = [1, 0, 0], sizes = [1, 4, 128], strides = [1, 1, 1]} : vector<4x4x128xf32> to vector<1x4x128xf32>
    %138 = vector.broadcast %136 : vector<4x1x128xf32> to vector<4x4x128xf32>
    %139 = vector.broadcast %137 : vector<1x4x128xf32> to vector<4x4x128xf32>
    %140 = arith.mulf %138, %139 : vector<4x4x128xf32>
    %141 = arith.addf %135, %140 : vector<4x4x128xf32>
    %142 = vector.extract_strided_slice %49 {offsets = [0, 2, 0], sizes = [4, 1, 128], strides = [1, 1, 1]} : vector<4x4x128xf32> to vector<4x1x128xf32>
    %143 = vector.extract_strided_slice %130 {offsets = [2, 0, 0], sizes = [1, 4, 128], strides = [1, 1, 1]} : vector<4x4x128xf32> to vector<1x4x128xf32>
    %144 = vector.broadcast %142 : vector<4x1x128xf32> to vector<4x4x128xf32>
    %145 = vector.broadcast %143 : vector<1x4x128xf32> to vector<4x4x128xf32>
    %146 = arith.mulf %144, %145 : vector<4x4x128xf32>
    %147 = arith.addf %141, %146 : vector<4x4x128xf32>
    %148 = vector.extract_strided_slice %49 {offsets = [0, 3, 0], sizes = [4, 1, 128], strides = [1, 1, 1]} : vector<4x4x128xf32> to vector<4x1x128xf32>
    %149 = vector.extract_strided_slice %130 {offsets = [3, 0, 0], sizes = [1, 4, 128], strides = [1, 1, 1]} : vector<4x4x128xf32> to vector<1x4x128xf32>
    %150 = vector.broadcast %148 : vector<4x1x128xf32> to vector<4x4x128xf32>
    %151 = vector.broadcast %149 : vector<1x4x128xf32> to vector<4x4x128xf32>
    %152 = arith.mulf %150, %151 : vector<4x4x128xf32>
    %153 = arith.addf %147, %152 : vector<4x4x128xf32>
    %cst_16 = arith.constant 2.500000e-01 : f32
    %154 = vector.broadcast %cst_16 : f32 to vector<4x4x128xf32>
    %155 = arith.mulf %153, %154 : vector<4x4x128xf32>
    %156 = arith.addf %31, %155 : vector<4x4x128xf32>
    %157 = vector.extract_strided_slice %49 {offsets = [0, 0, 0], sizes = [4, 1, 128], strides = [1, 1, 1]} : vector<4x4x128xf32> to vector<4x1x128xf32>
    %158 = vector.extract_strided_slice %156 {offsets = [0, 0, 0], sizes = [1, 4, 128], strides = [1, 1, 1]} : vector<4x4x128xf32> to vector<1x4x128xf32>
    %159 = vector.broadcast %157 : vector<4x1x128xf32> to vector<4x4x128xf32>
    %160 = vector.broadcast %158 : vector<1x4x128xf32> to vector<4x4x128xf32>
    %161 = arith.mulf %159, %160 : vector<4x4x128xf32>
    %162 = vector.extract_strided_slice %49 {offsets = [0, 1, 0], sizes = [4, 1, 128], strides = [1, 1, 1]} : vector<4x4x128xf32> to vector<4x1x128xf32>
    %163 = vector.extract_strided_slice %156 {offsets = [1, 0, 0], sizes = [1, 4, 128], strides = [1, 1, 1]} : vector<4x4x128xf32> to vector<1x4x128xf32>
    %164 = vector.broadcast %162 : vector<4x1x128xf32> to vector<4x4x128xf32>
    %165 = vector.broadcast %163 : vector<1x4x128xf32> to vector<4x4x128xf32>
    %166 = arith.mulf %164, %165 : vector<4x4x128xf32>
    %167 = arith.addf %161, %166 : vector<4x4x128xf32>
    %168 = vector.extract_strided_slice %49 {offsets = [0, 2, 0], sizes = [4, 1, 128], strides = [1, 1, 1]} : vector<4x4x128xf32> to vector<4x1x128xf32>
    %169 = vector.extract_strided_slice %156 {offsets = [2, 0, 0], sizes = [1, 4, 128], strides = [1, 1, 1]} : vector<4x4x128xf32> to vector<1x4x128xf32>
    %170 = vector.broadcast %168 : vector<4x1x128xf32> to vector<4x4x128xf32>
    %171 = vector.broadcast %169 : vector<1x4x128xf32> to vector<4x4x128xf32>
    %172 = arith.mulf %170, %171 : vector<4x4x128xf32>
    %173 = arith.addf %167, %172 : vector<4x4x128xf32>
    %174 = vector.extract_strided_slice %49 {offsets = [0, 3, 0], sizes = [4, 1, 128], strides = [1, 1, 1]} : vector<4x4x128xf32> to vector<4x1x128xf32>
    %175 = vector.extract_strided_slice %156 {offsets = [3, 0, 0], sizes = [1, 4, 128], strides = [1, 1, 1]} : vector<4x4x128xf32> to vector<1x4x128xf32>
    %176 = vector.broadcast %174 : vector<4x1x128xf32> to vector<4x4x128xf32>
    %177 = vector.broadcast %175 : vector<1x4x128xf32> to vector<4x4x128xf32>
    %178 = arith.mulf %176, %177 : vector<4x4x128xf32>
    %179 = arith.addf %173, %178 : vector<4x4x128xf32>
    %cst_17 = arith.constant 0.333333343 : f32
    %180 = vector.broadcast %cst_17 : f32 to vector<4x4x128xf32>
    %181 = arith.mulf %179, %180 : vector<4x4x128xf32>
    %182 = arith.addf %31, %181 : vector<4x4x128xf32>
    %183 = vector.extract_strided_slice %49 {offsets = [0, 0, 0], sizes = [4, 1, 128], strides = [1, 1, 1]} : vector<4x4x128xf32> to vector<4x1x128xf32>
    %184 = vector.extract_strided_slice %182 {offsets = [0, 0, 0], sizes = [1, 4, 128], strides = [1, 1, 1]} : vector<4x4x128xf32> to vector<1x4x128xf32>
    %185 = vector.broadcast %183 : vector<4x1x128xf32> to vector<4x4x128xf32>
    %186 = vector.broadcast %184 : vector<1x4x128xf32> to vector<4x4x128xf32>
    %187 = arith.mulf %185, %186 : vector<4x4x128xf32>
    %188 = vector.extract_strided_slice %49 {offsets = [0, 1, 0], sizes = [4, 1, 128], strides = [1, 1, 1]} : vector<4x4x128xf32> to vector<4x1x128xf32>
    %189 = vector.extract_strided_slice %182 {offsets = [1, 0, 0], sizes = [1, 4, 128], strides = [1, 1, 1]} : vector<4x4x128xf32> to vector<1x4x128xf32>
    %190 = vector.broadcast %188 : vector<4x1x128xf32> to vector<4x4x128xf32>
    %191 = vector.broadcast %189 : vector<1x4x128xf32> to vector<4x4x128xf32>
    %192 = arith.mulf %190, %191 : vector<4x4x128xf32>
    %193 = arith.addf %187, %192 : vector<4x4x128xf32>
    %194 = vector.extract_strided_slice %49 {offsets = [0, 2, 0], sizes = [4, 1, 128], strides = [1, 1, 1]} : vector<4x4x128xf32> to vector<4x1x128xf32>
    %195 = vector.extract_strided_slice %182 {offsets = [2, 0, 0], sizes = [1, 4, 128], strides = [1, 1, 1]} : vector<4x4x128xf32> to vector<1x4x128xf32>
    %196 = vector.broadcast %194 : vector<4x1x128xf32> to vector<4x4x128xf32>
    %197 = vector.broadcast %195 : vector<1x4x128xf32> to vector<4x4x128xf32>
    %198 = arith.mulf %196, %197 : vector<4x4x128xf32>
    %199 = arith.addf %193, %198 : vector<4x4x128xf32>
    %200 = vector.extract_strided_slice %49 {offsets = [0, 3, 0], sizes = [4, 1, 128], strides = [1, 1, 1]} : vector<4x4x128xf32> to vector<4x1x128xf32>
    %201 = vector.extract_strided_slice %182 {offsets = [3, 0, 0], sizes = [1, 4, 128], strides = [1, 1, 1]} : vector<4x4x128xf32> to vector<1x4x128xf32>
    %202 = vector.broadcast %200 : vector<4x1x128xf32> to vector<4x4x128xf32>
    %203 = vector.broadcast %201 : vector<1x4x128xf32> to vector<4x4x128xf32>
    %204 = arith.mulf %202, %203 : vector<4x4x128xf32>
    %205 = arith.addf %199, %204 : vector<4x4x128xf32>
    %cst_18 = arith.constant 5.000000e-01 : f32
    %206 = vector.broadcast %cst_18 : f32 to vector<4x4x128xf32>
    %207 = arith.mulf %205, %206 : vector<4x4x128xf32>
    %208 = arith.addf %31, %207 : vector<4x4x128xf32>
    %209 = vector.extract_strided_slice %49 {offsets = [0, 0, 0], sizes = [4, 1, 128], strides = [1, 1, 1]} : vector<4x4x128xf32> to vector<4x1x128xf32>
    %210 = vector.extract_strided_slice %208 {offsets = [0, 0, 0], sizes = [1, 4, 128], strides = [1, 1, 1]} : vector<4x4x128xf32> to vector<1x4x128xf32>
    %211 = vector.broadcast %209 : vector<4x1x128xf32> to vector<4x4x128xf32>
    %212 = vector.broadcast %210 : vector<1x4x128xf32> to vector<4x4x128xf32>
    %213 = arith.mulf %211, %212 : vector<4x4x128xf32>
    %214 = vector.extract_strided_slice %49 {offsets = [0, 1, 0], sizes = [4, 1, 128], strides = [1, 1, 1]} : vector<4x4x128xf32> to vector<4x1x128xf32>
    %215 = vector.extract_strided_slice %208 {offsets = [1, 0, 0], sizes = [1, 4, 128], strides = [1, 1, 1]} : vector<4x4x128xf32> to vector<1x4x128xf32>
    %216 = vector.broadcast %214 : vector<4x1x128xf32> to vector<4x4x128xf32>
    %217 = vector.broadcast %215 : vector<1x4x128xf32> to vector<4x4x128xf32>
    %218 = arith.mulf %216, %217 : vector<4x4x128xf32>
    %219 = arith.addf %213, %218 : vector<4x4x128xf32>
    %220 = vector.extract_strided_slice %49 {offsets = [0, 2, 0], sizes = [4, 1, 128], strides = [1, 1, 1]} : vector<4x4x128xf32> to vector<4x1x128xf32>
    %221 = vector.extract_strided_slice %208 {offsets = [2, 0, 0], sizes = [1, 4, 128], strides = [1, 1, 1]} : vector<4x4x128xf32> to vector<1x4x128xf32>
    %222 = vector.broadcast %220 : vector<4x1x128xf32> to vector<4x4x128xf32>
    %223 = vector.broadcast %221 : vector<1x4x128xf32> to vector<4x4x128xf32>
    %224 = arith.mulf %222, %223 : vector<4x4x128xf32>
    %225 = arith.addf %219, %224 : vector<4x4x128xf32>
    %226 = vector.extract_strided_slice %49 {offsets = [0, 3, 0], sizes = [4, 1, 128], strides = [1, 1, 1]} : vector<4x4x128xf32> to vector<4x1x128xf32>
    %227 = vector.extract_strided_slice %208 {offsets = [3, 0, 0], sizes = [1, 4, 128], strides = [1, 1, 1]} : vector<4x4x128xf32> to vector<1x4x128xf32>
    %228 = vector.broadcast %226 : vector<4x1x128xf32> to vector<4x4x128xf32>
    %229 = vector.broadcast %227 : vector<1x4x128xf32> to vector<4x4x128xf32>
    %230 = arith.mulf %228, %229 : vector<4x4x128xf32>
    %231 = arith.addf %225, %230 : vector<4x4x128xf32>
    %cst_19 = arith.constant 1.000000e+00 : f32
    %232 = vector.broadcast %cst_19 : f32 to vector<4x4x128xf32>
    %233 = arith.mulf %231, %232 : vector<4x4x128xf32>
    %234 = arith.addf %31, %233 : vector<4x4x128xf32>
    %235 = vector.extract_strided_slice %234 {offsets = [0, 0, 0], sizes = [4, 1, 128], strides = [1, 1, 1]} : vector<4x4x128xf32> to vector<4x1x128xf32>
    %236 = vector.extract_strided_slice %234 {offsets = [0, 0, 0], sizes = [1, 4, 128], strides = [1, 1, 1]} : vector<4x4x128xf32> to vector<1x4x128xf32>
    %237 = vector.broadcast %235 : vector<4x1x128xf32> to vector<4x4x128xf32>
    %238 = vector.broadcast %236 : vector<1x4x128xf32> to vector<4x4x128xf32>
    %239 = arith.mulf %237, %238 : vector<4x4x128xf32>
    %240 = vector.extract_strided_slice %234 {offsets = [0, 1, 0], sizes = [4, 1, 128], strides = [1, 1, 1]} : vector<4x4x128xf32> to vector<4x1x128xf32>
    %241 = vector.extract_strided_slice %234 {offsets = [1, 0, 0], sizes = [1, 4, 128], strides = [1, 1, 1]} : vector<4x4x128xf32> to vector<1x4x128xf32>
    %242 = vector.broadcast %240 : vector<4x1x128xf32> to vector<4x4x128xf32>
    %243 = vector.broadcast %241 : vector<1x4x128xf32> to vector<4x4x128xf32>
    %244 = arith.mulf %242, %243 : vector<4x4x128xf32>
    %245 = arith.addf %239, %244 : vector<4x4x128xf32>
    %246 = vector.extract_strided_slice %234 {offsets = [0, 2, 0], sizes = [4, 1, 128], strides = [1, 1, 1]} : vector<4x4x128xf32> to vector<4x1x128xf32>
    %247 = vector.extract_strided_slice %234 {offsets = [2, 0, 0], sizes = [1, 4, 128], strides = [1, 1, 1]} : vector<4x4x128xf32> to vector<1x4x128xf32>
    %248 = vector.broadcast %246 : vector<4x1x128xf32> to vector<4x4x128xf32>
    %249 = vector.broadcast %247 : vector<1x4x128xf32> to vector<4x4x128xf32>
    %250 = arith.mulf %248, %249 : vector<4x4x128xf32>
    %251 = arith.addf %245, %250 : vector<4x4x128xf32>
    %252 = vector.extract_strided_slice %234 {offsets = [0, 3, 0], sizes = [4, 1, 128], strides = [1, 1, 1]} : vector<4x4x128xf32> to vector<4x1x128xf32>
    %253 = vector.extract_strided_slice %234 {offsets = [3, 0, 0], sizes = [1, 4, 128], strides = [1, 1, 1]} : vector<4x4x128xf32> to vector<1x4x128xf32>
    %254 = vector.broadcast %252 : vector<4x1x128xf32> to vector<4x4x128xf32>
    %255 = vector.broadcast %253 : vector<1x4x128xf32> to vector<4x4x128xf32>
    %256 = arith.mulf %254, %255 : vector<4x4x128xf32>
    %257 = arith.addf %251, %256 : vector<4x4x128xf32>
    %258 = vector.extract_strided_slice %257 {offsets = [0, 0, 0], sizes = [4, 1, 128], strides = [1, 1, 1]} : vector<4x4x128xf32> to vector<4x1x128xf32>
    %259 = vector.extract_strided_slice %257 {offsets = [0, 0, 0], sizes = [1, 4, 128], strides = [1, 1, 1]} : vector<4x4x128xf32> to vector<1x4x128xf32>
    %260 = vector.broadcast %258 : vector<4x1x128xf32> to vector<4x4x128xf32>
    %261 = vector.broadcast %259 : vector<1x4x128xf32> to vector<4x4x128xf32>
    %262 = arith.mulf %260, %261 : vector<4x4x128xf32>
    %263 = vector.extract_strided_slice %257 {offsets = [0, 1, 0], sizes = [4, 1, 128], strides = [1, 1, 1]} : vector<4x4x128xf32> to vector<4x1x128xf32>
    %264 = vector.extract_strided_slice %257 {offsets = [1, 0, 0], sizes = [1, 4, 128], strides = [1, 1, 1]} : vector<4x4x128xf32> to vector<1x4x128xf32>
    %265 = vector.broadcast %263 : vector<4x1x128xf32> to vector<4x4x128xf32>
    %266 = vector.broadcast %264 : vector<1x4x128xf32> to vector<4x4x128xf32>
    %267 = arith.mulf %265, %266 : vector<4x4x128xf32>
    %268 = arith.addf %262, %267 : vector<4x4x128xf32>
    %269 = vector.extract_strided_slice %257 {offsets = [0, 2, 0], sizes = [4, 1, 128], strides = [1, 1, 1]} : vector<4x4x128xf32> to vector<4x1x128xf32>
    %270 = vector.extract_strided_slice %257 {offsets = [2, 0, 0], sizes = [1, 4, 128], strides = [1, 1, 1]} : vector<4x4x128xf32> to vector<1x4x128xf32>
    %271 = vector.broadcast %269 : vector<4x1x128xf32> to vector<4x4x128xf32>
    %272 = vector.broadcast %270 : vector<1x4x128xf32> to vector<4x4x128xf32>
    %273 = arith.mulf %271, %272 : vector<4x4x128xf32>
    %274 = arith.addf %268, %273 : vector<4x4x128xf32>
    %275 = vector.extract_strided_slice %257 {offsets = [0, 3, 0], sizes = [4, 1, 128], strides = [1, 1, 1]} : vector<4x4x128xf32> to vector<4x1x128xf32>
    %276 = vector.extract_strided_slice %257 {offsets = [3, 0, 0], sizes = [1, 4, 128], strides = [1, 1, 1]} : vector<4x4x128xf32> to vector<1x4x128xf32>
    %277 = vector.broadcast %275 : vector<4x1x128xf32> to vector<4x4x128xf32>
    %278 = vector.broadcast %276 : vector<1x4x128xf32> to vector<4x4x128xf32>
    %279 = arith.mulf %277, %278 : vector<4x4x128xf32>
    %280 = arith.addf %274, %279 : vector<4x4x128xf32>
    %281 = vector.extract_strided_slice %280 {offsets = [0, 0, 0], sizes = [4, 1, 128], strides = [1, 1, 1]} : vector<4x4x128xf32> to vector<4x1x128xf32>
    %282 = vector.extract_strided_slice %280 {offsets = [0, 0, 0], sizes = [1, 4, 128], strides = [1, 1, 1]} : vector<4x4x128xf32> to vector<1x4x128xf32>
    %283 = vector.broadcast %281 : vector<4x1x128xf32> to vector<4x4x128xf32>
    %284 = vector.broadcast %282 : vector<1x4x128xf32> to vector<4x4x128xf32>
    %285 = arith.mulf %283, %284 : vector<4x4x128xf32>
    %286 = vector.extract_strided_slice %280 {offsets = [0, 1, 0], sizes = [4, 1, 128], strides = [1, 1, 1]} : vector<4x4x128xf32> to vector<4x1x128xf32>
    %287 = vector.extract_strided_slice %280 {offsets = [1, 0, 0], sizes = [1, 4, 128], strides = [1, 1, 1]} : vector<4x4x128xf32> to vector<1x4x128xf32>
    %288 = vector.broadcast %286 : vector<4x1x128xf32> to vector<4x4x128xf32>
    %289 = vector.broadcast %287 : vector<1x4x128xf32> to vector<4x4x128xf32>
    %290 = arith.mulf %288, %289 : vector<4x4x128xf32>
    %291 = arith.addf %285, %290 : vector<4x4x128xf32>
    %292 = vector.extract_strided_slice %280 {offsets = [0, 2, 0], sizes = [4, 1, 128], strides = [1, 1, 1]} : vector<4x4x128xf32> to vector<4x1x128xf32>
    %293 = vector.extract_strided_slice %280 {offsets = [2, 0, 0], sizes = [1, 4, 128], strides = [1, 1, 1]} : vector<4x4x128xf32> to vector<1x4x128xf32>
    %294 = vector.broadcast %292 : vector<4x1x128xf32> to vector<4x4x128xf32>
    %295 = vector.broadcast %293 : vector<1x4x128xf32> to vector<4x4x128xf32>
    %296 = arith.mulf %294, %295 : vector<4x4x128xf32>
    %297 = arith.addf %291, %296 : vector<4x4x128xf32>
    %298 = vector.extract_strided_slice %280 {offsets = [0, 3, 0], sizes = [4, 1, 128], strides = [1, 1, 1]} : vector<4x4x128xf32> to vector<4x1x128xf32>
    %299 = vector.extract_strided_slice %280 {offsets = [3, 0, 0], sizes = [1, 4, 128], strides = [1, 1, 1]} : vector<4x4x128xf32> to vector<1x4x128xf32>
    %300 = vector.broadcast %298 : vector<4x1x128xf32> to vector<4x4x128xf32>
    %301 = vector.broadcast %299 : vector<1x4x128xf32> to vector<4x4x128xf32>
    %302 = arith.mulf %300, %301 : vector<4x4x128xf32>
    %303 = arith.addf %297, %302 : vector<4x4x128xf32>
    %304 = vector.extract_strided_slice %303 {offsets = [0, 0, 0], sizes = [4, 1, 128], strides = [1, 1, 1]} : vector<4x4x128xf32> to vector<4x1x128xf32>
    %305 = vector.extract_strided_slice %303 {offsets = [0, 0, 0], sizes = [1, 4, 128], strides = [1, 1, 1]} : vector<4x4x128xf32> to vector<1x4x128xf32>
    %306 = vector.broadcast %304 : vector<4x1x128xf32> to vector<4x4x128xf32>
    %307 = vector.broadcast %305 : vector<1x4x128xf32> to vector<4x4x128xf32>
    %308 = arith.mulf %306, %307 : vector<4x4x128xf32>
    %309 = vector.extract_strided_slice %303 {offsets = [0, 1, 0], sizes = [4, 1, 128], strides = [1, 1, 1]} : vector<4x4x128xf32> to vector<4x1x128xf32>
    %310 = vector.extract_strided_slice %303 {offsets = [1, 0, 0], sizes = [1, 4, 128], strides = [1, 1, 1]} : vector<4x4x128xf32> to vector<1x4x128xf32>
    %311 = vector.broadcast %309 : vector<4x1x128xf32> to vector<4x4x128xf32>
    %312 = vector.broadcast %310 : vector<1x4x128xf32> to vector<4x4x128xf32>
    %313 = arith.mulf %311, %312 : vector<4x4x128xf32>
    %314 = arith.addf %308, %313 : vector<4x4x128xf32>
    %315 = vector.extract_strided_slice %303 {offsets = [0, 2, 0], sizes = [4, 1, 128], strides = [1, 1, 1]} : vector<4x4x128xf32> to vector<4x1x128xf32>
    %316 = vector.extract_strided_slice %303 {offsets = [2, 0, 0], sizes = [1, 4, 128], strides = [1, 1, 1]} : vector<4x4x128xf32> to vector<1x4x128xf32>
    %317 = vector.broadcast %315 : vector<4x1x128xf32> to vector<4x4x128xf32>
    %318 = vector.broadcast %316 : vector<1x4x128xf32> to vector<4x4x128xf32>
    %319 = arith.mulf %317, %318 : vector<4x4x128xf32>
    %320 = arith.addf %314, %319 : vector<4x4x128xf32>
    %321 = vector.extract_strided_slice %303 {offsets = [0, 3, 0], sizes = [4, 1, 128], strides = [1, 1, 1]} : vector<4x4x128xf32> to vector<4x1x128xf32>
    %322 = vector.extract_strided_slice %303 {offsets = [3, 0, 0], sizes = [1, 4, 128], strides = [1, 1, 1]} : vector<4x4x128xf32> to vector<1x4x128xf32>
    %323 = vector.broadcast %321 : vector<4x1x128xf32> to vector<4x4x128xf32>
    %324 = vector.broadcast %322 : vector<1x4x128xf32> to vector<4x4x128xf32>
    %325 = arith.mulf %323, %324 : vector<4x4x128xf32>
    %326 = arith.addf %320, %325 : vector<4x4x128xf32>
    %327 = vector.extract_strided_slice %326 {offsets = [0, 0, 0], sizes = [4, 1, 128], strides = [1, 1, 1]} : vector<4x4x128xf32> to vector<4x1x128xf32>
    %328 = vector.extract_strided_slice %326 {offsets = [0, 0, 0], sizes = [1, 4, 128], strides = [1, 1, 1]} : vector<4x4x128xf32> to vector<1x4x128xf32>
    %329 = vector.broadcast %327 : vector<4x1x128xf32> to vector<4x4x128xf32>
    %330 = vector.broadcast %328 : vector<1x4x128xf32> to vector<4x4x128xf32>
    %331 = arith.mulf %329, %330 : vector<4x4x128xf32>
    %332 = vector.extract_strided_slice %326 {offsets = [0, 1, 0], sizes = [4, 1, 128], strides = [1, 1, 1]} : vector<4x4x128xf32> to vector<4x1x128xf32>
    %333 = vector.extract_strided_slice %326 {offsets = [1, 0, 0], sizes = [1, 4, 128], strides = [1, 1, 1]} : vector<4x4x128xf32> to vector<1x4x128xf32>
    %334 = vector.broadcast %332 : vector<4x1x128xf32> to vector<4x4x128xf32>
    %335 = vector.broadcast %333 : vector<1x4x128xf32> to vector<4x4x128xf32>
    %336 = arith.mulf %334, %335 : vector<4x4x128xf32>
    %337 = arith.addf %331, %336 : vector<4x4x128xf32>
    %338 = vector.extract_strided_slice %326 {offsets = [0, 2, 0], sizes = [4, 1, 128], strides = [1, 1, 1]} : vector<4x4x128xf32> to vector<4x1x128xf32>
    %339 = vector.extract_strided_slice %326 {offsets = [2, 0, 0], sizes = [1, 4, 128], strides = [1, 1, 1]} : vector<4x4x128xf32> to vector<1x4x128xf32>
    %340 = vector.broadcast %338 : vector<4x1x128xf32> to vector<4x4x128xf32>
    %341 = vector.broadcast %339 : vector<1x4x128xf32> to vector<4x4x128xf32>
    %342 = arith.mulf %340, %341 : vector<4x4x128xf32>
    %343 = arith.addf %337, %342 : vector<4x4x128xf32>
    %344 = vector.extract_strided_slice %326 {offsets = [0, 3, 0], sizes = [4, 1, 128], strides = [1, 1, 1]} : vector<4x4x128xf32> to vector<4x1x128xf32>
    %345 = vector.extract_strided_slice %326 {offsets = [3, 0, 0], sizes = [1, 4, 128], strides = [1, 1, 1]} : vector<4x4x128xf32> to vector<1x4x128xf32>
    %346 = vector.broadcast %344 : vector<4x1x128xf32> to vector<4x4x128xf32>
    %347 = vector.broadcast %345 : vector<1x4x128xf32> to vector<4x4x128xf32>
    %348 = arith.mulf %346, %347 : vector<4x4x128xf32>
    %349 = arith.addf %343, %348 : vector<4x4x128xf32>
    %350 = vector.extract_strided_slice %349 {offsets = [0, 0, 0], sizes = [4, 1, 128], strides = [1, 1, 1]} : vector<4x4x128xf32> to vector<4x1x128xf32>
    %351 = vector.extract_strided_slice %349 {offsets = [0, 0, 0], sizes = [1, 4, 128], strides = [1, 1, 1]} : vector<4x4x128xf32> to vector<1x4x128xf32>
    %352 = vector.broadcast %350 : vector<4x1x128xf32> to vector<4x4x128xf32>
    %353 = vector.broadcast %351 : vector<1x4x128xf32> to vector<4x4x128xf32>
    %354 = arith.mulf %352, %353 : vector<4x4x128xf32>
    %355 = vector.extract_strided_slice %349 {offsets = [0, 1, 0], sizes = [4, 1, 128], strides = [1, 1, 1]} : vector<4x4x128xf32> to vector<4x1x128xf32>
    %356 = vector.extract_strided_slice %349 {offsets = [1, 0, 0], sizes = [1, 4, 128], strides = [1, 1, 1]} : vector<4x4x128xf32> to vector<1x4x128xf32>
    %357 = vector.broadcast %355 : vector<4x1x128xf32> to vector<4x4x128xf32>
    %358 = vector.broadcast %356 : vector<1x4x128xf32> to vector<4x4x128xf32>
    %359 = arith.mulf %357, %358 : vector<4x4x128xf32>
    %360 = arith.addf %354, %359 : vector<4x4x128xf32>
    %361 = vector.extract_strided_slice %349 {offsets = [0, 2, 0], sizes = [4, 1, 128], strides = [1, 1, 1]} : vector<4x4x128xf32> to vector<4x1x128xf32>
    %362 = vector.extract_strided_slice %349 {offsets = [2, 0, 0], sizes = [1, 4, 128], strides = [1, 1, 1]} : vector<4x4x128xf32> to vector<1x4x128xf32>
    %363 = vector.broadcast %361 : vector<4x1x128xf32> to vector<4x4x128xf32>
    %364 = vector.broadcast %362 : vector<1x4x128xf32> to vector<4x4x128xf32>
    %365 = arith.mulf %363, %364 : vector<4x4x128xf32>
    %366 = arith.addf %360, %365 : vector<4x4x128xf32>
    %367 = vector.extract_strided_slice %349 {offsets = [0, 3, 0], sizes = [4, 1, 128], strides = [1, 1, 1]} : vector<4x4x128xf32> to vector<4x1x128xf32>
    %368 = vector.extract_strided_slice %349 {offsets = [3, 0, 0], sizes = [1, 4, 128], strides = [1, 1, 1]} : vector<4x4x128xf32> to vector<1x4x128xf32>
    %369 = vector.broadcast %367 : vector<4x1x128xf32> to vector<4x4x128xf32>
    %370 = vector.broadcast %368 : vector<1x4x128xf32> to vector<4x4x128xf32>
    %371 = arith.mulf %369, %370 : vector<4x4x128xf32>
    %372 = arith.addf %366, %371 : vector<4x4x128xf32>
    %cst_20 = arith.constant 0.000000e+00 : f32
    %373 = vector.broadcast %cst_20 : f32 to vector<4x4x128xf32>
    %374 = arith.subf %373, %49 : vector<4x4x128xf32>
    %cst_21 = arith.constant 1.250000e-01 : f32
    %375 = vector.broadcast %cst_21 : f32 to vector<4x4x128xf32>
    %376 = arith.mulf %374, %375 : vector<4x4x128xf32>
    %377 = arith.addf %31, %376 : vector<4x4x128xf32>
    %378 = vector.extract_strided_slice %374 {offsets = [0, 0, 0], sizes = [4, 1, 128], strides = [1, 1, 1]} : vector<4x4x128xf32> to vector<4x1x128xf32>
    %379 = vector.extract_strided_slice %377 {offsets = [0, 0, 0], sizes = [1, 4, 128], strides = [1, 1, 1]} : vector<4x4x128xf32> to vector<1x4x128xf32>
    %380 = vector.broadcast %378 : vector<4x1x128xf32> to vector<4x4x128xf32>
    %381 = vector.broadcast %379 : vector<1x4x128xf32> to vector<4x4x128xf32>
    %382 = arith.mulf %380, %381 : vector<4x4x128xf32>
    %383 = vector.extract_strided_slice %374 {offsets = [0, 1, 0], sizes = [4, 1, 128], strides = [1, 1, 1]} : vector<4x4x128xf32> to vector<4x1x128xf32>
    %384 = vector.extract_strided_slice %377 {offsets = [1, 0, 0], sizes = [1, 4, 128], strides = [1, 1, 1]} : vector<4x4x128xf32> to vector<1x4x128xf32>
    %385 = vector.broadcast %383 : vector<4x1x128xf32> to vector<4x4x128xf32>
    %386 = vector.broadcast %384 : vector<1x4x128xf32> to vector<4x4x128xf32>
    %387 = arith.mulf %385, %386 : vector<4x4x128xf32>
    %388 = arith.addf %382, %387 : vector<4x4x128xf32>
    %389 = vector.extract_strided_slice %374 {offsets = [0, 2, 0], sizes = [4, 1, 128], strides = [1, 1, 1]} : vector<4x4x128xf32> to vector<4x1x128xf32>
    %390 = vector.extract_strided_slice %377 {offsets = [2, 0, 0], sizes = [1, 4, 128], strides = [1, 1, 1]} : vector<4x4x128xf32> to vector<1x4x128xf32>
    %391 = vector.broadcast %389 : vector<4x1x128xf32> to vector<4x4x128xf32>
    %392 = vector.broadcast %390 : vector<1x4x128xf32> to vector<4x4x128xf32>
    %393 = arith.mulf %391, %392 : vector<4x4x128xf32>
    %394 = arith.addf %388, %393 : vector<4x4x128xf32>
    %395 = vector.extract_strided_slice %374 {offsets = [0, 3, 0], sizes = [4, 1, 128], strides = [1, 1, 1]} : vector<4x4x128xf32> to vector<4x1x128xf32>
    %396 = vector.extract_strided_slice %377 {offsets = [3, 0, 0], sizes = [1, 4, 128], strides = [1, 1, 1]} : vector<4x4x128xf32> to vector<1x4x128xf32>
    %397 = vector.broadcast %395 : vector<4x1x128xf32> to vector<4x4x128xf32>
    %398 = vector.broadcast %396 : vector<1x4x128xf32> to vector<4x4x128xf32>
    %399 = arith.mulf %397, %398 : vector<4x4x128xf32>
    %400 = arith.addf %394, %399 : vector<4x4x128xf32>
    %cst_22 = arith.constant 0.142857149 : f32
    %401 = vector.broadcast %cst_22 : f32 to vector<4x4x128xf32>
    %402 = arith.mulf %400, %401 : vector<4x4x128xf32>
    %403 = arith.addf %31, %402 : vector<4x4x128xf32>
    %404 = vector.extract_strided_slice %374 {offsets = [0, 0, 0], sizes = [4, 1, 128], strides = [1, 1, 1]} : vector<4x4x128xf32> to vector<4x1x128xf32>
    %405 = vector.extract_strided_slice %403 {offsets = [0, 0, 0], sizes = [1, 4, 128], strides = [1, 1, 1]} : vector<4x4x128xf32> to vector<1x4x128xf32>
    %406 = vector.broadcast %404 : vector<4x1x128xf32> to vector<4x4x128xf32>
    %407 = vector.broadcast %405 : vector<1x4x128xf32> to vector<4x4x128xf32>
    %408 = arith.mulf %406, %407 : vector<4x4x128xf32>
    %409 = vector.extract_strided_slice %374 {offsets = [0, 1, 0], sizes = [4, 1, 128], strides = [1, 1, 1]} : vector<4x4x128xf32> to vector<4x1x128xf32>
    %410 = vector.extract_strided_slice %403 {offsets = [1, 0, 0], sizes = [1, 4, 128], strides = [1, 1, 1]} : vector<4x4x128xf32> to vector<1x4x128xf32>
    %411 = vector.broadcast %409 : vector<4x1x128xf32> to vector<4x4x128xf32>
    %412 = vector.broadcast %410 : vector<1x4x128xf32> to vector<4x4x128xf32>
    %413 = arith.mulf %411, %412 : vector<4x4x128xf32>
    %414 = arith.addf %408, %413 : vector<4x4x128xf32>
    %415 = vector.extract_strided_slice %374 {offsets = [0, 2, 0], sizes = [4, 1, 128], strides = [1, 1, 1]} : vector<4x4x128xf32> to vector<4x1x128xf32>
    %416 = vector.extract_strided_slice %403 {offsets = [2, 0, 0], sizes = [1, 4, 128], strides = [1, 1, 1]} : vector<4x4x128xf32> to vector<1x4x128xf32>
    %417 = vector.broadcast %415 : vector<4x1x128xf32> to vector<4x4x128xf32>
    %418 = vector.broadcast %416 : vector<1x4x128xf32> to vector<4x4x128xf32>
    %419 = arith.mulf %417, %418 : vector<4x4x128xf32>
    %420 = arith.addf %414, %419 : vector<4x4x128xf32>
    %421 = vector.extract_strided_slice %374 {offsets = [0, 3, 0], sizes = [4, 1, 128], strides = [1, 1, 1]} : vector<4x4x128xf32> to vector<4x1x128xf32>
    %422 = vector.extract_strided_slice %403 {offsets = [3, 0, 0], sizes = [1, 4, 128], strides = [1, 1, 1]} : vector<4x4x128xf32> to vector<1x4x128xf32>
    %423 = vector.broadcast %421 : vector<4x1x128xf32> to vector<4x4x128xf32>
    %424 = vector.broadcast %422 : vector<1x4x128xf32> to vector<4x4x128xf32>
    %425 = arith.mulf %423, %424 : vector<4x4x128xf32>
    %426 = arith.addf %420, %425 : vector<4x4x128xf32>
    %cst_23 = arith.constant 0.166666672 : f32
    %427 = vector.broadcast %cst_23 : f32 to vector<4x4x128xf32>
    %428 = arith.mulf %426, %427 : vector<4x4x128xf32>
    %429 = arith.addf %31, %428 : vector<4x4x128xf32>
    %430 = vector.extract_strided_slice %374 {offsets = [0, 0, 0], sizes = [4, 1, 128], strides = [1, 1, 1]} : vector<4x4x128xf32> to vector<4x1x128xf32>
    %431 = vector.extract_strided_slice %429 {offsets = [0, 0, 0], sizes = [1, 4, 128], strides = [1, 1, 1]} : vector<4x4x128xf32> to vector<1x4x128xf32>
    %432 = vector.broadcast %430 : vector<4x1x128xf32> to vector<4x4x128xf32>
    %433 = vector.broadcast %431 : vector<1x4x128xf32> to vector<4x4x128xf32>
    %434 = arith.mulf %432, %433 : vector<4x4x128xf32>
    %435 = vector.extract_strided_slice %374 {offsets = [0, 1, 0], sizes = [4, 1, 128], strides = [1, 1, 1]} : vector<4x4x128xf32> to vector<4x1x128xf32>
    %436 = vector.extract_strided_slice %429 {offsets = [1, 0, 0], sizes = [1, 4, 128], strides = [1, 1, 1]} : vector<4x4x128xf32> to vector<1x4x128xf32>
    %437 = vector.broadcast %435 : vector<4x1x128xf32> to vector<4x4x128xf32>
    %438 = vector.broadcast %436 : vector<1x4x128xf32> to vector<4x4x128xf32>
    %439 = arith.mulf %437, %438 : vector<4x4x128xf32>
    %440 = arith.addf %434, %439 : vector<4x4x128xf32>
    %441 = vector.extract_strided_slice %374 {offsets = [0, 2, 0], sizes = [4, 1, 128], strides = [1, 1, 1]} : vector<4x4x128xf32> to vector<4x1x128xf32>
    %442 = vector.extract_strided_slice %429 {offsets = [2, 0, 0], sizes = [1, 4, 128], strides = [1, 1, 1]} : vector<4x4x128xf32> to vector<1x4x128xf32>
    %443 = vector.broadcast %441 : vector<4x1x128xf32> to vector<4x4x128xf32>
    %444 = vector.broadcast %442 : vector<1x4x128xf32> to vector<4x4x128xf32>
    %445 = arith.mulf %443, %444 : vector<4x4x128xf32>
    %446 = arith.addf %440, %445 : vector<4x4x128xf32>
    %447 = vector.extract_strided_slice %374 {offsets = [0, 3, 0], sizes = [4, 1, 128], strides = [1, 1, 1]} : vector<4x4x128xf32> to vector<4x1x128xf32>
    %448 = vector.extract_strided_slice %429 {offsets = [3, 0, 0], sizes = [1, 4, 128], strides = [1, 1, 1]} : vector<4x4x128xf32> to vector<1x4x128xf32>
    %449 = vector.broadcast %447 : vector<4x1x128xf32> to vector<4x4x128xf32>
    %450 = vector.broadcast %448 : vector<1x4x128xf32> to vector<4x4x128xf32>
    %451 = arith.mulf %449, %450 : vector<4x4x128xf32>
    %452 = arith.addf %446, %451 : vector<4x4x128xf32>
    %cst_24 = arith.constant 2.000000e-01 : f32
    %453 = vector.broadcast %cst_24 : f32 to vector<4x4x128xf32>
    %454 = arith.mulf %452, %453 : vector<4x4x128xf32>
    %455 = arith.addf %31, %454 : vector<4x4x128xf32>
    %456 = vector.extract_strided_slice %374 {offsets = [0, 0, 0], sizes = [4, 1, 128], strides = [1, 1, 1]} : vector<4x4x128xf32> to vector<4x1x128xf32>
    %457 = vector.extract_strided_slice %455 {offsets = [0, 0, 0], sizes = [1, 4, 128], strides = [1, 1, 1]} : vector<4x4x128xf32> to vector<1x4x128xf32>
    %458 = vector.broadcast %456 : vector<4x1x128xf32> to vector<4x4x128xf32>
    %459 = vector.broadcast %457 : vector<1x4x128xf32> to vector<4x4x128xf32>
    %460 = arith.mulf %458, %459 : vector<4x4x128xf32>
    %461 = vector.extract_strided_slice %374 {offsets = [0, 1, 0], sizes = [4, 1, 128], strides = [1, 1, 1]} : vector<4x4x128xf32> to vector<4x1x128xf32>
    %462 = vector.extract_strided_slice %455 {offsets = [1, 0, 0], sizes = [1, 4, 128], strides = [1, 1, 1]} : vector<4x4x128xf32> to vector<1x4x128xf32>
    %463 = vector.broadcast %461 : vector<4x1x128xf32> to vector<4x4x128xf32>
    %464 = vector.broadcast %462 : vector<1x4x128xf32> to vector<4x4x128xf32>
    %465 = arith.mulf %463, %464 : vector<4x4x128xf32>
    %466 = arith.addf %460, %465 : vector<4x4x128xf32>
    %467 = vector.extract_strided_slice %374 {offsets = [0, 2, 0], sizes = [4, 1, 128], strides = [1, 1, 1]} : vector<4x4x128xf32> to vector<4x1x128xf32>
    %468 = vector.extract_strided_slice %455 {offsets = [2, 0, 0], sizes = [1, 4, 128], strides = [1, 1, 1]} : vector<4x4x128xf32> to vector<1x4x128xf32>
    %469 = vector.broadcast %467 : vector<4x1x128xf32> to vector<4x4x128xf32>
    %470 = vector.broadcast %468 : vector<1x4x128xf32> to vector<4x4x128xf32>
    %471 = arith.mulf %469, %470 : vector<4x4x128xf32>
    %472 = arith.addf %466, %471 : vector<4x4x128xf32>
    %473 = vector.extract_strided_slice %374 {offsets = [0, 3, 0], sizes = [4, 1, 128], strides = [1, 1, 1]} : vector<4x4x128xf32> to vector<4x1x128xf32>
    %474 = vector.extract_strided_slice %455 {offsets = [3, 0, 0], sizes = [1, 4, 128], strides = [1, 1, 1]} : vector<4x4x128xf32> to vector<1x4x128xf32>
    %475 = vector.broadcast %473 : vector<4x1x128xf32> to vector<4x4x128xf32>
    %476 = vector.broadcast %474 : vector<1x4x128xf32> to vector<4x4x128xf32>
    %477 = arith.mulf %475, %476 : vector<4x4x128xf32>
    %478 = arith.addf %472, %477 : vector<4x4x128xf32>
    %cst_25 = arith.constant 2.500000e-01 : f32
    %479 = vector.broadcast %cst_25 : f32 to vector<4x4x128xf32>
    %480 = arith.mulf %478, %479 : vector<4x4x128xf32>
    %481 = arith.addf %31, %480 : vector<4x4x128xf32>
    %482 = vector.extract_strided_slice %374 {offsets = [0, 0, 0], sizes = [4, 1, 128], strides = [1, 1, 1]} : vector<4x4x128xf32> to vector<4x1x128xf32>
    %483 = vector.extract_strided_slice %481 {offsets = [0, 0, 0], sizes = [1, 4, 128], strides = [1, 1, 1]} : vector<4x4x128xf32> to vector<1x4x128xf32>
    %484 = vector.broadcast %482 : vector<4x1x128xf32> to vector<4x4x128xf32>
    %485 = vector.broadcast %483 : vector<1x4x128xf32> to vector<4x4x128xf32>
    %486 = arith.mulf %484, %485 : vector<4x4x128xf32>
    %487 = vector.extract_strided_slice %374 {offsets = [0, 1, 0], sizes = [4, 1, 128], strides = [1, 1, 1]} : vector<4x4x128xf32> to vector<4x1x128xf32>
    %488 = vector.extract_strided_slice %481 {offsets = [1, 0, 0], sizes = [1, 4, 128], strides = [1, 1, 1]} : vector<4x4x128xf32> to vector<1x4x128xf32>
    %489 = vector.broadcast %487 : vector<4x1x128xf32> to vector<4x4x128xf32>
    %490 = vector.broadcast %488 : vector<1x4x128xf32> to vector<4x4x128xf32>
    %491 = arith.mulf %489, %490 : vector<4x4x128xf32>
    %492 = arith.addf %486, %491 : vector<4x4x128xf32>
    %493 = vector.extract_strided_slice %374 {offsets = [0, 2, 0], sizes = [4, 1, 128], strides = [1, 1, 1]} : vector<4x4x128xf32> to vector<4x1x128xf32>
    %494 = vector.extract_strided_slice %481 {offsets = [2, 0, 0], sizes = [1, 4, 128], strides = [1, 1, 1]} : vector<4x4x128xf32> to vector<1x4x128xf32>
    %495 = vector.broadcast %493 : vector<4x1x128xf32> to vector<4x4x128xf32>
    %496 = vector.broadcast %494 : vector<1x4x128xf32> to vector<4x4x128xf32>
    %497 = arith.mulf %495, %496 : vector<4x4x128xf32>
    %498 = arith.addf %492, %497 : vector<4x4x128xf32>
    %499 = vector.extract_strided_slice %374 {offsets = [0, 3, 0], sizes = [4, 1, 128], strides = [1, 1, 1]} : vector<4x4x128xf32> to vector<4x1x128xf32>
    %500 = vector.extract_strided_slice %481 {offsets = [3, 0, 0], sizes = [1, 4, 128], strides = [1, 1, 1]} : vector<4x4x128xf32> to vector<1x4x128xf32>
    %501 = vector.broadcast %499 : vector<4x1x128xf32> to vector<4x4x128xf32>
    %502 = vector.broadcast %500 : vector<1x4x128xf32> to vector<4x4x128xf32>
    %503 = arith.mulf %501, %502 : vector<4x4x128xf32>
    %504 = arith.addf %498, %503 : vector<4x4x128xf32>
    %cst_26 = arith.constant 0.333333343 : f32
    %505 = vector.broadcast %cst_26 : f32 to vector<4x4x128xf32>
    %506 = arith.mulf %504, %505 : vector<4x4x128xf32>
    %507 = arith.addf %31, %506 : vector<4x4x128xf32>
    %508 = vector.extract_strided_slice %374 {offsets = [0, 0, 0], sizes = [4, 1, 128], strides = [1, 1, 1]} : vector<4x4x128xf32> to vector<4x1x128xf32>
    %509 = vector.extract_strided_slice %507 {offsets = [0, 0, 0], sizes = [1, 4, 128], strides = [1, 1, 1]} : vector<4x4x128xf32> to vector<1x4x128xf32>
    %510 = vector.broadcast %508 : vector<4x1x128xf32> to vector<4x4x128xf32>
    %511 = vector.broadcast %509 : vector<1x4x128xf32> to vector<4x4x128xf32>
    %512 = arith.mulf %510, %511 : vector<4x4x128xf32>
    %513 = vector.extract_strided_slice %374 {offsets = [0, 1, 0], sizes = [4, 1, 128], strides = [1, 1, 1]} : vector<4x4x128xf32> to vector<4x1x128xf32>
    %514 = vector.extract_strided_slice %507 {offsets = [1, 0, 0], sizes = [1, 4, 128], strides = [1, 1, 1]} : vector<4x4x128xf32> to vector<1x4x128xf32>
    %515 = vector.broadcast %513 : vector<4x1x128xf32> to vector<4x4x128xf32>
    %516 = vector.broadcast %514 : vector<1x4x128xf32> to vector<4x4x128xf32>
    %517 = arith.mulf %515, %516 : vector<4x4x128xf32>
    %518 = arith.addf %512, %517 : vector<4x4x128xf32>
    %519 = vector.extract_strided_slice %374 {offsets = [0, 2, 0], sizes = [4, 1, 128], strides = [1, 1, 1]} : vector<4x4x128xf32> to vector<4x1x128xf32>
    %520 = vector.extract_strided_slice %507 {offsets = [2, 0, 0], sizes = [1, 4, 128], strides = [1, 1, 1]} : vector<4x4x128xf32> to vector<1x4x128xf32>
    %521 = vector.broadcast %519 : vector<4x1x128xf32> to vector<4x4x128xf32>
    %522 = vector.broadcast %520 : vector<1x4x128xf32> to vector<4x4x128xf32>
    %523 = arith.mulf %521, %522 : vector<4x4x128xf32>
    %524 = arith.addf %518, %523 : vector<4x4x128xf32>
    %525 = vector.extract_strided_slice %374 {offsets = [0, 3, 0], sizes = [4, 1, 128], strides = [1, 1, 1]} : vector<4x4x128xf32> to vector<4x1x128xf32>
    %526 = vector.extract_strided_slice %507 {offsets = [3, 0, 0], sizes = [1, 4, 128], strides = [1, 1, 1]} : vector<4x4x128xf32> to vector<1x4x128xf32>
    %527 = vector.broadcast %525 : vector<4x1x128xf32> to vector<4x4x128xf32>
    %528 = vector.broadcast %526 : vector<1x4x128xf32> to vector<4x4x128xf32>
    %529 = arith.mulf %527, %528 : vector<4x4x128xf32>
    %530 = arith.addf %524, %529 : vector<4x4x128xf32>
    %cst_27 = arith.constant 5.000000e-01 : f32
    %531 = vector.broadcast %cst_27 : f32 to vector<4x4x128xf32>
    %532 = arith.mulf %530, %531 : vector<4x4x128xf32>
    %533 = arith.addf %31, %532 : vector<4x4x128xf32>
    %534 = vector.extract_strided_slice %374 {offsets = [0, 0, 0], sizes = [4, 1, 128], strides = [1, 1, 1]} : vector<4x4x128xf32> to vector<4x1x128xf32>
    %535 = vector.extract_strided_slice %533 {offsets = [0, 0, 0], sizes = [1, 4, 128], strides = [1, 1, 1]} : vector<4x4x128xf32> to vector<1x4x128xf32>
    %536 = vector.broadcast %534 : vector<4x1x128xf32> to vector<4x4x128xf32>
    %537 = vector.broadcast %535 : vector<1x4x128xf32> to vector<4x4x128xf32>
    %538 = arith.mulf %536, %537 : vector<4x4x128xf32>
    %539 = vector.extract_strided_slice %374 {offsets = [0, 1, 0], sizes = [4, 1, 128], strides = [1, 1, 1]} : vector<4x4x128xf32> to vector<4x1x128xf32>
    %540 = vector.extract_strided_slice %533 {offsets = [1, 0, 0], sizes = [1, 4, 128], strides = [1, 1, 1]} : vector<4x4x128xf32> to vector<1x4x128xf32>
    %541 = vector.broadcast %539 : vector<4x1x128xf32> to vector<4x4x128xf32>
    %542 = vector.broadcast %540 : vector<1x4x128xf32> to vector<4x4x128xf32>
    %543 = arith.mulf %541, %542 : vector<4x4x128xf32>
    %544 = arith.addf %538, %543 : vector<4x4x128xf32>
    %545 = vector.extract_strided_slice %374 {offsets = [0, 2, 0], sizes = [4, 1, 128], strides = [1, 1, 1]} : vector<4x4x128xf32> to vector<4x1x128xf32>
    %546 = vector.extract_strided_slice %533 {offsets = [2, 0, 0], sizes = [1, 4, 128], strides = [1, 1, 1]} : vector<4x4x128xf32> to vector<1x4x128xf32>
    %547 = vector.broadcast %545 : vector<4x1x128xf32> to vector<4x4x128xf32>
    %548 = vector.broadcast %546 : vector<1x4x128xf32> to vector<4x4x128xf32>
    %549 = arith.mulf %547, %548 : vector<4x4x128xf32>
    %550 = arith.addf %544, %549 : vector<4x4x128xf32>
    %551 = vector.extract_strided_slice %374 {offsets = [0, 3, 0], sizes = [4, 1, 128], strides = [1, 1, 1]} : vector<4x4x128xf32> to vector<4x1x128xf32>
    %552 = vector.extract_strided_slice %533 {offsets = [3, 0, 0], sizes = [1, 4, 128], strides = [1, 1, 1]} : vector<4x4x128xf32> to vector<1x4x128xf32>
    %553 = vector.broadcast %551 : vector<4x1x128xf32> to vector<4x4x128xf32>
    %554 = vector.broadcast %552 : vector<1x4x128xf32> to vector<4x4x128xf32>
    %555 = arith.mulf %553, %554 : vector<4x4x128xf32>
    %556 = arith.addf %550, %555 : vector<4x4x128xf32>
    %cst_28 = arith.constant 1.000000e+00 : f32
    %557 = vector.broadcast %cst_28 : f32 to vector<4x4x128xf32>
    %558 = arith.mulf %556, %557 : vector<4x4x128xf32>
    %559 = arith.addf %31, %558 : vector<4x4x128xf32>
    %560 = vector.extract_strided_slice %559 {offsets = [0, 0, 0], sizes = [4, 1, 128], strides = [1, 1, 1]} : vector<4x4x128xf32> to vector<4x1x128xf32>
    %561 = vector.extract_strided_slice %559 {offsets = [0, 0, 0], sizes = [1, 4, 128], strides = [1, 1, 1]} : vector<4x4x128xf32> to vector<1x4x128xf32>
    %562 = vector.broadcast %560 : vector<4x1x128xf32> to vector<4x4x128xf32>
    %563 = vector.broadcast %561 : vector<1x4x128xf32> to vector<4x4x128xf32>
    %564 = arith.mulf %562, %563 : vector<4x4x128xf32>
    %565 = vector.extract_strided_slice %559 {offsets = [0, 1, 0], sizes = [4, 1, 128], strides = [1, 1, 1]} : vector<4x4x128xf32> to vector<4x1x128xf32>
    %566 = vector.extract_strided_slice %559 {offsets = [1, 0, 0], sizes = [1, 4, 128], strides = [1, 1, 1]} : vector<4x4x128xf32> to vector<1x4x128xf32>
    %567 = vector.broadcast %565 : vector<4x1x128xf32> to vector<4x4x128xf32>
    %568 = vector.broadcast %566 : vector<1x4x128xf32> to vector<4x4x128xf32>
    %569 = arith.mulf %567, %568 : vector<4x4x128xf32>
    %570 = arith.addf %564, %569 : vector<4x4x128xf32>
    %571 = vector.extract_strided_slice %559 {offsets = [0, 2, 0], sizes = [4, 1, 128], strides = [1, 1, 1]} : vector<4x4x128xf32> to vector<4x1x128xf32>
    %572 = vector.extract_strided_slice %559 {offsets = [2, 0, 0], sizes = [1, 4, 128], strides = [1, 1, 1]} : vector<4x4x128xf32> to vector<1x4x128xf32>
    %573 = vector.broadcast %571 : vector<4x1x128xf32> to vector<4x4x128xf32>
    %574 = vector.broadcast %572 : vector<1x4x128xf32> to vector<4x4x128xf32>
    %575 = arith.mulf %573, %574 : vector<4x4x128xf32>
    %576 = arith.addf %570, %575 : vector<4x4x128xf32>
    %577 = vector.extract_strided_slice %559 {offsets = [0, 3, 0], sizes = [4, 1, 128], strides = [1, 1, 1]} : vector<4x4x128xf32> to vector<4x1x128xf32>
    %578 = vector.extract_strided_slice %559 {offsets = [3, 0, 0], sizes = [1, 4, 128], strides = [1, 1, 1]} : vector<4x4x128xf32> to vector<1x4x128xf32>
    %579 = vector.broadcast %577 : vector<4x1x128xf32> to vector<4x4x128xf32>
    %580 = vector.broadcast %578 : vector<1x4x128xf32> to vector<4x4x128xf32>
    %581 = arith.mulf %579, %580 : vector<4x4x128xf32>
    %582 = arith.addf %576, %581 : vector<4x4x128xf32>
    %583 = vector.extract_strided_slice %582 {offsets = [0, 0, 0], sizes = [4, 1, 128], strides = [1, 1, 1]} : vector<4x4x128xf32> to vector<4x1x128xf32>
    %584 = vector.extract_strided_slice %582 {offsets = [0, 0, 0], sizes = [1, 4, 128], strides = [1, 1, 1]} : vector<4x4x128xf32> to vector<1x4x128xf32>
    %585 = vector.broadcast %583 : vector<4x1x128xf32> to vector<4x4x128xf32>
    %586 = vector.broadcast %584 : vector<1x4x128xf32> to vector<4x4x128xf32>
    %587 = arith.mulf %585, %586 : vector<4x4x128xf32>
    %588 = vector.extract_strided_slice %582 {offsets = [0, 1, 0], sizes = [4, 1, 128], strides = [1, 1, 1]} : vector<4x4x128xf32> to vector<4x1x128xf32>
    %589 = vector.extract_strided_slice %582 {offsets = [1, 0, 0], sizes = [1, 4, 128], strides = [1, 1, 1]} : vector<4x4x128xf32> to vector<1x4x128xf32>
    %590 = vector.broadcast %588 : vector<4x1x128xf32> to vector<4x4x128xf32>
    %591 = vector.broadcast %589 : vector<1x4x128xf32> to vector<4x4x128xf32>
    %592 = arith.mulf %590, %591 : vector<4x4x128xf32>
    %593 = arith.addf %587, %592 : vector<4x4x128xf32>
    %594 = vector.extract_strided_slice %582 {offsets = [0, 2, 0], sizes = [4, 1, 128], strides = [1, 1, 1]} : vector<4x4x128xf32> to vector<4x1x128xf32>
    %595 = vector.extract_strided_slice %582 {offsets = [2, 0, 0], sizes = [1, 4, 128], strides = [1, 1, 1]} : vector<4x4x128xf32> to vector<1x4x128xf32>
    %596 = vector.broadcast %594 : vector<4x1x128xf32> to vector<4x4x128xf32>
    %597 = vector.broadcast %595 : vector<1x4x128xf32> to vector<4x4x128xf32>
    %598 = arith.mulf %596, %597 : vector<4x4x128xf32>
    %599 = arith.addf %593, %598 : vector<4x4x128xf32>
    %600 = vector.extract_strided_slice %582 {offsets = [0, 3, 0], sizes = [4, 1, 128], strides = [1, 1, 1]} : vector<4x4x128xf32> to vector<4x1x128xf32>
    %601 = vector.extract_strided_slice %582 {offsets = [3, 0, 0], sizes = [1, 4, 128], strides = [1, 1, 1]} : vector<4x4x128xf32> to vector<1x4x128xf32>
    %602 = vector.broadcast %600 : vector<4x1x128xf32> to vector<4x4x128xf32>
    %603 = vector.broadcast %601 : vector<1x4x128xf32> to vector<4x4x128xf32>
    %604 = arith.mulf %602, %603 : vector<4x4x128xf32>
    %605 = arith.addf %599, %604 : vector<4x4x128xf32>
    %606 = vector.extract_strided_slice %605 {offsets = [0, 0, 0], sizes = [4, 1, 128], strides = [1, 1, 1]} : vector<4x4x128xf32> to vector<4x1x128xf32>
    %607 = vector.extract_strided_slice %605 {offsets = [0, 0, 0], sizes = [1, 4, 128], strides = [1, 1, 1]} : vector<4x4x128xf32> to vector<1x4x128xf32>
    %608 = vector.broadcast %606 : vector<4x1x128xf32> to vector<4x4x128xf32>
    %609 = vector.broadcast %607 : vector<1x4x128xf32> to vector<4x4x128xf32>
    %610 = arith.mulf %608, %609 : vector<4x4x128xf32>
    %611 = vector.extract_strided_slice %605 {offsets = [0, 1, 0], sizes = [4, 1, 128], strides = [1, 1, 1]} : vector<4x4x128xf32> to vector<4x1x128xf32>
    %612 = vector.extract_strided_slice %605 {offsets = [1, 0, 0], sizes = [1, 4, 128], strides = [1, 1, 1]} : vector<4x4x128xf32> to vector<1x4x128xf32>
    %613 = vector.broadcast %611 : vector<4x1x128xf32> to vector<4x4x128xf32>
    %614 = vector.broadcast %612 : vector<1x4x128xf32> to vector<4x4x128xf32>
    %615 = arith.mulf %613, %614 : vector<4x4x128xf32>
    %616 = arith.addf %610, %615 : vector<4x4x128xf32>
    %617 = vector.extract_strided_slice %605 {offsets = [0, 2, 0], sizes = [4, 1, 128], strides = [1, 1, 1]} : vector<4x4x128xf32> to vector<4x1x128xf32>
    %618 = vector.extract_strided_slice %605 {offsets = [2, 0, 0], sizes = [1, 4, 128], strides = [1, 1, 1]} : vector<4x4x128xf32> to vector<1x4x128xf32>
    %619 = vector.broadcast %617 : vector<4x1x128xf32> to vector<4x4x128xf32>
    %620 = vector.broadcast %618 : vector<1x4x128xf32> to vector<4x4x128xf32>
    %621 = arith.mulf %619, %620 : vector<4x4x128xf32>
    %622 = arith.addf %616, %621 : vector<4x4x128xf32>
    %623 = vector.extract_strided_slice %605 {offsets = [0, 3, 0], sizes = [4, 1, 128], strides = [1, 1, 1]} : vector<4x4x128xf32> to vector<4x1x128xf32>
    %624 = vector.extract_strided_slice %605 {offsets = [3, 0, 0], sizes = [1, 4, 128], strides = [1, 1, 1]} : vector<4x4x128xf32> to vector<1x4x128xf32>
    %625 = vector.broadcast %623 : vector<4x1x128xf32> to vector<4x4x128xf32>
    %626 = vector.broadcast %624 : vector<1x4x128xf32> to vector<4x4x128xf32>
    %627 = arith.mulf %625, %626 : vector<4x4x128xf32>
    %628 = arith.addf %622, %627 : vector<4x4x128xf32>
    %629 = vector.extract_strided_slice %628 {offsets = [0, 0, 0], sizes = [4, 1, 128], strides = [1, 1, 1]} : vector<4x4x128xf32> to vector<4x1x128xf32>
    %630 = vector.extract_strided_slice %628 {offsets = [0, 0, 0], sizes = [1, 4, 128], strides = [1, 1, 1]} : vector<4x4x128xf32> to vector<1x4x128xf32>
    %631 = vector.broadcast %629 : vector<4x1x128xf32> to vector<4x4x128xf32>
    %632 = vector.broadcast %630 : vector<1x4x128xf32> to vector<4x4x128xf32>
    %633 = arith.mulf %631, %632 : vector<4x4x128xf32>
    %634 = vector.extract_strided_slice %628 {offsets = [0, 1, 0], sizes = [4, 1, 128], strides = [1, 1, 1]} : vector<4x4x128xf32> to vector<4x1x128xf32>
    %635 = vector.extract_strided_slice %628 {offsets = [1, 0, 0], sizes = [1, 4, 128], strides = [1, 1, 1]} : vector<4x4x128xf32> to vector<1x4x128xf32>
    %636 = vector.broadcast %634 : vector<4x1x128xf32> to vector<4x4x128xf32>
    %637 = vector.broadcast %635 : vector<1x4x128xf32> to vector<4x4x128xf32>
    %638 = arith.mulf %636, %637 : vector<4x4x128xf32>
    %639 = arith.addf %633, %638 : vector<4x4x128xf32>
    %640 = vector.extract_strided_slice %628 {offsets = [0, 2, 0], sizes = [4, 1, 128], strides = [1, 1, 1]} : vector<4x4x128xf32> to vector<4x1x128xf32>
    %641 = vector.extract_strided_slice %628 {offsets = [2, 0, 0], sizes = [1, 4, 128], strides = [1, 1, 1]} : vector<4x4x128xf32> to vector<1x4x128xf32>
    %642 = vector.broadcast %640 : vector<4x1x128xf32> to vector<4x4x128xf32>
    %643 = vector.broadcast %641 : vector<1x4x128xf32> to vector<4x4x128xf32>
    %644 = arith.mulf %642, %643 : vector<4x4x128xf32>
    %645 = arith.addf %639, %644 : vector<4x4x128xf32>
    %646 = vector.extract_strided_slice %628 {offsets = [0, 3, 0], sizes = [4, 1, 128], strides = [1, 1, 1]} : vector<4x4x128xf32> to vector<4x1x128xf32>
    %647 = vector.extract_strided_slice %628 {offsets = [3, 0, 0], sizes = [1, 4, 128], strides = [1, 1, 1]} : vector<4x4x128xf32> to vector<1x4x128xf32>
    %648 = vector.broadcast %646 : vector<4x1x128xf32> to vector<4x4x128xf32>
    %649 = vector.broadcast %647 : vector<1x4x128xf32> to vector<4x4x128xf32>
    %650 = arith.mulf %648, %649 : vector<4x4x128xf32>
    %651 = arith.addf %645, %650 : vector<4x4x128xf32>
    %652 = vector.extract_strided_slice %651 {offsets = [0, 0, 0], sizes = [4, 1, 128], strides = [1, 1, 1]} : vector<4x4x128xf32> to vector<4x1x128xf32>
    %653 = vector.extract_strided_slice %651 {offsets = [0, 0, 0], sizes = [1, 4, 128], strides = [1, 1, 1]} : vector<4x4x128xf32> to vector<1x4x128xf32>
    %654 = vector.broadcast %652 : vector<4x1x128xf32> to vector<4x4x128xf32>
    %655 = vector.broadcast %653 : vector<1x4x128xf32> to vector<4x4x128xf32>
    %656 = arith.mulf %654, %655 : vector<4x4x128xf32>
    %657 = vector.extract_strided_slice %651 {offsets = [0, 1, 0], sizes = [4, 1, 128], strides = [1, 1, 1]} : vector<4x4x128xf32> to vector<4x1x128xf32>
    %658 = vector.extract_strided_slice %651 {offsets = [1, 0, 0], sizes = [1, 4, 128], strides = [1, 1, 1]} : vector<4x4x128xf32> to vector<1x4x128xf32>
    %659 = vector.broadcast %657 : vector<4x1x128xf32> to vector<4x4x128xf32>
    %660 = vector.broadcast %658 : vector<1x4x128xf32> to vector<4x4x128xf32>
    %661 = arith.mulf %659, %660 : vector<4x4x128xf32>
    %662 = arith.addf %656, %661 : vector<4x4x128xf32>
    %663 = vector.extract_strided_slice %651 {offsets = [0, 2, 0], sizes = [4, 1, 128], strides = [1, 1, 1]} : vector<4x4x128xf32> to vector<4x1x128xf32>
    %664 = vector.extract_strided_slice %651 {offsets = [2, 0, 0], sizes = [1, 4, 128], strides = [1, 1, 1]} : vector<4x4x128xf32> to vector<1x4x128xf32>
    %665 = vector.broadcast %663 : vector<4x1x128xf32> to vector<4x4x128xf32>
    %666 = vector.broadcast %664 : vector<1x4x128xf32> to vector<4x4x128xf32>
    %667 = arith.mulf %665, %666 : vector<4x4x128xf32>
    %668 = arith.addf %662, %667 : vector<4x4x128xf32>
    %669 = vector.extract_strided_slice %651 {offsets = [0, 3, 0], sizes = [4, 1, 128], strides = [1, 1, 1]} : vector<4x4x128xf32> to vector<4x1x128xf32>
    %670 = vector.extract_strided_slice %651 {offsets = [3, 0, 0], sizes = [1, 4, 128], strides = [1, 1, 1]} : vector<4x4x128xf32> to vector<1x4x128xf32>
    %671 = vector.broadcast %669 : vector<4x1x128xf32> to vector<4x4x128xf32>
    %672 = vector.broadcast %670 : vector<1x4x128xf32> to vector<4x4x128xf32>
    %673 = arith.mulf %671, %672 : vector<4x4x128xf32>
    %674 = arith.addf %668, %673 : vector<4x4x128xf32>
    %675 = vector.extract_strided_slice %674 {offsets = [0, 0, 0], sizes = [4, 1, 128], strides = [1, 1, 1]} : vector<4x4x128xf32> to vector<4x1x128xf32>
    %676 = vector.extract_strided_slice %674 {offsets = [0, 0, 0], sizes = [1, 4, 128], strides = [1, 1, 1]} : vector<4x4x128xf32> to vector<1x4x128xf32>
    %677 = vector.broadcast %675 : vector<4x1x128xf32> to vector<4x4x128xf32>
    %678 = vector.broadcast %676 : vector<1x4x128xf32> to vector<4x4x128xf32>
    %679 = arith.mulf %677, %678 : vector<4x4x128xf32>
    %680 = vector.extract_strided_slice %674 {offsets = [0, 1, 0], sizes = [4, 1, 128], strides = [1, 1, 1]} : vector<4x4x128xf32> to vector<4x1x128xf32>
    %681 = vector.extract_strided_slice %674 {offsets = [1, 0, 0], sizes = [1, 4, 128], strides = [1, 1, 1]} : vector<4x4x128xf32> to vector<1x4x128xf32>
    %682 = vector.broadcast %680 : vector<4x1x128xf32> to vector<4x4x128xf32>
    %683 = vector.broadcast %681 : vector<1x4x128xf32> to vector<4x4x128xf32>
    %684 = arith.mulf %682, %683 : vector<4x4x128xf32>
    %685 = arith.addf %679, %684 : vector<4x4x128xf32>
    %686 = vector.extract_strided_slice %674 {offsets = [0, 2, 0], sizes = [4, 1, 128], strides = [1, 1, 1]} : vector<4x4x128xf32> to vector<4x1x128xf32>
    %687 = vector.extract_strided_slice %674 {offsets = [2, 0, 0], sizes = [1, 4, 128], strides = [1, 1, 1]} : vector<4x4x128xf32> to vector<1x4x128xf32>
    %688 = vector.broadcast %686 : vector<4x1x128xf32> to vector<4x4x128xf32>
    %689 = vector.broadcast %687 : vector<1x4x128xf32> to vector<4x4x128xf32>
    %690 = arith.mulf %688, %689 : vector<4x4x128xf32>
    %691 = arith.addf %685, %690 : vector<4x4x128xf32>
    %692 = vector.extract_strided_slice %674 {offsets = [0, 3, 0], sizes = [4, 1, 128], strides = [1, 1, 1]} : vector<4x4x128xf32> to vector<4x1x128xf32>
    %693 = vector.extract_strided_slice %674 {offsets = [3, 0, 0], sizes = [1, 4, 128], strides = [1, 1, 1]} : vector<4x4x128xf32> to vector<1x4x128xf32>
    %694 = vector.broadcast %692 : vector<4x1x128xf32> to vector<4x4x128xf32>
    %695 = vector.broadcast %693 : vector<1x4x128xf32> to vector<4x4x128xf32>
    %696 = arith.mulf %694, %695 : vector<4x4x128xf32>
    %697 = arith.addf %691, %696 : vector<4x4x128xf32>
    %c0_29 = arith.constant 0 : index
    %c0_30 = arith.constant 0 : index
    %c0_31 = arith.constant 0 : index
    %698 = vector.load %arg4[%c0_29, %c0_30, %c0_31] : memref<4x4x128xf32, #tpu.memory_space<vmem>>, vector<4x4x128xf32>
    %699 = vector.extract_strided_slice %698 {offsets = [0, 0, 0], sizes = [4, 1, 128], strides = [1, 1, 1]} : vector<4x4x128xf32> to vector<4x1x128xf32>
    %700 = vector.extract_strided_slice %697 {offsets = [0, 0, 0], sizes = [1, 4, 128], strides = [1, 1, 1]} : vector<4x4x128xf32> to vector<1x4x128xf32>
    %701 = vector.broadcast %699 : vector<4x1x128xf32> to vector<4x4x128xf32>
    %702 = vector.broadcast %700 : vector<1x4x128xf32> to vector<4x4x128xf32>
    %703 = arith.mulf %701, %702 : vector<4x4x128xf32>
    %704 = vector.extract_strided_slice %698 {offsets = [0, 1, 0], sizes = [4, 1, 128], strides = [1, 1, 1]} : vector<4x4x128xf32> to vector<4x1x128xf32>
    %705 = vector.extract_strided_slice %697 {offsets = [1, 0, 0], sizes = [1, 4, 128], strides = [1, 1, 1]} : vector<4x4x128xf32> to vector<1x4x128xf32>
    %706 = vector.broadcast %704 : vector<4x1x128xf32> to vector<4x4x128xf32>
    %707 = vector.broadcast %705 : vector<1x4x128xf32> to vector<4x4x128xf32>
    %708 = arith.mulf %706, %707 : vector<4x4x128xf32>
    %709 = arith.addf %703, %708 : vector<4x4x128xf32>
    %710 = vector.extract_strided_slice %698 {offsets = [0, 2, 0], sizes = [4, 1, 128], strides = [1, 1, 1]} : vector<4x4x128xf32> to vector<4x1x128xf32>
    %711 = vector.extract_strided_slice %697 {offsets = [2, 0, 0], sizes = [1, 4, 128], strides = [1, 1, 1]} : vector<4x4x128xf32> to vector<1x4x128xf32>
    %712 = vector.broadcast %710 : vector<4x1x128xf32> to vector<4x4x128xf32>
    %713 = vector.broadcast %711 : vector<1x4x128xf32> to vector<4x4x128xf32>
    %714 = arith.mulf %712, %713 : vector<4x4x128xf32>
    %715 = arith.addf %709, %714 : vector<4x4x128xf32>
    %716 = vector.extract_strided_slice %698 {offsets = [0, 3, 0], sizes = [4, 1, 128], strides = [1, 1, 1]} : vector<4x4x128xf32> to vector<4x1x128xf32>
    %717 = vector.extract_strided_slice %697 {offsets = [3, 0, 0], sizes = [1, 4, 128], strides = [1, 1, 1]} : vector<4x4x128xf32> to vector<1x4x128xf32>
    %718 = vector.broadcast %716 : vector<4x1x128xf32> to vector<4x4x128xf32>
    %719 = vector.broadcast %717 : vector<1x4x128xf32> to vector<4x4x128xf32>
    %720 = arith.mulf %718, %719 : vector<4x4x128xf32>
    %721 = arith.addf %715, %720 : vector<4x4x128xf32>
    %722 = vector.extract_strided_slice %372 {offsets = [0, 0, 0], sizes = [4, 1, 128], strides = [1, 1, 1]} : vector<4x4x128xf32> to vector<4x1x128xf32>
    %723 = vector.extract_strided_slice %721 {offsets = [0, 0, 0], sizes = [1, 4, 128], strides = [1, 1, 1]} : vector<4x4x128xf32> to vector<1x4x128xf32>
    %724 = vector.broadcast %722 : vector<4x1x128xf32> to vector<4x4x128xf32>
    %725 = vector.broadcast %723 : vector<1x4x128xf32> to vector<4x4x128xf32>
    %726 = arith.mulf %724, %725 : vector<4x4x128xf32>
    %727 = vector.extract_strided_slice %372 {offsets = [0, 1, 0], sizes = [4, 1, 128], strides = [1, 1, 1]} : vector<4x4x128xf32> to vector<4x1x128xf32>
    %728 = vector.extract_strided_slice %721 {offsets = [1, 0, 0], sizes = [1, 4, 128], strides = [1, 1, 1]} : vector<4x4x128xf32> to vector<1x4x128xf32>
    %729 = vector.broadcast %727 : vector<4x1x128xf32> to vector<4x4x128xf32>
    %730 = vector.broadcast %728 : vector<1x4x128xf32> to vector<4x4x128xf32>
    %731 = arith.mulf %729, %730 : vector<4x4x128xf32>
    %732 = arith.addf %726, %731 : vector<4x4x128xf32>
    %733 = vector.extract_strided_slice %372 {offsets = [0, 2, 0], sizes = [4, 1, 128], strides = [1, 1, 1]} : vector<4x4x128xf32> to vector<4x1x128xf32>
    %734 = vector.extract_strided_slice %721 {offsets = [2, 0, 0], sizes = [1, 4, 128], strides = [1, 1, 1]} : vector<4x4x128xf32> to vector<1x4x128xf32>
    %735 = vector.broadcast %733 : vector<4x1x128xf32> to vector<4x4x128xf32>
    %736 = vector.broadcast %734 : vector<1x4x128xf32> to vector<4x4x128xf32>
    %737 = arith.mulf %735, %736 : vector<4x4x128xf32>
    %738 = arith.addf %732, %737 : vector<4x4x128xf32>
    %739 = vector.extract_strided_slice %372 {offsets = [0, 3, 0], sizes = [4, 1, 128], strides = [1, 1, 1]} : vector<4x4x128xf32> to vector<4x1x128xf32>
    %740 = vector.extract_strided_slice %721 {offsets = [3, 0, 0], sizes = [1, 4, 128], strides = [1, 1, 1]} : vector<4x4x128xf32> to vector<1x4x128xf32>
    %741 = vector.broadcast %739 : vector<4x1x128xf32> to vector<4x4x128xf32>
    %742 = vector.broadcast %740 : vector<1x4x128xf32> to vector<4x4x128xf32>
    %743 = arith.mulf %741, %742 : vector<4x4x128xf32>
    %744 = arith.addf %738, %743 : vector<4x4x128xf32>
    %c0_32 = arith.constant 0 : index
    %c0_33 = arith.constant 0 : index
    %c0_34 = arith.constant 0 : index
    %745 = vector.load %arg5[%c0_32, %c0_33, %c0_34] : memref<4x4x128xf32, #tpu.memory_space<vmem>>, vector<4x4x128xf32>
    tpu.vector_store %arg5[%c0_32, %c0_33, %c0_34], %744 {strides = array<i32>} : memref<4x4x128xf32, #tpu.memory_space<vmem>>, vector<4x4x128xf32>,
    return
  }
  func.func @transform_0(%arg0: i32) -> (i32, i32, i32) {
    %c0_i32 = arith.constant 0 : i32
    %c0_i32_0 = arith.constant 0 : i32
    %c0_i32_1 = arith.constant 0 : i32
    return %c0_i32, %c0_i32_0, %arg0 : i32, i32, i32
  }
  func.func @transform_1(%arg0: i32) -> (i32, i32, i32) {
    %c0_i32 = arith.constant 0 : i32
    %c0_i32_0 = arith.constant 0 : i32
    %c0_i32_1 = arith.constant 0 : i32
    return %c0_i32, %c0_i32_0, %arg0 : i32, i32, i32
  }
  func.func @transform_2(%arg0: i32) -> (i32, i32) {
    %c0_i32 = arith.constant 0 : i32
    %c0_i32_0 = arith.constant 0 : i32
    return %c0_i32, %arg0 : i32, i32
  }
  func.func @transform_3(%arg0: i32) -> (i32, i32, i32) {
    %c0_i32 = arith.constant 0 : i32
    %c0_i32_0 = arith.constant 0 : i32
    %c0_i32_1 = arith.constant 0 : i32
    return %c0_i32, %c0_i32_0, %arg0 : i32, i32, i32
  }
  func.func @transform_4(%arg0: i32) -> (i32, i32, i32) {
    %c0_i32 = arith.constant 0 : i32
    %c0_i32_0 = arith.constant 0 : i32
    %c0_i32_1 = arith.constant 0 : i32
    return %c0_i32, %c0_i32_0, %arg0 : i32, i32, i32
  }
}

</mosaic_0001>

<llo_original>
// kernel: qgnn_rot_perminv_layer.2
$region0: #{qgnn_rot_perminv_layer.2}
  #allocation0 [shape = 'u32[]', space=smem, size = 0x4, offset = 0x4, fixed_abs, tag = 'smem constant byte address 0x4 - core index']
  #allocation1 [shape = 'u32[144,128]{1,0:T(1,128)}', space=vmem, size = 0x12000, scoped, tag = 'internal scratch']
  %s0 = inlined_call_operand.vmem [shape: bf16[512,128], index: 0, kind: input, shape index: {}]
  %s1 = inlined_call_operand.vmem [shape: s32[512,1], index: 1, kind: input, shape index: {}]
  %s2 = inlined_call_operand.vmem [shape: bf16[128,128], index: 2, kind: input, shape index: {}]
  %s3 = inlined_call_operand.vmem [shape: f32[1,128], index: 3, kind: input, shape index: {}]
  %s4 = inlined_call_operand.vmem [shape: bf16[128,128], index: 4, kind: input, shape index: {}]
  %s5 = inlined_call_operand.vmem [shape: f32[1,128], index: 5, kind: input, shape index: {}]
  %s6 = inlined_call_operand.vmem [shape: bf16[128,128], index: 6, kind: input, shape index: {}]
  %s7 = inlined_call_operand.vmem [shape: f32[1,128], index: 7, kind: input, shape index: {}]
  %s8 = inlined_call_operand.vmem [shape: f32[2,128,128], index: 8, kind: output, shape index: {}]
  %s9 = sld [smem:[#allocation0]]
  $region69: #{qgnn_rot_perminv_layer.2} parent=0
    _
  %s11 = ssub.s32 1, %s9
  %s12 = scalar_select 0, %s11, %s9
  loop: start=0, step=1, limit=4
  $region2: #{qgnn_rot_perminv_layer.2} parent=0 // loop_pre_header
    _
  $region3: #{qgnn_rot_perminv_layer.2} parent=0 // loop_header
    %s14 = sphi 0, %s18
    %p15 = scmp.ge.s32.totalorder %s14, 4
    %s21 = sphi 0, %s33
    %s22 = sphi 0, %s29
    %s23 = sphi 0, %s21
    %s24 = sphi 0, %s22
    %s25 = sphi 0, %s23
    %s26 = sphi 0, %s24
    %s38 = sphi 0, %s40
    %s41 = sphi 0, %s38
    %s42 = sphi 0, %s41
    %s58 = sphi 0, %s42
    %s66 = sphi 0, %s68
    %s69 = sphi 0, %s66
    %s70 = sphi 0, %s69
    %s86 = sphi 0, %s70
    %s90 = sphi 0, %s90
    %s92 = sphi 0, %s90
    %s93 = sphi 0, %s92
    %s107 = sphi 0, %s93
    %s111 = sphi 0, %s111
    %s113 = sphi 0, %s111
    %s114 = sphi 0, %s113
    %s128 = sphi 0, %s114
    %s132 = sphi 0, %s132
    %s134 = sphi 0, %s132
    %s135 = sphi 0, %s134
    %s149 = sphi 0, %s135
    %s153 = sphi 0, %s153
    %s155 = sphi 0, %s153
    %s156 = sphi 0, %s155
    %s170 = sphi 0, %s156
    %s174 = sphi 0, %s174
    %s176 = sphi 0, %s174
    %s177 = sphi 0, %s176
    %s191 = sphi 0, %s177
    %s195 = sphi 0, %s195
    %s197 = sphi 0, %s195
    %s198 = sphi 0, %s197
    %s212 = sphi 0, %s198
    %s218 = sphi 0, %s220
    %s221 = sphi 0, %s218
    %s222 = sphi 0, %s221
    %s238 = sphi 0, %s222
  $region4: #{qgnn_rot_perminv_layer.2} parent=0 // loop_header_branch
    %17 = sbr.rel (%p15) target = $region8
  $region5: #{qgnn_rot_perminv_layer.2} parent=0 // loop_body
    %s19 = ssub.s32 %s14, 1
    %s20 = ssub.s32 %s14, 2
    %s27 = sadd.s32 1, %s22
    %p28 = scmp.ge.s32.totalorder %s27, 1
    %s29 = scalar_select %p28, 0, %s27
    %s30 = sadd.s32 1, %s21
    %s31 = scalar_select %p28, %s30, %s21
    %p32 = scmp.ge.s32.totalorder %s31, 2
    %s33 = scalar_select %p32, 0, %s31
    %s34 = sadd.s32 %s21, %s22
    %s35 = sadd.s32 %s33, %s29
    %s36 = ssub.s32 %s34, %s35
    %p37 = scmp.eq.s32.totalorder %s36, 0
    %s39 = sadd.s32 %s38, 1
    %s40 = scalar_select %p37, %s38, %s39
    %p43 = pneg %p37
    %p44 = scmp.eq.s32.totalorder %s14, 1
    %p45 = por %p43, %p44
    %p46 = scmp.ne.s32.totalorder %s38, %s41
    %p47 = scmp.eq.s32.totalorder %s14, 0
    %p48 = por %p46, %p47
    %p49 = scmp.ne.s32.totalorder %s38, %s41
    %p50 = scmp.eq.s32.totalorder %s19, 1
    %p51 = por %p49, %p50
    %p52 = scmp.ne.s32.totalorder %s41, %s42
    %p53 = scmp.eq.s32.totalorder %s19, 0
    %p54 = por %p52, %p53
    %p55 = scmp.ne.s32.totalorder %s41, %s42
    %p56 = scmp.eq.s32.totalorder %s20, 1
    %p57 = por %p55, %p56
    %p59 = scmp.ne.s32.totalorder %s42, %s58
    %p60 = scmp.eq.s32.totalorder %s20, 0
    %p61 = por %p59, %p60
    %s62 = sadd.s32 %s21, %s22
    %s63 = sadd.s32 %s33, %s29
    %s64 = ssub.s32 %s62, %s63
    %p65 = scmp.eq.s32.totalorder %s64, 0
    %s67 = sadd.s32 %s66, 1
    %s68 = scalar_select %p65, %s66, %s67
    %p71 = pneg %p65
    %p72 = scmp.eq.s32.totalorder %s14, 1
    %p73 = por %p71, %p72
    %p74 = scmp.ne.s32.totalorder %s66, %s69
    %p75 = scmp.eq.s32.totalorder %s14, 0
    %p76 = por %p74, %p75
    %p77 = scmp.ne.s32.totalorder %s66, %s69
    %p78 = scmp.eq.s32.totalorder %s19, 1
    %p79 = por %p77, %p78
    %p80 = scmp.ne.s32.totalorder %s69, %s70
    %p81 = scmp.eq.s32.totalorder %s19, 0
    %p82 = por %p80, %p81
    %p83 = scmp.ne.s32.totalorder %s69, %s70
    %p84 = scmp.eq.s32.totalorder %s20, 1
    %p85 = por %p83, %p84
    %p87 = scmp.ne.s32.totalorder %s70, %s86
    %p88 = scmp.eq.s32.totalorder %s20, 0
    %p89 = por %p87, %p88
    %s91 = sadd.s32 %s90, 1
    %p94 = scmp.eq.s32.totalorder %s14, 1
    %p95 = scmp.ne.s32.totalorder %s90, %s92
    %p96 = scmp.eq.s32.totalorder %s14, 0
    %p97 = por %p95, %p96
    %p98 = scmp.ne.s32.totalorder %s90, %s92
    %p99 = scmp.eq.s32.totalorder %s19, 1
    %p100 = por %p98, %p99
    %p101 = scmp.ne.s32.totalorder %s92, %s93
    %p102 = scmp.eq.s32.totalorder %s19, 0
    %p103 = por %p101, %p102
    %p104 = scmp.ne.s32.totalorder %s92, %s93
    %p105 = scmp.eq.s32.totalorder %s20, 1
    %p106 = por %p104, %p105
    %p108 = scmp.ne.s32.totalorder %s93, %s107
    %p109 = scmp.eq.s32.totalorder %s20, 0
    %p110 = por %p108, %p109
    %s112 = sadd.s32 %s111, 1
    %p115 = scmp.eq.s32.totalorder %s14, 1
    %p116 = scmp.ne.s32.totalorder %s111, %s113
    %p117 = scmp.eq.s32.totalorder %s14, 0
    %p118 = por %p116, %p117
    %p119 = scmp.ne.s32.totalorder %s111, %s113
    %p120 = scmp.eq.s32.totalorder %s19, 1
    %p121 = por %p119, %p120
    %p122 = scmp.ne.s32.totalorder %s113, %s114
    %p123 = scmp.eq.s32.totalorder %s19, 0
    %p124 = por %p122, %p123
    %p125 = scmp.ne.s32.totalorder %s113, %s114
    %p126 = scmp.eq.s32.totalorder %s20, 1
    %p127 = por %p125, %p126
    %p129 = scmp.ne.s32.totalorder %s114, %s128
    %p130 = scmp.eq.s32.totalorder %s20, 0
    %p131 = por %p129, %p130
    %s133 = sadd.s32 %s132, 1
    %p136 = scmp.eq.s32.totalorder %s14, 1
    %p137 = scmp.ne.s32.totalorder %s132, %s134
    %p138 = scmp.eq.s32.totalorder %s14, 0
    %p139 = por %p137, %p138
    %p140 = scmp.ne.s32.totalorder %s132, %s134
    %p141 = scmp.eq.s32.totalorder %s19, 1
    %p142 = por %p140, %p141
    %p143 = scmp.ne.s32.totalorder %s134, %s135
    %p144 = scmp.eq.s32.totalorder %s19, 0
    %p145 = por %p143, %p144
    %p146 = scmp.ne.s32.totalorder %s134, %s135
    %p147 = scmp.eq.s32.totalorder %s20, 1
    %p148 = por %p146, %p147
    %p150 = scmp.ne.s32.totalorder %s135, %s149
    %p151 = scmp.eq.s32.totalorder %s20, 0
    %p152 = por %p150, %p151
    %s154 = sadd.s32 %s153, 1
    %p157 = scmp.eq.s32.totalorder %s14, 1
    %p158 = scmp.ne.s32.totalorder %s153, %s155
    %p159 = scmp.eq.s32.totalorder %s14, 0
    %p160 = por %p158, %p159
    %p161 = scmp.ne.s32.totalorder %s153, %s155
    %p162 = scmp.eq.s32.totalorder %s19, 1
    %p163 = por %p161, %p162
    %p164 = scmp.ne.s32.totalorder %s155, %s156
    %p165 = scmp.eq.s32.totalorder %s19, 0
    %p166 = por %p164, %p165
    %p167 = scmp.ne.s32.totalorder %s155, %s156
    %p168 = scmp.eq.s32.totalorder %s20, 1
    %p169 = por %p167, %p168
    %p171 = scmp.ne.s32.totalorder %s156, %s170
    %p172 = scmp.eq.s32.totalorder %s20, 0
    %p173 = por %p171, %p172
    %s175 = sadd.s32 %s174, 1
    %p178 = scmp.eq.s32.totalorder %s14, 1
    %p179 = scmp.ne.s32.totalorder %s174, %s176
    %p180 = scmp.eq.s32.totalorder %s14, 0
    %p181 = por %p179, %p180
    %p182 = scmp.ne.s32.totalorder %s174, %s176
    %p183 = scmp.eq.s32.totalorder %s19, 1
    %p184 = por %p182, %p183
    %p185 = scmp.ne.s32.totalorder %s176, %s177
    %p186 = scmp.eq.s32.totalorder %s19, 0
    %p187 = por %p185, %p186
    %p188 = scmp.ne.s32.totalorder %s176, %s177
    %p189 = scmp.eq.s32.totalorder %s20, 1
    %p190 = por %p188, %p189
    %p192 = scmp.ne.s32.totalorder %s177, %s191
    %p193 = scmp.eq.s32.totalorder %s20, 0
    %p194 = por %p192, %p193
    %s196 = sadd.s32 %s195, 1
    %p199 = scmp.eq.s32.totalorder %s14, 1
    %p200 = scmp.ne.s32.totalorder %s195, %s197
    %p201 = scmp.eq.s32.totalorder %s14, 0
    %p202 = por %p200, %p201
    %p203 = scmp.ne.s32.totalorder %s195, %s197
    %p204 = scmp.eq.s32.totalorder %s19, 1
    %p205 = por %p203, %p204
    %p206 = scmp.ne.s32.totalorder %s197, %s198
    %p207 = scmp.eq.s32.totalorder %s19, 0
    %p208 = por %p206, %p207
    %p209 = scmp.ne.s32.totalorder %s197, %s198
    %p210 = scmp.eq.s32.totalorder %s20, 1
    %p211 = por %p209, %p210
    %p213 = scmp.ne.s32.totalorder %s198, %s212
    %p214 = scmp.eq.s32.totalorder %s20, 0
    %p215 = por %p213, %p214
    %s216 = ssub.s32 %s21, %s33
    %p217 = scmp.eq.s32.totalorder %s216, 0
    %s219 = sadd.s32 %s218, 1
    %s220 = scalar_select %p217, %s218, %s219
    %p223 = pneg %p217
    %p224 = scmp.eq.s32.totalorder %s14, 1
    %p225 = por %p223, %p224
    %p226 = scmp.ne.s32.totalorder %s218, %s221
    %p227 = scmp.eq.s32.totalorder %s14, 0
    %p228 = por %p226, %p227
    %p229 = scmp.ne.s32.totalorder %s218, %s221
    %p230 = scmp.eq.s32.totalorder %s19, 1
    %p231 = por %p229, %p230
    %p232 = scmp.ne.s32.totalorder %s221, %s222
    %p233 = scmp.eq.s32.totalorder %s19, 0
    %p234 = por %p232, %p233
    %p235 = scmp.ne.s32.totalorder %s221, %s222
    %p236 = scmp.eq.s32.totalorder %s20, 1
    %p237 = por %p235, %p236
    %p239 = scmp.ne.s32.totalorder %s222, %s238
    %p240 = scmp.eq.s32.totalorder %s20, 0
    %p241 = por %p239, %p240
    %p242 = scmp.le.s32.totalorder 1, %s14
    %p243 = scmp.lt.s32.totalorder %s14, 3
    %p244 = pnand %p242, %p243
    %p245 = pneg %p244
    // Predicated region
    $region9: #{qgnn_rot_perminv_layer.2} parent=5 // pred_check
      _
    $region10: #{qgnn_rot_perminv_layer.2} parent=5 // pred_check_branch
      %247 = sbr.rel (%p244) target = $region12
    $region11: #{qgnn_rot_perminv_layer.2} parent=5 // pred_region
      %s248 = ssub.s32 %s14, 1
      // Predicated region
      $region13: #{qgnn_rot_perminv_layer.2} parent=11 // pred_check
        %p249 = pneg %p103
      $region14: #{qgnn_rot_perminv_layer.2} parent=11 // pred_check_branch
        %251 = sbr.rel (%p249) target = $region16
      $region15: #{qgnn_rot_perminv_layer.2} parent=11 // pred_region
        _
      $region16: #{qgnn_rot_perminv_layer.2} parent=11 // pred_fallthru
        _
      // Predicated region
      $region17: #{qgnn_rot_perminv_layer.2} parent=11 // pred_check
        %p252 = pneg %p124
      $region18: #{qgnn_rot_perminv_layer.2} parent=11 // pred_check_branch
        %254 = sbr.rel (%p252) target = $region20
      $region19: #{qgnn_rot_perminv_layer.2} parent=11 // pred_region
        _
      $region20: #{qgnn_rot_perminv_layer.2} parent=11 // pred_fallthru
        _
      // Predicated region
      $region21: #{qgnn_rot_perminv_layer.2} parent=11 // pred_check
        %p255 = pneg %p145
      $region22: #{qgnn_rot_perminv_layer.2} parent=11 // pred_check_branch
        %257 = sbr.rel (%p255) target = $region24
      $region23: #{qgnn_rot_perminv_layer.2} parent=11 // pred_region
        _
      $region24: #{qgnn_rot_perminv_layer.2} parent=11 // pred_fallthru
        _
      // Predicated region
      $region25: #{qgnn_rot_perminv_layer.2} parent=11 // pred_check
        %p258 = pneg %p166
      $region26: #{qgnn_rot_perminv_layer.2} parent=11 // pred_check_branch
        %260 = sbr.rel (%p258) target = $region28
      $region27: #{qgnn_rot_perminv_layer.2} parent=11 // pred_region
        _
      $region28: #{qgnn_rot_perminv_layer.2} parent=11 // pred_fallthru
        _
      // Predicated region
      $region29: #{qgnn_rot_perminv_layer.2} parent=11 // pred_check
        %p261 = pneg %p187
      $region30: #{qgnn_rot_perminv_layer.2} parent=11 // pred_check_branch
        %263 = sbr.rel (%p261) target = $region32
      $region31: #{qgnn_rot_perminv_layer.2} parent=11 // pred_region
        _
      $region32: #{qgnn_rot_perminv_layer.2} parent=11 // pred_fallthru
        _
      // Predicated region
      $region33: #{qgnn_rot_perminv_layer.2} parent=11 // pred_check
        %p264 = pneg %p208
      $region34: #{qgnn_rot_perminv_layer.2} parent=11 // pred_check_branch
        %266 = sbr.rel (%p264) target = $region36
      $region35: #{qgnn_rot_perminv_layer.2} parent=11 // pred_region
        _
      $region36: #{qgnn_rot_perminv_layer.2} parent=11 // pred_fallthru
        _
    $region12: #{qgnn_rot_perminv_layer.2} parent=5 // pred_fallthru
      _
    %p267 = scmp.lt.s32.totalorder %s14, 2
    // Predicated region
    $region37: #{qgnn_rot_perminv_layer.2} parent=5 // pred_check
      %p268 = pneg %p267
    $region38: #{qgnn_rot_perminv_layer.2} parent=5 // pred_check_branch
      %270 = sbr.rel (%p268) target = $region40
    $region39: #{qgnn_rot_perminv_layer.2} parent=5 // pred_region
      // Predicated region
      $region41: #{qgnn_rot_perminv_layer.2} parent=39 // pred_check
        %p271 = pneg %p48
      $region42: #{qgnn_rot_perminv_layer.2} parent=39 // pred_check_branch
        %273 = sbr.rel (%p271) target = $region44
      $region43: #{qgnn_rot_perminv_layer.2} parent=39 // pred_region
        %s274 = sadd.s32 %s21, %s22
        %s275 = smul.u32 32, %s274
        %p276 = scmp.lt.s32.totalorder %s275, 63
        %s277 = scalar_select %p276, %s275, 63
        %s278 = smul.addr %s277, 4
        %s279 = scalar_lea.vmem %s0, %s278
        %s280 = sadd.s32 %s21, %s22
        %s281 = smul.u32 32, %s280
      $region44: #{qgnn_rot_perminv_layer.2} parent=39 // pred_fallthru
        _
      // Predicated region
      $region45: #{qgnn_rot_perminv_layer.2} parent=39 // pred_check
        %p282 = pneg %p76
      $region46: #{qgnn_rot_perminv_layer.2} parent=39 // pred_check_branch
        %284 = sbr.rel (%p282) target = $region48
      $region47: #{qgnn_rot_perminv_layer.2} parent=39 // pred_region
        %s285 = sadd.s32 %s21, %s22
        %s286 = smul.u32 32, %s285
        %p287 = scmp.lt.s32.totalorder %s286, 63
        %s288 = scalar_select %p287, %s286, 63
        %s289 = smul.addr %s288, 8
        %s290 = scalar_lea.vmem %s1, %s289
        %s291 = sadd.s32 %s21, %s22
        %s292 = smul.u32 32, %s291
      $region48: #{qgnn_rot_perminv_layer.2} parent=39 // pred_fallthru
        _
    $region40: #{qgnn_rot_perminv_layer.2} parent=5 // pred_fallthru
      _
    %p293 = scmp.le.s32.totalorder 1, %s14
    %p294 = scmp.lt.s32.totalorder %s14, 3
    %p295 = pnand %p293, %p294
    %p296 = pneg %p295
    // Predicated region
    $region49: #{qgnn_rot_perminv_layer.2} parent=5 // pred_check
      _
    $region50: #{qgnn_rot_perminv_layer.2} parent=5 // pred_check_branch
      %298 = sbr.rel (%p295) target = $region52
    $region51: #{qgnn_rot_perminv_layer.2} parent=5 // pred_region
      %s299 = ssub.s32 %s14, 1
      %s300 = sadd.s32 %s23, %s24
      %s301 = smul.u32 32, %s300
      %p302 = scmp.lt.s32.totalorder %s301, 63
      %s303 = scalar_select %p302, %s301, 63
      %s304 = smul.addr %s303, 4
      %s305 = scalar_lea.vmem %s0, %s304
      %p306 = pneg %p54
      %p307 = pneg %p51
      %s308 = sadd.s32 %s23, %s24
      %s309 = smul.u32 32, %s308
      %p310 = scmp.lt.s32.totalorder %s309, 63
      %s311 = scalar_select %p310, %s309, 63
      %s312 = smul.addr %s311, 8
      %s313 = scalar_lea.vmem %s1, %s312
      %p314 = pneg %p82
      %p315 = pneg %p79
      %p316 = pneg %p103
      %p317 = pneg %p100
      %p318 = pneg %p124
      %p319 = pneg %p121
      %p320 = pneg %p145
      %p321 = pneg %p142
      %p322 = pneg %p166
      %p323 = pneg %p163
      %p324 = pneg %p187
      %p325 = pneg %p184
      %p326 = pneg %p208
      %p327 = pneg %p205
      %p328 = pneg %p234
      %p329 = pneg %p231
      %p330 = scmp.lt.s32.totalorder %s23, 1
      %s331 = scalar_select %p330, %s23, 1
      %s332 = smul.addr %s331, 16
      %s333 = smul.addr %s332, 8
      %s334 = scalar_lea.vmem %s8, %s333
      %s335 = sadd.s32 %s23, %s24
      %s336 = smul.u32 32, %s335
      %p337 = scmp.lt.s32.totalorder %s336, 63
      %s338 = scalar_select %p337, %s336, 63
      %s339 = smul.addr %s338, 4
      %s340 = scalar_lea.vmem %s0, %s339
      %s341 = sadd.s32 %s23, %s24
      %s342 = smul.u32 32, %s341
      %s343 = sadd.s32 %s23, %s24
      %s344 = smul.u32 32, %s343
      %p345 = scmp.lt.s32.totalorder %s344, 63
      %s346 = scalar_select %p345, %s344, 63
      %s347 = smul.addr %s346, 8
      %s348 = scalar_lea.vmem %s1, %s347
      %s349 = sadd.s32 %s23, %s24
      %s350 = smul.u32 32, %s349
      %p351 = scmp.lt.s32.totalorder %s23, 1
      %s352 = scalar_select %p351, %s23, 1
      %s353 = smul.addr %s352, 16
      %s354 = smul.addr %s353, 8
      %s355 = scalar_lea.vmem %s8, %s354
      %p357 = scmp.eq.s32.totalorder %s24, 0
      // Predicated region
      $region53: #{qgnn_rot_perminv_layer.2} parent=51 // pred_check
        %p358 = pneg %p357
      $region54: #{qgnn_rot_perminv_layer.2} parent=51 // pred_check_branch
        %360 = sbr.rel (%p358) target = $region56
      $region55: #{qgnn_rot_perminv_layer.2} parent=51 // pred_region
        %361 = vst [vmem:[%s355] sm:$0xff] 0.0
        %362 = vst [vmem:[%s355 + $0x8] sm:$0xff] 0.0
        %363 = vst [vmem:[%s355 + $0x10] sm:$0xff] 0.0
        %364 = vst [vmem:[%s355 + $0x18] sm:$0xff] 0.0
        %365 = vst [vmem:[%s355 + $0x20] sm:$0xff] 0.0
        %366 = vst [vmem:[%s355 + $0x28] sm:$0xff] 0.0
        %367 = vst [vmem:[%s355 + $0x30] sm:$0xff] 0.0
        %368 = vst [vmem:[%s355 + $0x38] sm:$0xff] 0.0
        %369 = vst [vmem:[%s355 + $0x40] sm:$0xff] 0.0
        %370 = vst [vmem:[%s355 + $0x48] sm:$0xff] 0.0
        %371 = vst [vmem:[%s355 + $0x50] sm:$0xff] 0.0
        %372 = vst [vmem:[%s355 + $0x58] sm:$0xff] 0.0
        %373 = vst [vmem:[%s355 + $0x60] sm:$0xff] 0.0
        %374 = vst [vmem:[%s355 + $0x68] sm:$0xff] 0.0
        %375 = vst [vmem:[%s355 + $0x70] sm:$0xff] 0.0
        %376 = vst [vmem:[%s355 + $0x78] sm:$0xff] 0.0
      $region56: #{qgnn_rot_perminv_layer.2} parent=51 // pred_fallthru
        _
      %v377 = vld [vmem:[%s340] sm:$0xf]
      %v378 = vld [vmem:[%s340 + $0x4] sm:$0xf]
      %v379 = vld [vmem:[%s340 + $0x8] sm:$0xf]
      %v380 = vld [vmem:[%s340 + $0xc] sm:$0xf]
      %v381 = vld [vmem:[%s340 + $0x10] sm:$0xf]
      %v382 = vld [vmem:[%s340 + $0x14] sm:$0xf]
      %v383 = vld [vmem:[%s340 + $0x18] sm:$0xf]
      %v384 = vld [vmem:[%s340 + $0x1c] sm:$0xf]
      %v385 = vld [vmem:[%s340 + $0x20] sm:$0xf]
      %v386 = vld [vmem:[%s340 + $0x24] sm:$0xf]
      %v387 = vld [vmem:[%s340 + $0x28] sm:$0xf]
      %v388 = vld [vmem:[%s340 + $0x2c] sm:$0xf]
      %v389 = vld [vmem:[%s340 + $0x30] sm:$0xf]
      %v390 = vld [vmem:[%s340 + $0x34] sm:$0xf]
      %v391 = vld [vmem:[%s340 + $0x38] sm:$0xf]
      %v392 = vld [vmem:[%s340 + $0x3c] sm:$0xf]
      %v393 = vld [vmem:[%s340 + $0x40] sm:$0xf]
      %v394 = vld [vmem:[%s340 + $0x44] sm:$0xf]
      %v395 = vld [vmem:[%s340 + $0x48] sm:$0xf]
      %v396 = vld [vmem:[%s340 + $0x4c] sm:$0xf]
      %v397 = vld [vmem:[%s340 + $0x50] sm:$0xf]
      %v398 = vld [vmem:[%s340 + $0x54] sm:$0xf]
      %v399 = vld [vmem:[%s340 + $0x58] sm:$0xf]
      %v400 = vld [vmem:[%s340 + $0x5c] sm:$0xf]
      %v401 = vld [vmem:[%s340 + $0x60] sm:$0xf]
      %v402 = vld [vmem:[%s340 + $0x64] sm:$0xf]
      %v403 = vld [vmem:[%s340 + $0x68] sm:$0xf]
      %v404 = vld [vmem:[%s340 + $0x6c] sm:$0xf]
      %v405 = vld [vmem:[%s340 + $0x70] sm:$0xf]
      %v406 = vld [vmem:[%s340 + $0x74] sm:$0xf]
      %v407 = vld [vmem:[%s340 + $0x78] sm:$0xf]
      %v408 = vld [vmem:[%s340 + $0x7c] sm:$0xf]
      %v409 = vld [vmem:[%s2] sm:$0xf]
      %v410 = vld [vmem:[%s2 + $0x4] sm:$0xf]
      %v411 = vld [vmem:[%s2 + $0x8] sm:$0xf]
      %v412 = vld [vmem:[%s2 + $0xc] sm:$0xf]
      %v413 = vld [vmem:[%s2 + $0x10] sm:$0xf]
      %v414 = vld [vmem:[%s2 + $0x14] sm:$0xf]
      %v415 = vld [vmem:[%s2 + $0x18] sm:$0xf]
      %v416 = vld [vmem:[%s2 + $0x1c] sm:$0xf]
      %v417 = vld [vmem:[%s2 + $0x20] sm:$0xf]
      %v418 = vld [vmem:[%s2 + $0x24] sm:$0xf]
      %v419 = vld [vmem:[%s2 + $0x28] sm:$0xf]
      %v420 = vld [vmem:[%s2 + $0x2c] sm:$0xf]
      %v421 = vld [vmem:[%s2 + $0x30] sm:$0xf]
      %v422 = vld [vmem:[%s2 + $0x34] sm:$0xf]
      %v423 = vld [vmem:[%s2 + $0x38] sm:$0xf]
      %v424 = vld [vmem:[%s2 + $0x3c] sm:$0xf]
      %v425 = vld [vmem:[%s3] sm:$0x1]
      %v427 = vlaneseq
      %v428 = vshrl.u32 %v427, 7
      %v429 = vsub.s32 0, %v428
      %v430 = vrot.slane %v425, %v429
      %v464 = vunpack.c.l.b16 %v377
      %v465 = vunpack.c.l.b16 %v378
      %v466 = vunpack.c.l.b16 %v379
      %v467 = vunpack.c.l.b16 %v380
      %v468 = vunpack.c.l.b16 %v381
      %v469 = vunpack.c.l.b16 %v382
      %v470 = vunpack.c.l.b16 %v383
      %v471 = vunpack.c.l.b16 %v384
      %v472 = vunpack.c.l.b16 %v385
      %v473 = vunpack.c.l.b16 %v386
      %v474 = vunpack.c.l.b16 %v387
      %v475 = vunpack.c.l.b16 %v388
      %v476 = vunpack.c.l.b16 %v389
      %v477 = vunpack.c.l.b16 %v390
      %v478 = vunpack.c.l.b16 %v391
      %v479 = vunpack.c.l.b16 %v392
      %v480 = vunpack.c.l.b16 %v393
      %v481 = vunpack.c.l.b16 %v394
      %v482 = vunpack.c.l.b16 %v395
      %v483 = vunpack.c.l.b16 %v396
      %v484 = vunpack.c.l.b16 %v397
      %v485 = vunpack.c.l.b16 %v398
      %v486 = vunpack.c.l.b16 %v399
      %v487 = vunpack.c.l.b16 %v400
      %v488 = vunpack.c.l.b16 %v401
      %v489 = vunpack.c.l.b16 %v402
      %v490 = vunpack.c.l.b16 %v403
      %v491 = vunpack.c.l.b16 %v404
      %v492 = vunpack.c.l.b16 %v405
      %v493 = vunpack.c.l.b16 %v406
      %v494 = vunpack.c.l.b16 %v407
      %v495 = vunpack.c.l.b16 %v408
      %v496 = vpack.c.b16 %v465, %v464
      %v497 = vpack.c.b16 %v467, %v466
      %v498 = vpack.c.b16 %v469, %v468
      %v499 = vpack.c.b16 %v471, %v470
      %v500 = vpack.c.b16 %v473, %v472
      %v501 = vpack.c.b16 %v475, %v474
      %v502 = vpack.c.b16 %v477, %v476
      %v503 = vpack.c.b16 %v479, %v478
      %v504 = vpack.c.b16 %v481, %v480
      %v505 = vpack.c.b16 %v483, %v482
      %v506 = vpack.c.b16 %v485, %v484
      %v507 = vpack.c.b16 %v487, %v486
      %v508 = vpack.c.b16 %v489, %v488
      %v509 = vpack.c.b16 %v491, %v490
      %v510 = vpack.c.b16 %v493, %v492
      %v511 = vpack.c.b16 %v495, %v494
      %v544 = vunpack.c.l.b16 %v409
      %v545 = vunpack.c.l.b16 %v410
      %v546 = vunpack.c.l.b16 %v411
      %v547 = vunpack.c.l.b16 %v412
      %v548 = vunpack.c.l.b16 %v413
      %v549 = vunpack.c.l.b16 %v414
      %v550 = vunpack.c.l.b16 %v415
      %v551 = vunpack.c.l.b16 %v416
      %v552 = vunpack.c.l.b16 %v417
      %v553 = vunpack.c.l.b16 %v418
      %v554 = vunpack.c.l.b16 %v419
      %v555 = vunpack.c.l.b16 %v420
      %v556 = vunpack.c.l.b16 %v421
      %v557 = vunpack.c.l.b16 %v422
      %v558 = vunpack.c.l.b16 %v423
      %v559 = vunpack.c.l.b16 %v424
      %v560 = vpack.c.b16 %v545, %v544
      %v561 = vpack.c.b16 %v547, %v546
      %v562 = vpack.c.b16 %v549, %v548
      %v563 = vpack.c.b16 %v551, %v550
      %v564 = vpack.c.b16 %v553, %v552
      %v565 = vpack.c.b16 %v555, %v554
      %v566 = vpack.c.b16 %v557, %v556
      %v567 = vpack.c.b16 %v559, %v558
      %576 = vmatprep.subr.bf16.mxu0 0
      %577 = vmatpush1.bf16.msra.mxu0 %v560
      %578 = vmatprep.subr.bf16.mxu0 0
      %579 = vmatpush1.bf16.msra.mxu0 %v561
      %580 = vmatprep.subr.bf16.mxu0 0
      %581 = vmatpush1.bf16.msra.mxu0 %v562
      %582 = vmatprep.subr.bf16.mxu0 0
      %583 = vmatpush1.bf16.msra.mxu0 %v563
      %584 = vmatprep.subr.bf16.mxu0 0
      %585 = vmatpush1.bf16.msra.mxu0 %v564
      %586 = vmatprep.subr.bf16.mxu0 0
      %587 = vmatpush1.bf16.msra.mxu0 %v565
      %588 = vmatprep.subr.bf16.mxu0 0
      %589 = vmatpush1.bf16.msra.mxu0 %v566
      %590 = vmatprep.subr.bf16.mxu0 0
      %591 = vmatpush1.bf16.msra.mxu0 %v567
      %592 = vmatprep.subr.bf16.mxu0 0
      %593 = vmatpush1.bf16.msra.mxu0 0
      %594 = vmatprep.subr.bf16.mxu0 0
      %595 = vmatpush1.bf16.msra.mxu0 0
      %596 = vmatprep.subr.bf16.mxu0 0
      %597 = vmatpush1.bf16.msra.mxu0 0
      %598 = vmatprep.subr.bf16.mxu0 0
      %599 = vmatpush1.bf16.msra.mxu0 0
      %600 = vmatprep.subr.bf16.mxu0 0
      %601 = vmatpush1.bf16.msra.mxu0 0
      %602 = vmatprep.subr.bf16.mxu0 0
      %603 = vmatpush1.bf16.msra.mxu0 0
      %604 = vmatprep.subr.bf16.mxu0 0
      %605 = vmatpush1.bf16.msra.mxu0 0
      %606 = vmatprep.subr.bf16.mxu0 0
      %607 = vmatpush1.bf16.msra.mxu0 0
      %608 = vmatprep.mubr.bf16.mxu0 0
      %609 = vmatmul.mubr.bf16.gmra.mrb[0].mxu0 %v496
      %v610 = vpop.f32.mrb[0].mxu0
      %v611 = vadd.f32 %v430, %v610
      %v612 = vpop.f32.mrb[0].mxu0
      %v613 = vpop.f32.mrb[0].mxu0
      %v614 = vadd.f32 %v430, %v613
      %v615 = vpop.f32.mrb[0].mxu0
      %616 = vmatprep.mubr.bf16.mxu0 0
      %617 = vmatmul.mubr.bf16.gmra.mrb[0].mxu0 %v497
      %v618 = vpop.f32.mrb[0].mxu0
      %v619 = vadd.f32 %v430, %v618
      %v620 = vpop.f32.mrb[0].mxu0
      %v621 = vpop.f32.mrb[0].mxu0
      %v622 = vadd.f32 %v430, %v621
      %v623 = vpop.f32.mrb[0].mxu0
      %624 = vmatprep.mubr.bf16.mxu0 0
      %625 = vmatmul.mubr.bf16.gmra.mrb[0].mxu0 %v498
      %v626 = vpop.f32.mrb[0].mxu0
      %v627 = vadd.f32 %v430, %v626
      %v628 = vpop.f32.mrb[0].mxu0
      %v629 = vpop.f32.mrb[0].mxu0
      %v630 = vadd.f32 %v430, %v629
      %v631 = vpop.f32.mrb[0].mxu0
      %632 = vmatprep.mubr.bf16.mxu0 0
      %633 = vmatmul.mubr.bf16.gmra.mrb[0].mxu0 %v499
      %v634 = vpop.f32.mrb[0].mxu0
      %v635 = vadd.f32 %v430, %v634
      %v636 = vpop.f32.mrb[0].mxu0
      %v637 = vpop.f32.mrb[0].mxu0
      %v638 = vadd.f32 %v430, %v637
      %v639 = vpop.f32.mrb[0].mxu0
      %640 = vmatprep.mubr.bf16.mxu0 0
      %641 = vmatmul.mubr.bf16.gmra.mrb[0].mxu0 %v500
      %v642 = vpop.f32.mrb[0].mxu0
      %v643 = vadd.f32 %v430, %v642
      %v644 = vpop.f32.mrb[0].mxu0
      %v645 = vpop.f32.mrb[0].mxu0
      %v646 = vadd.f32 %v430, %v645
      %v647 = vpop.f32.mrb[0].mxu0
      %648 = vmatprep.mubr.bf16.mxu0 0
      %649 = vmatmul.mubr.bf16.gmra.mrb[0].mxu0 %v501
      %v650 = vpop.f32.mrb[0].mxu0
      %v651 = vadd.f32 %v430, %v650
      %v652 = vpop.f32.mrb[0].mxu0
      %v653 = vpop.f32.mrb[0].mxu0
      %v654 = vadd.f32 %v430, %v653
      %v655 = vpop.f32.mrb[0].mxu0
      %656 = vmatprep.mubr.bf16.mxu0 0
      %657 = vmatmul.mubr.bf16.gmra.mrb[0].mxu0 %v502
      %v658 = vpop.f32.mrb[0].mxu0
      %v659 = vadd.f32 %v430, %v658
      %v660 = vpop.f32.mrb[0].mxu0
      %v661 = vpop.f32.mrb[0].mxu0
      %v662 = vadd.f32 %v430, %v661
      %v663 = vpop.f32.mrb[0].mxu0
      %664 = vmatprep.mubr.bf16.mxu0 0
      %665 = vmatmul.mubr.bf16.gmra.mrb[0].mxu0 %v503
      %v666 = vpop.f32.mrb[0].mxu0
      %v667 = vadd.f32 %v430, %v666
      %v668 = vpop.f32.mrb[0].mxu0
      %v669 = vpop.f32.mrb[0].mxu0
      %v670 = vadd.f32 %v430, %v669
      %v671 = vpop.f32.mrb[0].mxu0
      %672 = vmatprep.mubr.bf16.mxu0 0
      %673 = vmatmul.mubr.bf16.gmra.mrb[0].mxu0 %v504
      %v674 = vpop.f32.mrb[0].mxu0
      %v675 = vadd.f32 %v430, %v674
      %v676 = vpop.f32.mrb[0].mxu0
      %v677 = vpop.f32.mrb[0].mxu0
      %v678 = vadd.f32 %v430, %v677
      %v679 = vpop.f32.mrb[0].mxu0
      %680 = vmatprep.mubr.bf16.mxu0 0
      %681 = vmatmul.mubr.bf16.gmra.mrb[0].mxu0 %v505
      %v682 = vpop.f32.mrb[0].mxu0
      %v683 = vadd.f32 %v430, %v682
      %v684 = vpop.f32.mrb[0].mxu0
      %v685 = vpop.f32.mrb[0].mxu0
      %v686 = vadd.f32 %v430, %v685
      %v687 = vpop.f32.mrb[0].mxu0
      %688 = vmatprep.mubr.bf16.mxu0 0
      %689 = vmatmul.mubr.bf16.gmra.mrb[0].mxu0 %v506
      %v690 = vpop.f32.mrb[0].mxu0
      %v691 = vadd.f32 %v430, %v690
      %v692 = vpop.f32.mrb[0].mxu0
      %v693 = vpop.f32.mrb[0].mxu0
      %v694 = vadd.f32 %v430, %v693
      %v695 = vpop.f32.mrb[0].mxu0
      %696 = vmatprep.mubr.bf16.mxu0 0
      %697 = vmatmul.mubr.bf16.gmra.mrb[0].mxu0 %v507
      %v698 = vpop.f32.mrb[0].mxu0
      %v699 = vadd.f32 %v430, %v698
      %v700 = vpop.f32.mrb[0].mxu0
      %v701 = vpop.f32.mrb[0].mxu0
      %v702 = vadd.f32 %v430, %v701
      %v703 = vpop.f32.mrb[0].mxu0
      %704 = vmatprep.mubr.bf16.mxu0 0
      %705 = vmatmul.mubr.bf16.gmra.mrb[0].mxu0 %v508
      %v706 = vpop.f32.mrb[0].mxu0
      %v707 = vadd.f32 %v430, %v706
      %v708 = vpop.f32.mrb[0].mxu0
      %v709 = vpop.f32.mrb[0].mxu0
      %v710 = vadd.f32 %v430, %v709
      %v711 = vpop.f32.mrb[0].mxu0
      %712 = vmatprep.mubr.bf16.mxu0 0
      %713 = vmatmul.mubr.bf16.gmra.mrb[0].mxu0 %v509
      %v714 = vpop.f32.mrb[0].mxu0
      %v715 = vadd.f32 %v430, %v714
      %v716 = vpop.f32.mrb[0].mxu0
      %v717 = vpop.f32.mrb[0].mxu0
      %v718 = vadd.f32 %v430, %v717
      %v719 = vpop.f32.mrb[0].mxu0
      %720 = vmatprep.mubr.bf16.mxu0 0
      %721 = vmatmul.mubr.bf16.gmra.mrb[0].mxu0 %v510
      %v722 = vpop.f32.mrb[0].mxu0
      %v723 = vadd.f32 %v430, %v722
      %v724 = vpop.f32.mrb[0].mxu0
      %v725 = vpop.f32.mrb[0].mxu0
      %v726 = vadd.f32 %v430, %v725
      %v727 = vpop.f32.mrb[0].mxu0
      %728 = vmatprep.mubr.bf16.mxu0 0
      %729 = vmatmul.mubr.bf16.gmra.mrb[0].mxu0 %v511
      %v730 = vpop.f32.mrb[0].mxu0
      %v731 = vadd.f32 %v430, %v730
      %v732 = vpop.f32.mrb[0].mxu0
      %v733 = vpop.f32.mrb[0].mxu0
      %v734 = vadd.f32 %v430, %v733
      %v735 = vpop.f32.mrb[0].mxu0
      %736 = vdwg.mxu0
      %v737 = vxor.u32 %v611, 2147483648
      %v738 = vxor.u32 %v614, 2147483648
      %v739 = vxor.u32 %v619, 2147483648
      %v740 = vxor.u32 %v622, 2147483648
      %v741 = vxor.u32 %v627, 2147483648
      %v742 = vxor.u32 %v630, 2147483648
      %v743 = vxor.u32 %v635, 2147483648
      %v744 = vxor.u32 %v638, 2147483648
      %v745 = vxor.u32 %v643, 2147483648
      %v746 = vxor.u32 %v646, 2147483648
      %v747 = vxor.u32 %v651, 2147483648
      %v748 = vxor.u32 %v654, 2147483648
      %v749 = vxor.u32 %v659, 2147483648
      %v750 = vxor.u32 %v662, 2147483648
      %v751 = vxor.u32 %v667, 2147483648
      %v752 = vxor.u32 %v670, 2147483648
      %v753 = vxor.u32 %v675, 2147483648
      %v754 = vxor.u32 %v678, 2147483648
      %v755 = vxor.u32 %v683, 2147483648
      %v756 = vxor.u32 %v686, 2147483648
      %v757 = vxor.u32 %v691, 2147483648
      %v758 = vxor.u32 %v694, 2147483648
      %v759 = vxor.u32 %v699, 2147483648
      %v760 = vxor.u32 %v702, 2147483648
      %v761 = vxor.u32 %v707, 2147483648
      %v762 = vxor.u32 %v710, 2147483648
      %v763 = vxor.u32 %v715, 2147483648
      %v764 = vxor.u32 %v718, 2147483648
      %v765 = vxor.u32 %v723, 2147483648
      %v766 = vxor.u32 %v726, 2147483648
      %v767 = vxor.u32 %v731, 2147483648
      %v768 = vxor.u32 %v734, 2147483648
      %v769 = vmul.f32 %v737, 1.442695
      %v770 = vpow.pop %v769
      %v771 = vmul.f32 %v738, 1.442695
      %v772 = vpow.pop %v771
      %v773 = vmul.f32 %v739, 1.442695
      %v774 = vpow.pop %v773
      %v775 = vmul.f32 %v740, 1.442695
      %v776 = vpow.pop %v775
      %v777 = vmul.f32 %v741, 1.442695
      %v778 = vpow.pop %v777
      %v779 = vmul.f32 %v742, 1.442695
      %v780 = vpow.pop %v779
      %v781 = vmul.f32 %v743, 1.442695
      %v782 = vpow.pop %v781
      %v783 = vmul.f32 %v744, 1.442695
      %v784 = vpow.pop %v783
      %v785 = vmul.f32 %v745, 1.442695
      %v786 = vpow.pop %v785
      %v787 = vmul.f32 %v746, 1.442695
      %v788 = vpow.pop %v787
      %v789 = vmul.f32 %v747, 1.442695
      %v790 = vpow.pop %v789
      %v791 = vmul.f32 %v748, 1.442695
      %v792 = vpow.pop %v791
      %v793 = vmul.f32 %v749, 1.442695
      %v794 = vpow.pop %v793
      %v795 = vmul.f32 %v750, 1.442695
      %v796 = vpow.pop %v795
      %v797 = vmul.f32 %v751, 1.442695
      %v798 = vpow.pop %v797
      %v799 = vmul.f32 %v752, 1.442695
      %v800 = vpow.pop %v799
      %v801 = vmul.f32 %v753, 1.442695
      %v802 = vpow.pop %v801
      %v803 = vmul.f32 %v754, 1.442695
      %v804 = vpow.pop %v803
      %v805 = vmul.f32 %v755, 1.442695
      %v806 = vpow.pop %v805
      %v807 = vmul.f32 %v756, 1.442695
      %v808 = vpow.pop %v807
      %v809 = vmul.f32 %v757, 1.442695
      %v810 = vpow.pop %v809
      %v811 = vmul.f32 %v758, 1.442695
      %v812 = vpow.pop %v811
      %v813 = vmul.f32 %v759, 1.442695
      %v814 = vpow.pop %v813
      %v815 = vmul.f32 %v760, 1.442695
      %v816 = vpow.pop %v815
      %v817 = vmul.f32 %v761, 1.442695
      %v818 = vpow.pop %v817
      %v819 = vmul.f32 %v762, 1.442695
      %v820 = vpow.pop %v819
      %v821 = vmul.f32 %v763, 1.442695
      %v822 = vpow.pop %v821
      %v823 = vmul.f32 %v764, 1.442695
      %v824 = vpow.pop %v823
      %v825 = vmul.f32 %v765, 1.442695
      %v826 = vpow.pop %v825
      %v827 = vmul.f32 %v766, 1.442695
      %v828 = vpow.pop %v827
      %v829 = vmul.f32 %v767, 1.442695
      %v830 = vpow.pop %v829
      %v831 = vmul.f32 %v768, 1.442695
      %v832 = vpow.pop %v831
      %v833 = vadd.f32 %v770, 1.0
      %v834 = vadd.f32 %v772, 1.0
      %v835 = vadd.f32 %v774, 1.0
      %v836 = vadd.f32 %v776, 1.0
      %v837 = vadd.f32 %v778, 1.0
      %v838 = vadd.f32 %v780, 1.0
      %v839 = vadd.f32 %v782, 1.0
      %v840 = vadd.f32 %v784, 1.0
      %v841 = vadd.f32 %v786, 1.0
      %v842 = vadd.f32 %v788, 1.0
      %v843 = vadd.f32 %v790, 1.0
      %v844 = vadd.f32 %v792, 1.0
      %v845 = vadd.f32 %v794, 1.0
      %v846 = vadd.f32 %v796, 1.0
      %v847 = vadd.f32 %v798, 1.0
      %v848 = vadd.f32 %v800, 1.0
      %v849 = vadd.f32 %v802, 1.0
      %v850 = vadd.f32 %v804, 1.0
      %v851 = vadd.f32 %v806, 1.0
      %v852 = vadd.f32 %v808, 1.0
      %v853 = vadd.f32 %v810, 1.0
      %v854 = vadd.f32 %v812, 1.0
      %v855 = vadd.f32 %v814, 1.0
      %v856 = vadd.f32 %v816, 1.0
      %v857 = vadd.f32 %v818, 1.0
      %v858 = vadd.f32 %v820, 1.0
      %v859 = vadd.f32 %v822, 1.0
      %v860 = vadd.f32 %v824, 1.0
      %v861 = vadd.f32 %v826, 1.0
      %v862 = vadd.f32 %v828, 1.0
      %v863 = vadd.f32 %v830, 1.0
      %v864 = vadd.f32 %v832, 1.0
      %v865 = vrcp.pop %v833
      %v866 = vmul.f32 1.0, %v865
      %v867 = vrcp.pop %v834
      %v868 = vmul.f32 1.0, %v867
      %v869 = vrcp.pop %v835
      %v870 = vmul.f32 1.0, %v869
      %v871 = vrcp.pop %v836
      %v872 = vmul.f32 1.0, %v871
      %v873 = vrcp.pop %v837
      %v874 = vmul.f32 1.0, %v873
      %v875 = vrcp.pop %v838
      %v876 = vmul.f32 1.0, %v875
      %v877 = vrcp.pop %v839
      %v878 = vmul.f32 1.0, %v877
      %v879 = vrcp.pop %v840
      %v880 = vmul.f32 1.0, %v879
      %v881 = vrcp.pop %v841
      %v882 = vmul.f32 1.0, %v881
      %v883 = vrcp.pop %v842
      %v884 = vmul.f32 1.0, %v883
      %v885 = vrcp.pop %v843
      %v886 = vmul.f32 1.0, %v885
      %v887 = vrcp.pop %v844
      %v888 = vmul.f32 1.0, %v887
      %v889 = vrcp.pop %v845
      %v890 = vmul.f32 1.0, %v889
      %v891 = vrcp.pop %v846
      %v892 = vmul.f32 1.0, %v891
      %v893 = vrcp.pop %v847
      %v894 = vmul.f32 1.0, %v893
      %v895 = vrcp.pop %v848
      %v896 = vmul.f32 1.0, %v895
      %v897 = vrcp.pop %v849
      %v898 = vmul.f32 1.0, %v897
      %v899 = vrcp.pop %v850
      %v900 = vmul.f32 1.0, %v899
      %v901 = vrcp.pop %v851
      %v902 = vmul.f32 1.0, %v901
      %v903 = vrcp.pop %v852
      %v904 = vmul.f32 1.0, %v903
      %v905 = vrcp.pop %v853
      %v906 = vmul.f32 1.0, %v905
      %v907 = vrcp.pop %v854
      %v908 = vmul.f32 1.0, %v907
      %v909 = vrcp.pop %v855
      %v910 = vmul.f32 1.0, %v909
      %v911 = vrcp.pop %v856
      %v912 = vmul.f32 1.0, %v911
      %v913 = vrcp.pop %v857
      %v914 = vmul.f32 1.0, %v913
      %v915 = vrcp.pop %v858
      %v916 = vmul.f32 1.0, %v915
      %v917 = vrcp.pop %v859
      %v918 = vmul.f32 1.0, %v917
      %v919 = vrcp.pop %v860
      %v920 = vmul.f32 1.0, %v919
      %v921 = vrcp.pop %v861
      %v922 = vmul.f32 1.0, %v921
      %v923 = vrcp.pop %v862
      %v924 = vmul.f32 1.0, %v923
      %v925 = vrcp.pop %v863
      %v926 = vmul.f32 1.0, %v925
      %v927 = vrcp.pop %v864
      %v928 = vmul.f32 1.0, %v927
      %v929 = vmul.f32 %v611, %v866
      %v930 = vmul.f32 %v614, %v868
      %v931 = vmul.f32 %v619, %v870
      %v932 = vmul.f32 %v622, %v872
      %v933 = vmul.f32 %v627, %v874
      %v934 = vmul.f32 %v630, %v876
      %v935 = vmul.f32 %v635, %v878
      %v936 = vmul.f32 %v638, %v880
      %v937 = vmul.f32 %v643, %v882
      %v938 = vmul.f32 %v646, %v884
      %v939 = vmul.f32 %v651, %v886
      %v940 = vmul.f32 %v654, %v888
      %v941 = vmul.f32 %v659, %v890
      %v942 = vmul.f32 %v662, %v892
      %v943 = vmul.f32 %v667, %v894
      %v944 = vmul.f32 %v670, %v896
      %v945 = vmul.f32 %v675, %v898
      %v946 = vmul.f32 %v678, %v900
      %v947 = vmul.f32 %v683, %v902
      %v948 = vmul.f32 %v686, %v904
      %v949 = vmul.f32 %v691, %v906
      %v950 = vmul.f32 %v694, %v908
      %v951 = vmul.f32 %v699, %v910
      %v952 = vmul.f32 %v702, %v912
      %v953 = vmul.f32 %v707, %v914
      %v954 = vmul.f32 %v710, %v916
      %v955 = vmul.f32 %v715, %v918
      %v956 = vmul.f32 %v718, %v920
      %v957 = vmul.f32 %v723, %v922
      %v958 = vmul.f32 %v726, %v924
      %v959 = vmul.f32 %v731, %v926
      %v960 = vmul.f32 %v734, %v928
      %v961 = vpack.c.bf16 %v930, %v929
      %v962 = vpack.c.bf16 %v932, %v931
      %v963 = vpack.c.bf16 %v934, %v933
      %v964 = vpack.c.bf16 %v936, %v935
      %v965 = vpack.c.bf16 %v938, %v937
      %v966 = vpack.c.bf16 %v940, %v939
      %v967 = vpack.c.bf16 %v942, %v941
      %v968 = vpack.c.bf16 %v944, %v943
      %v969 = vpack.c.bf16 %v946, %v945
      %v970 = vpack.c.bf16 %v948, %v947
      %v971 = vpack.c.bf16 %v950, %v949
      %v972 = vpack.c.bf16 %v952, %v951
      %v973 = vpack.c.bf16 %v954, %v953
      %v974 = vpack.c.bf16 %v956, %v955
      %v975 = vpack.c.bf16 %v958, %v957
      %v976 = vpack.c.bf16 %v960, %v959
      %v977 = vld [vmem:[%s4] sm:$0xf]
      %v978 = vld [vmem:[%s4 + $0x4] sm:$0xf]
      %v979 = vld [vmem:[%s4 + $0x8] sm:$0xf]
      %v980 = vld [vmem:[%s4 + $0xc] sm:$0xf]
      %v981 = vld [vmem:[%s4 + $0x10] sm:$0xf]
      %v982 = vld [vmem:[%s4 + $0x14] sm:$0xf]
      %v983 = vld [vmem:[%s4 + $0x18] sm:$0xf]
      %v984 = vld [vmem:[%s4 + $0x1c] sm:$0xf]
      %v985 = vld [vmem:[%s4 + $0x20] sm:$0xf]
      %v986 = vld [vmem:[%s4 + $0x24] sm:$0xf]
      %v987 = vld [vmem:[%s4 + $0x28] sm:$0xf]
      %v988 = vld [vmem:[%s4 + $0x2c] sm:$0xf]
      %v989 = vld [vmem:[%s4 + $0x30] sm:$0xf]
      %v990 = vld [vmem:[%s4 + $0x34] sm:$0xf]
      %v991 = vld [vmem:[%s4 + $0x38] sm:$0xf]
      %v992 = vld [vmem:[%s4 + $0x3c] sm:$0xf]
      %v993 = vld [vmem:[%s5] sm:$0x1]
      %v995 = vlaneseq
      %v996 = vshrl.u32 %v995, 7
      %v997 = vsub.s32 0, %v996
      %v998 = vrot.slane %v993, %v997
      %v1016 = vunpack.c.l.b16 %v977
      %v1017 = vunpack.c.l.b16 %v978
      %v1018 = vunpack.c.l.b16 %v979
      %v1019 = vunpack.c.l.b16 %v980
      %v1020 = vunpack.c.l.b16 %v981
      %v1021 = vunpack.c.l.b16 %v982
      %v1022 = vunpack.c.l.b16 %v983
      %v1023 = vunpack.c.l.b16 %v984
      %v1024 = vunpack.c.l.b16 %v985
      %v1025 = vunpack.c.l.b16 %v986
      %v1026 = vunpack.c.l.b16 %v987
      %v1027 = vunpack.c.l.b16 %v988
      %v1028 = vunpack.c.l.b16 %v989
      %v1029 = vunpack.c.l.b16 %v990
      %v1030 = vunpack.c.l.b16 %v991
      %v1031 = vunpack.c.l.b16 %v992
      %v1032 = vpack.c.b16 %v1017, %v1016
      %v1033 = vpack.c.b16 %v1019, %v1018
      %v1034 = vpack.c.b16 %v1021, %v1020
      %v1035 = vpack.c.b16 %v1023, %v1022
      %v1036 = vpack.c.b16 %v1025, %v1024
      %v1037 = vpack.c.b16 %v1027, %v1026
      %v1038 = vpack.c.b16 %v1029, %v1028
      %v1039 = vpack.c.b16 %v1031, %v1030
      %1048 = vmatprep.subr.bf16.mxu0 0
      %1049 = vmatpush1.bf16.msra.mxu0 %v1032
      %1050 = vmatprep.subr.bf16.mxu0 0
      %1051 = vmatpush1.bf16.msra.mxu0 %v1033
      %1052 = vmatprep.subr.bf16.mxu0 0
      %1053 = vmatpush1.bf16.msra.mxu0 %v1034
      %1054 = vmatprep.subr.bf16.mxu0 0
      %1055 = vmatpush1.bf16.msra.mxu0 %v1035
      %1056 = vmatprep.subr.bf16.mxu0 0
      %1057 = vmatpush1.bf16.msra.mxu0 %v1036
      %1058 = vmatprep.subr.bf16.mxu0 0
      %1059 = vmatpush1.bf16.msra.mxu0 %v1037
      %1060 = vmatprep.subr.bf16.mxu0 0
      %1061 = vmatpush1.bf16.msra.mxu0 %v1038
      %1062 = vmatprep.subr.bf16.mxu0 0
      %1063 = vmatpush1.bf16.msra.mxu0 %v1039
      %1064 = vmatprep.subr.bf16.mxu0 0
      %1065 = vmatpush1.bf16.msra.mxu0 0
      %1066 = vmatprep.subr.bf16.mxu0 0
      %1067 = vmatpush1.bf16.msra.mxu0 0
      %1068 = vmatprep.subr.bf16.mxu0 0
      %1069 = vmatpush1.bf16.msra.mxu0 0
      %1070 = vmatprep.subr.bf16.mxu0 0
      %1071 = vmatpush1.bf16.msra.mxu0 0
      %1072 = vmatprep.subr.bf16.mxu0 0
      %1073 = vmatpush1.bf16.msra.mxu0 0
      %1074 = vmatprep.subr.bf16.mxu0 0
      %1075 = vmatpush1.bf16.msra.mxu0 0
      %1076 = vmatprep.subr.bf16.mxu0 0
      %1077 = vmatpush1.bf16.msra.mxu0 0
      %1078 = vmatprep.subr.bf16.mxu0 0
      %1079 = vmatpush1.bf16.msra.mxu0 0
      %1080 = vmatprep.mubr.bf16.mxu0 0
      %1081 = vmatmul.mubr.bf16.gmra.mrb[0].mxu0 %v961
      %v1082 = vpop.f32.mrb[0].mxu0
      %v1083 = vadd.f32 %v998, %v1082
      %v1084 = vpop.f32.mrb[0].mxu0
      %v1085 = vpop.f32.mrb[0].mxu0
      %v1086 = vadd.f32 %v998, %v1085
      %v1087 = vpop.f32.mrb[0].mxu0
      %1088 = vmatprep.mubr.bf16.mxu0 0
      %1089 = vmatmul.mubr.bf16.gmra.mrb[0].mxu0 %v962
      %v1090 = vpop.f32.mrb[0].mxu0
      %v1091 = vadd.f32 %v998, %v1090
      %v1092 = vpop.f32.mrb[0].mxu0
      %v1093 = vpop.f32.mrb[0].mxu0
      %v1094 = vadd.f32 %v998, %v1093
      %v1095 = vpop.f32.mrb[0].mxu0
      %1096 = vmatprep.mubr.bf16.mxu0 0
      %1097 = vmatmul.mubr.bf16.gmra.mrb[0].mxu0 %v963
      %v1098 = vpop.f32.mrb[0].mxu0
      %v1099 = vadd.f32 %v998, %v1098
      %v1100 = vpop.f32.mrb[0].mxu0
      %v1101 = vpop.f32.mrb[0].mxu0
      %v1102 = vadd.f32 %v998, %v1101
      %v1103 = vpop.f32.mrb[0].mxu0
      %1104 = vmatprep.mubr.bf16.mxu0 0
      %1105 = vmatmul.mubr.bf16.gmra.mrb[0].mxu0 %v964
      %v1106 = vpop.f32.mrb[0].mxu0
      %v1107 = vadd.f32 %v998, %v1106
      %v1108 = vpop.f32.mrb[0].mxu0
      %v1109 = vpop.f32.mrb[0].mxu0
      %v1110 = vadd.f32 %v998, %v1109
      %v1111 = vpop.f32.mrb[0].mxu0
      %1112 = vmatprep.mubr.bf16.mxu0 0
      %1113 = vmatmul.mubr.bf16.gmra.mrb[0].mxu0 %v965
      %v1114 = vpop.f32.mrb[0].mxu0
      %v1115 = vadd.f32 %v998, %v1114
      %v1116 = vpop.f32.mrb[0].mxu0
      %v1117 = vpop.f32.mrb[0].mxu0
      %v1118 = vadd.f32 %v998, %v1117
      %v1119 = vpop.f32.mrb[0].mxu0
      %1120 = vmatprep.mubr.bf16.mxu0 0
      %1121 = vmatmul.mubr.bf16.gmra.mrb[0].mxu0 %v966
      %v1122 = vpop.f32.mrb[0].mxu0
      %v1123 = vadd.f32 %v998, %v1122
      %v1124 = vpop.f32.mrb[0].mxu0
      %v1125 = vpop.f32.mrb[0].mxu0
      %v1126 = vadd.f32 %v998, %v1125
      %v1127 = vpop.f32.mrb[0].mxu0
      %1128 = vmatprep.mubr.bf16.mxu0 0
      %1129 = vmatmul.mubr.bf16.gmra.mrb[0].mxu0 %v967
      %v1130 = vpop.f32.mrb[0].mxu0
      %v1131 = vadd.f32 %v998, %v1130
      %v1132 = vpop.f32.mrb[0].mxu0
      %v1133 = vpop.f32.mrb[0].mxu0
      %v1134 = vadd.f32 %v998, %v1133
      %v1135 = vpop.f32.mrb[0].mxu0
      %1136 = vmatprep.mubr.bf16.mxu0 0
      %1137 = vmatmul.mubr.bf16.gmra.mrb[0].mxu0 %v968
      %v1138 = vpop.f32.mrb[0].mxu0
      %v1139 = vadd.f32 %v998, %v1138
      %v1140 = vpop.f32.mrb[0].mxu0
      %v1141 = vpop.f32.mrb[0].mxu0
      %v1142 = vadd.f32 %v998, %v1141
      %v1143 = vpop.f32.mrb[0].mxu0
      %1144 = vmatprep.mubr.bf16.mxu0 0
      %1145 = vmatmul.mubr.bf16.gmra.mrb[0].mxu0 %v969
      %v1146 = vpop.f32.mrb[0].mxu0
      %v1147 = vadd.f32 %v998, %v1146
      %v1148 = vpop.f32.mrb[0].mxu0
      %v1149 = vpop.f32.mrb[0].mxu0
      %v1150 = vadd.f32 %v998, %v1149
      %v1151 = vpop.f32.mrb[0].mxu0
      %1152 = vmatprep.mubr.bf16.mxu0 0
      %1153 = vmatmul.mubr.bf16.gmra.mrb[0].mxu0 %v970
      %v1154 = vpop.f32.mrb[0].mxu0
      %v1155 = vadd.f32 %v998, %v1154
      %v1156 = vpop.f32.mrb[0].mxu0
      %v1157 = vpop.f32.mrb[0].mxu0
      %v1158 = vadd.f32 %v998, %v1157
      %v1159 = vpop.f32.mrb[0].mxu0
      %1160 = vmatprep.mubr.bf16.mxu0 0
      %1161 = vmatmul.mubr.bf16.gmra.mrb[0].mxu0 %v971
      %v1162 = vpop.f32.mrb[0].mxu0
      %v1163 = vadd.f32 %v998, %v1162
      %v1164 = vpop.f32.mrb[0].mxu0
      %v1165 = vpop.f32.mrb[0].mxu0
      %v1166 = vadd.f32 %v998, %v1165
      %v1167 = vpop.f32.mrb[0].mxu0
      %1168 = vmatprep.mubr.bf16.mxu0 0
      %1169 = vmatmul.mubr.bf16.gmra.mrb[0].mxu0 %v972
      %v1170 = vpop.f32.mrb[0].mxu0
      %v1171 = vadd.f32 %v998, %v1170
      %v1172 = vpop.f32.mrb[0].mxu0
      %v1173 = vpop.f32.mrb[0].mxu0
      %v1174 = vadd.f32 %v998, %v1173
      %v1175 = vpop.f32.mrb[0].mxu0
      %1176 = vmatprep.mubr.bf16.mxu0 0
      %1177 = vmatmul.mubr.bf16.gmra.mrb[0].mxu0 %v973
      %v1178 = vpop.f32.mrb[0].mxu0
      %v1179 = vadd.f32 %v998, %v1178
      %v1180 = vpop.f32.mrb[0].mxu0
      %v1181 = vpop.f32.mrb[0].mxu0
      %v1182 = vadd.f32 %v998, %v1181
      %v1183 = vpop.f32.mrb[0].mxu0
      %1184 = vmatprep.mubr.bf16.mxu0 0
      %1185 = vmatmul.mubr.bf16.gmra.mrb[0].mxu0 %v974
      %v1186 = vpop.f32.mrb[0].mxu0
      %v1187 = vadd.f32 %v998, %v1186
      %v1188 = vpop.f32.mrb[0].mxu0
      %v1189 = vpop.f32.mrb[0].mxu0
      %v1190 = vadd.f32 %v998, %v1189
      %v1191 = vpop.f32.mrb[0].mxu0
      %1192 = vmatprep.mubr.bf16.mxu0 0
      %1193 = vmatmul.mubr.bf16.gmra.mrb[0].mxu0 %v975
      %v1194 = vpop.f32.mrb[0].mxu0
      %v1195 = vadd.f32 %v998, %v1194
      %v1196 = vpop.f32.mrb[0].mxu0
      %v1197 = vpop.f32.mrb[0].mxu0
      %v1198 = vadd.f32 %v998, %v1197
      %v1199 = vpop.f32.mrb[0].mxu0
      %1200 = vmatprep.mubr.bf16.mxu0 0
      %1201 = vmatmul.mubr.bf16.gmra.mrb[0].mxu0 %v976
      %v1202 = vpop.f32.mrb[0].mxu0
      %v1203 = vadd.f32 %v998, %v1202
      %v1204 = vpop.f32.mrb[0].mxu0
      %v1205 = vpop.f32.mrb[0].mxu0
      %v1206 = vadd.f32 %v998, %v1205
      %v1207 = vpop.f32.mrb[0].mxu0
      %1208 = vdwg.mxu0
      %v1209 = vxor.u32 %v1083, 2147483648
      %v1210 = vxor.u32 %v1086, 2147483648
      %v1211 = vxor.u32 %v1091, 2147483648
      %v1212 = vxor.u32 %v1094, 2147483648
      %v1213 = vxor.u32 %v1099, 2147483648
      %v1214 = vxor.u32 %v1102, 2147483648
      %v1215 = vxor.u32 %v1107, 2147483648
      %v1216 = vxor.u32 %v1110, 2147483648
      %v1217 = vxor.u32 %v1115, 2147483648
      %v1218 = vxor.u32 %v1118, 2147483648
      %v1219 = vxor.u32 %v1123, 2147483648
      %v1220 = vxor.u32 %v1126, 2147483648
      %v1221 = vxor.u32 %v1131, 2147483648
      %v1222 = vxor.u32 %v1134, 2147483648
      %v1223 = vxor.u32 %v1139, 2147483648
      %v1224 = vxor.u32 %v1142, 2147483648
      %v1225 = vxor.u32 %v1147, 2147483648
      %v1226 = vxor.u32 %v1150, 2147483648
      %v1227 = vxor.u32 %v1155, 2147483648
      %v1228 = vxor.u32 %v1158, 2147483648
      %v1229 = vxor.u32 %v1163, 2147483648
      %v1230 = vxor.u32 %v1166, 2147483648
      %v1231 = vxor.u32 %v1171, 2147483648
      %v1232 = vxor.u32 %v1174, 2147483648
      %v1233 = vxor.u32 %v1179, 2147483648
      %v1234 = vxor.u32 %v1182, 2147483648
      %v1235 = vxor.u32 %v1187, 2147483648
      %v1236 = vxor.u32 %v1190, 2147483648
      %v1237 = vxor.u32 %v1195, 2147483648
      %v1238 = vxor.u32 %v1198, 2147483648
      %v1239 = vxor.u32 %v1203, 2147483648
      %v1240 = vxor.u32 %v1206, 2147483648
      %v1241 = vmul.f32 %v1209, 1.442695
      %v1242 = vpow.pop %v1241
      %v1243 = vmul.f32 %v1210, 1.442695
      %v1244 = vpow.pop %v1243
      %v1245 = vmul.f32 %v1211, 1.442695
      %v1246 = vpow.pop %v1245
      %v1247 = vmul.f32 %v1212, 1.442695
      %v1248 = vpow.pop %v1247
      %v1249 = vmul.f32 %v1213, 1.442695
      %v1250 = vpow.pop %v1249
      %v1251 = vmul.f32 %v1214, 1.442695
      %v1252 = vpow.pop %v1251
      %v1253 = vmul.f32 %v1215, 1.442695
      %v1254 = vpow.pop %v1253
      %v1255 = vmul.f32 %v1216, 1.442695
      %v1256 = vpow.pop %v1255
      %v1257 = vmul.f32 %v1217, 1.442695
      %v1258 = vpow.pop %v1257
      %v1259 = vmul.f32 %v1218, 1.442695
      %v1260 = vpow.pop %v1259
      %v1261 = vmul.f32 %v1219, 1.442695
      %v1262 = vpow.pop %v1261
      %v1263 = vmul.f32 %v1220, 1.442695
      %v1264 = vpow.pop %v1263
      %v1265 = vmul.f32 %v1221, 1.442695
      %v1266 = vpow.pop %v1265
      %v1267 = vmul.f32 %v1222, 1.442695
      %v1268 = vpow.pop %v1267
      %v1269 = vmul.f32 %v1223, 1.442695
      %v1270 = vpow.pop %v1269
      %v1271 = vmul.f32 %v1224, 1.442695
      %v1272 = vpow.pop %v1271
      %v1273 = vmul.f32 %v1225, 1.442695
      %v1274 = vpow.pop %v1273
      %v1275 = vmul.f32 %v1226, 1.442695
      %v1276 = vpow.pop %v1275
      %v1277 = vmul.f32 %v1227, 1.442695
      %v1278 = vpow.pop %v1277
      %v1279 = vmul.f32 %v1228, 1.442695
      %v1280 = vpow.pop %v1279
      %v1281 = vmul.f32 %v1229, 1.442695
      %v1282 = vpow.pop %v1281
      %v1283 = vmul.f32 %v1230, 1.442695
      %v1284 = vpow.pop %v1283
      %v1285 = vmul.f32 %v1231, 1.442695
      %v1286 = vpow.pop %v1285
      %v1287 = vmul.f32 %v1232, 1.442695
      %v1288 = vpow.pop %v1287
      %v1289 = vmul.f32 %v1233, 1.442695
      %v1290 = vpow.pop %v1289
      %v1291 = vmul.f32 %v1234, 1.442695
      %v1292 = vpow.pop %v1291
      %v1293 = vmul.f32 %v1235, 1.442695
      %v1294 = vpow.pop %v1293
      %v1295 = vmul.f32 %v1236, 1.442695
      %v1296 = vpow.pop %v1295
      %v1297 = vmul.f32 %v1237, 1.442695
      %v1298 = vpow.pop %v1297
      %v1299 = vmul.f32 %v1238, 1.442695
      %v1300 = vpow.pop %v1299
      %v1301 = vmul.f32 %v1239, 1.442695
      %v1302 = vpow.pop %v1301
      %v1303 = vmul.f32 %v1240, 1.442695
      %v1304 = vpow.pop %v1303
      %v1305 = vadd.f32 %v1242, 1.0
      %v1306 = vadd.f32 %v1244, 1.0
      %v1307 = vadd.f32 %v1246, 1.0
      %v1308 = vadd.f32 %v1248, 1.0
      %v1309 = vadd.f32 %v1250, 1.0
      %v1310 = vadd.f32 %v1252, 1.0
      %v1311 = vadd.f32 %v1254, 1.0
      %v1312 = vadd.f32 %v1256, 1.0
      %v1313 = vadd.f32 %v1258, 1.0
      %v1314 = vadd.f32 %v1260, 1.0
      %v1315 = vadd.f32 %v1262, 1.0
      %v1316 = vadd.f32 %v1264, 1.0
      %v1317 = vadd.f32 %v1266, 1.0
      %v1318 = vadd.f32 %v1268, 1.0
      %v1319 = vadd.f32 %v1270, 1.0
      %v1320 = vadd.f32 %v1272, 1.0
      %v1321 = vadd.f32 %v1274, 1.0
      %v1322 = vadd.f32 %v1276, 1.0
      %v1323 = vadd.f32 %v1278, 1.0
      %v1324 = vadd.f32 %v1280, 1.0
      %v1325 = vadd.f32 %v1282, 1.0
      %v1326 = vadd.f32 %v1284, 1.0
      %v1327 = vadd.f32 %v1286, 1.0
      %v1328 = vadd.f32 %v1288, 1.0
      %v1329 = vadd.f32 %v1290, 1.0
      %v1330 = vadd.f32 %v1292, 1.0
      %v1331 = vadd.f32 %v1294, 1.0
      %v1332 = vadd.f32 %v1296, 1.0
      %v1333 = vadd.f32 %v1298, 1.0
      %v1334 = vadd.f32 %v1300, 1.0
      %v1335 = vadd.f32 %v1302, 1.0
      %v1336 = vadd.f32 %v1304, 1.0
      %v1337 = vrcp.pop %v1305
      %v1338 = vmul.f32 1.0, %v1337
      %v1339 = vrcp.pop %v1306
      %v1340 = vmul.f32 1.0, %v1339
      %v1341 = vrcp.pop %v1307
      %v1342 = vmul.f32 1.0, %v1341
      %v1343 = vrcp.pop %v1308
      %v1344 = vmul.f32 1.0, %v1343
      %v1345 = vrcp.pop %v1309
      %v1346 = vmul.f32 1.0, %v1345
      %v1347 = vrcp.pop %v1310
      %v1348 = vmul.f32 1.0, %v1347
      %v1349 = vrcp.pop %v1311
      %v1350 = vmul.f32 1.0, %v1349
      %v1351 = vrcp.pop %v1312
      %v1352 = vmul.f32 1.0, %v1351
      %v1353 = vrcp.pop %v1313
      %v1354 = vmul.f32 1.0, %v1353
      %v1355 = vrcp.pop %v1314
      %v1356 = vmul.f32 1.0, %v1355
      %v1357 = vrcp.pop %v1315
      %v1358 = vmul.f32 1.0, %v1357
      %v1359 = vrcp.pop %v1316
      %v1360 = vmul.f32 1.0, %v1359
      %v1361 = vrcp.pop %v1317
      %v1362 = vmul.f32 1.0, %v1361
      %v1363 = vrcp.pop %v1318
      %v1364 = vmul.f32 1.0, %v1363
      %v1365 = vrcp.pop %v1319
      %v1366 = vmul.f32 1.0, %v1365
      %v1367 = vrcp.pop %v1320
      %v1368 = vmul.f32 1.0, %v1367
      %v1369 = vrcp.pop %v1321
      %v1370 = vmul.f32 1.0, %v1369
      %v1371 = vrcp.pop %v1322
      %v1372 = vmul.f32 1.0, %v1371
      %v1373 = vrcp.pop %v1323
      %v1374 = vmul.f32 1.0, %v1373
      %v1375 = vrcp.pop %v1324
      %v1376 = vmul.f32 1.0, %v1375
      %v1377 = vrcp.pop %v1325
      %v1378 = vmul.f32 1.0, %v1377
      %v1379 = vrcp.pop %v1326
      %v1380 = vmul.f32 1.0, %v1379
      %v1381 = vrcp.pop %v1327
      %v1382 = vmul.f32 1.0, %v1381
      %v1383 = vrcp.pop %v1328
      %v1384 = vmul.f32 1.0, %v1383
      %v1385 = vrcp.pop %v1329
      %v1386 = vmul.f32 1.0, %v1385
      %v1387 = vrcp.pop %v1330
      %v1388 = vmul.f32 1.0, %v1387
      %v1389 = vrcp.pop %v1331
      %v1390 = vmul.f32 1.0, %v1389
      %v1391 = vrcp.pop %v1332
      %v1392 = vmul.f32 1.0, %v1391
      %v1393 = vrcp.pop %v1333
      %v1394 = vmul.f32 1.0, %v1393
      %v1395 = vrcp.pop %v1334
      %v1396 = vmul.f32 1.0, %v1395
      %v1397 = vrcp.pop %v1335
      %v1398 = vmul.f32 1.0, %v1397
      %v1399 = vrcp.pop %v1336
      %v1400 = vmul.f32 1.0, %v1399
      %v1401 = vmul.f32 %v1083, %v1338
      %v1402 = vmul.f32 %v1086, %v1340
      %v1403 = vmul.f32 %v1091, %v1342
      %v1404 = vmul.f32 %v1094, %v1344
      %v1405 = vmul.f32 %v1099, %v1346
      %v1406 = vmul.f32 %v1102, %v1348
      %v1407 = vmul.f32 %v1107, %v1350
      %v1408 = vmul.f32 %v1110, %v1352
      %v1409 = vmul.f32 %v1115, %v1354
      %v1410 = vmul.f32 %v1118, %v1356
      %v1411 = vmul.f32 %v1123, %v1358
      %v1412 = vmul.f32 %v1126, %v1360
      %v1413 = vmul.f32 %v1131, %v1362
      %v1414 = vmul.f32 %v1134, %v1364
      %v1415 = vmul.f32 %v1139, %v1366
      %v1416 = vmul.f32 %v1142, %v1368
      %v1417 = vmul.f32 %v1147, %v1370
      %v1418 = vmul.f32 %v1150, %v1372
      %v1419 = vmul.f32 %v1155, %v1374
      %v1420 = vmul.f32 %v1158, %v1376
      %v1421 = vmul.f32 %v1163, %v1378
      %v1422 = vmul.f32 %v1166, %v1380
      %v1423 = vmul.f32 %v1171, %v1382
      %v1424 = vmul.f32 %v1174, %v1384
      %v1425 = vmul.f32 %v1179, %v1386
      %v1426 = vmul.f32 %v1182, %v1388
      %v1427 = vmul.f32 %v1187, %v1390
      %v1428 = vmul.f32 %v1190, %v1392
      %v1429 = vmul.f32 %v1195, %v1394
      %v1430 = vmul.f32 %v1198, %v1396
      %v1431 = vmul.f32 %v1203, %v1398
      %v1432 = vmul.f32 %v1206, %v1400
      %v1433 = vpack.c.bf16 %v1402, %v1401
      %v1434 = vpack.c.bf16 %v1404, %v1403
      %v1435 = vpack.c.bf16 %v1406, %v1405
      %v1436 = vpack.c.bf16 %v1408, %v1407
      %v1437 = vpack.c.bf16 %v1410, %v1409
      %v1438 = vpack.c.bf16 %v1412, %v1411
      %v1439 = vpack.c.bf16 %v1414, %v1413
      %v1440 = vpack.c.bf16 %v1416, %v1415
      %v1441 = vpack.c.bf16 %v1418, %v1417
      %v1442 = vpack.c.bf16 %v1420, %v1419
      %v1443 = vpack.c.bf16 %v1422, %v1421
      %v1444 = vpack.c.bf16 %v1424, %v1423
      %v1445 = vpack.c.bf16 %v1426, %v1425
      %v1446 = vpack.c.bf16 %v1428, %v1427
      %v1447 = vpack.c.bf16 %v1430, %v1429
      %v1448 = vpack.c.bf16 %v1432, %v1431
      %v1449 = vld [vmem:[%s6] sm:$0xf]
      %v1450 = vld [vmem:[%s6 + $0x4] sm:$0xf]
      %v1451 = vld [vmem:[%s6 + $0x8] sm:$0xf]
      %v1452 = vld [vmem:[%s6 + $0xc] sm:$0xf]
      %v1453 = vld [vmem:[%s6 + $0x10] sm:$0xf]
      %v1454 = vld [vmem:[%s6 + $0x14] sm:$0xf]
      %v1455 = vld [vmem:[%s6 + $0x18] sm:$0xf]
      %v1456 = vld [vmem:[%s6 + $0x1c] sm:$0xf]
      %v1457 = vld [vmem:[%s6 + $0x20] sm:$0xf]
      %v1458 = vld [vmem:[%s6 + $0x24] sm:$0xf]
      %v1459 = vld [vmem:[%s6 + $0x28] sm:$0xf]
      %v1460 = vld [vmem:[%s6 + $0x2c] sm:$0xf]
      %v1461 = vld [vmem:[%s6 + $0x30] sm:$0xf]
      %v1462 = vld [vmem:[%s6 + $0x34] sm:$0xf]
      %v1463 = vld [vmem:[%s6 + $0x38] sm:$0xf]
      %v1464 = vld [vmem:[%s6 + $0x3c] sm:$0xf]
      %v1465 = vld [vmem:[%s7] sm:$0x1]
      %v1467 = vlaneseq
      %v1468 = vshrl.u32 %v1467, 7
      %v1469 = vsub.s32 0, %v1468
      %v1470 = vrot.slane %v1465, %v1469
      %v1488 = vunpack.c.l.b16 %v1449
      %v1489 = vunpack.c.l.b16 %v1450
      %v1490 = vunpack.c.l.b16 %v1451
      %v1491 = vunpack.c.l.b16 %v1452
      %v1492 = vunpack.c.l.b16 %v1453
      %v1493 = vunpack.c.l.b16 %v1454
      %v1494 = vunpack.c.l.b16 %v1455
      %v1495 = vunpack.c.l.b16 %v1456
      %v1496 = vunpack.c.l.b16 %v1457
      %v1497 = vunpack.c.l.b16 %v1458
      %v1498 = vunpack.c.l.b16 %v1459
      %v1499 = vunpack.c.l.b16 %v1460
      %v1500 = vunpack.c.l.b16 %v1461
      %v1501 = vunpack.c.l.b16 %v1462
      %v1502 = vunpack.c.l.b16 %v1463
      %v1503 = vunpack.c.l.b16 %v1464
      %v1504 = vpack.c.b16 %v1489, %v1488
      %v1505 = vpack.c.b16 %v1491, %v1490
      %v1506 = vpack.c.b16 %v1493, %v1492
      %v1507 = vpack.c.b16 %v1495, %v1494
      %v1508 = vpack.c.b16 %v1497, %v1496
      %v1509 = vpack.c.b16 %v1499, %v1498
      %v1510 = vpack.c.b16 %v1501, %v1500
      %v1511 = vpack.c.b16 %v1503, %v1502
      %1520 = vmatprep.subr.bf16.mxu0 0
      %1521 = vmatpush1.bf16.msra.mxu0 %v1504
      %1522 = vmatprep.subr.bf16.mxu0 0
      %1523 = vmatpush1.bf16.msra.mxu0 %v1505
      %1524 = vmatprep.subr.bf16.mxu0 0
      %1525 = vmatpush1.bf16.msra.mxu0 %v1506
      %1526 = vmatprep.subr.bf16.mxu0 0
      %1527 = vmatpush1.bf16.msra.mxu0 %v1507
      %1528 = vmatprep.subr.bf16.mxu0 0
      %1529 = vmatpush1.bf16.msra.mxu0 %v1508
      %1530 = vmatprep.subr.bf16.mxu0 0
      %1531 = vmatpush1.bf16.msra.mxu0 %v1509
      %1532 = vmatprep.subr.bf16.mxu0 0
      %1533 = vmatpush1.bf16.msra.mxu0 %v1510
      %1534 = vmatprep.subr.bf16.mxu0 0
      %1535 = vmatpush1.bf16.msra.mxu0 %v1511
      %1536 = vmatprep.subr.bf16.mxu0 0
      %1537 = vmatpush1.bf16.msra.mxu0 0
      %1538 = vmatprep.subr.bf16.mxu0 0
      %1539 = vmatpush1.bf16.msra.mxu0 0
      %1540 = vmatprep.subr.bf16.mxu0 0
      %1541 = vmatpush1.bf16.msra.mxu0 0
      %1542 = vmatprep.subr.bf16.mxu0 0
      %1543 = vmatpush1.bf16.msra.mxu0 0
      %1544 = vmatprep.subr.bf16.mxu0 0
      %1545 = vmatpush1.bf16.msra.mxu0 0
      %1546 = vmatprep.subr.bf16.mxu0 0
      %1547 = vmatpush1.bf16.msra.mxu0 0
      %1548 = vmatprep.subr.bf16.mxu0 0
      %1549 = vmatpush1.bf16.msra.mxu0 0
      %1550 = vmatprep.subr.bf16.mxu0 0
      %1551 = vmatpush1.bf16.msra.mxu0 0
      %1552 = vmatprep.mubr.bf16.mxu0 0
      %1553 = vmatmul.mubr.bf16.gmra.mrb[0].mxu0 %v1433
      %v1554 = vpop.f32.mrb[0].mxu0
      %v1555 = vadd.f32 %v1470, %v1554
      %v1556 = vpop.f32.mrb[0].mxu0
      %v1557 = vpop.f32.mrb[0].mxu0
      %v1558 = vadd.f32 %v1470, %v1557
      %v1559 = vpop.f32.mrb[0].mxu0
      %1560 = vmatprep.mubr.bf16.mxu0 0
      %1561 = vmatmul.mubr.bf16.gmra.mrb[0].mxu0 %v1434
      %v1562 = vpop.f32.mrb[0].mxu0
      %v1563 = vadd.f32 %v1470, %v1562
      %v1564 = vpop.f32.mrb[0].mxu0
      %v1565 = vpop.f32.mrb[0].mxu0
      %v1566 = vadd.f32 %v1470, %v1565
      %v1567 = vpop.f32.mrb[0].mxu0
      %1568 = vmatprep.mubr.bf16.mxu0 0
      %1569 = vmatmul.mubr.bf16.gmra.mrb[0].mxu0 %v1435
      %v1570 = vpop.f32.mrb[0].mxu0
      %v1571 = vadd.f32 %v1470, %v1570
      %v1572 = vpop.f32.mrb[0].mxu0
      %v1573 = vpop.f32.mrb[0].mxu0
      %v1574 = vadd.f32 %v1470, %v1573
      %v1575 = vpop.f32.mrb[0].mxu0
      %1576 = vmatprep.mubr.bf16.mxu0 0
      %1577 = vmatmul.mubr.bf16.gmra.mrb[0].mxu0 %v1436
      %v1578 = vpop.f32.mrb[0].mxu0
      %v1579 = vadd.f32 %v1470, %v1578
      %v1580 = vpop.f32.mrb[0].mxu0
      %v1581 = vpop.f32.mrb[0].mxu0
      %v1582 = vadd.f32 %v1470, %v1581
      %v1583 = vpop.f32.mrb[0].mxu0
      %1584 = vmatprep.mubr.bf16.mxu0 0
      %1585 = vmatmul.mubr.bf16.gmra.mrb[0].mxu0 %v1437
      %v1586 = vpop.f32.mrb[0].mxu0
      %v1587 = vadd.f32 %v1470, %v1586
      %v1588 = vpop.f32.mrb[0].mxu0
      %v1589 = vpop.f32.mrb[0].mxu0
      %v1590 = vadd.f32 %v1470, %v1589
      %v1591 = vpop.f32.mrb[0].mxu0
      %1592 = vmatprep.mubr.bf16.mxu0 0
      %1593 = vmatmul.mubr.bf16.gmra.mrb[0].mxu0 %v1438
      %v1594 = vpop.f32.mrb[0].mxu0
      %v1595 = vadd.f32 %v1470, %v1594
      %v1596 = vpop.f32.mrb[0].mxu0
      %v1597 = vpop.f32.mrb[0].mxu0
      %v1598 = vadd.f32 %v1470, %v1597
      %v1599 = vpop.f32.mrb[0].mxu0
      %1600 = vmatprep.mubr.bf16.mxu0 0
      %1601 = vmatmul.mubr.bf16.gmra.mrb[0].mxu0 %v1439
      %v1602 = vpop.f32.mrb[0].mxu0
      %v1603 = vadd.f32 %v1470, %v1602
      %v1604 = vpop.f32.mrb[0].mxu0
      %v1605 = vpop.f32.mrb[0].mxu0
      %v1606 = vadd.f32 %v1470, %v1605
      %v1607 = vpop.f32.mrb[0].mxu0
      %1608 = vmatprep.mubr.bf16.mxu0 0
      %1609 = vmatmul.mubr.bf16.gmra.mrb[0].mxu0 %v1440
      %v1610 = vpop.f32.mrb[0].mxu0
      %v1611 = vadd.f32 %v1470, %v1610
      %v1612 = vpop.f32.mrb[0].mxu0
      %v1613 = vpop.f32.mrb[0].mxu0
      %v1614 = vadd.f32 %v1470, %v1613
      %v1615 = vpop.f32.mrb[0].mxu0
      %1616 = vmatprep.mubr.bf16.mxu0 0
      %1617 = vmatmul.mubr.bf16.gmra.mrb[0].mxu0 %v1441
      %v1618 = vpop.f32.mrb[0].mxu0
      %v1619 = vadd.f32 %v1470, %v1618
      %v1620 = vpop.f32.mrb[0].mxu0
      %v1621 = vpop.f32.mrb[0].mxu0
      %v1622 = vadd.f32 %v1470, %v1621
      %v1623 = vpop.f32.mrb[0].mxu0
      %1624 = vmatprep.mubr.bf16.mxu0 0
      %1625 = vmatmul.mubr.bf16.gmra.mrb[0].mxu0 %v1442
      %v1626 = vpop.f32.mrb[0].mxu0
      %v1627 = vadd.f32 %v1470, %v1626
      %v1628 = vpop.f32.mrb[0].mxu0
      %v1629 = vpop.f32.mrb[0].mxu0
      %v1630 = vadd.f32 %v1470, %v1629
      %v1631 = vpop.f32.mrb[0].mxu0
      %1632 = vmatprep.mubr.bf16.mxu0 0
      %1633 = vmatmul.mubr.bf16.gmra.mrb[0].mxu0 %v1443
      %v1634 = vpop.f32.mrb[0].mxu0
      %v1635 = vadd.f32 %v1470, %v1634
      %v1636 = vpop.f32.mrb[0].mxu0
      %v1637 = vpop.f32.mrb[0].mxu0
      %v1638 = vadd.f32 %v1470, %v1637
      %v1639 = vpop.f32.mrb[0].mxu0
      %1640 = vmatprep.mubr.bf16.mxu0 0
      %1641 = vmatmul.mubr.bf16.gmra.mrb[0].mxu0 %v1444
      %v1642 = vpop.f32.mrb[0].mxu0
      %v1643 = vadd.f32 %v1470, %v1642
      %v1644 = vpop.f32.mrb[0].mxu0
      %v1645 = vpop.f32.mrb[0].mxu0
      %v1646 = vadd.f32 %v1470, %v1645
      %v1647 = vpop.f32.mrb[0].mxu0
      %1648 = vmatprep.mubr.bf16.mxu0 0
      %1649 = vmatmul.mubr.bf16.gmra.mrb[0].mxu0 %v1445
      %v1650 = vpop.f32.mrb[0].mxu0
      %v1651 = vadd.f32 %v1470, %v1650
      %v1652 = vpop.f32.mrb[0].mxu0
      %v1653 = vpop.f32.mrb[0].mxu0
      %v1654 = vadd.f32 %v1470, %v1653
      %v1655 = vpop.f32.mrb[0].mxu0
      %1656 = vmatprep.mubr.bf16.mxu0 0
      %1657 = vmatmul.mubr.bf16.gmra.mrb[0].mxu0 %v1446
      %v1658 = vpop.f32.mrb[0].mxu0
      %v1659 = vadd.f32 %v1470, %v1658
      %v1660 = vpop.f32.mrb[0].mxu0
      %v1661 = vpop.f32.mrb[0].mxu0
      %v1662 = vadd.f32 %v1470, %v1661
      %v1663 = vpop.f32.mrb[0].mxu0
      %1664 = vmatprep.mubr.bf16.mxu0 0
      %1665 = vmatmul.mubr.bf16.gmra.mrb[0].mxu0 %v1447
      %v1666 = vpop.f32.mrb[0].mxu0
      %v1667 = vadd.f32 %v1470, %v1666
      %v1668 = vpop.f32.mrb[0].mxu0
      %v1669 = vpop.f32.mrb[0].mxu0
      %v1670 = vadd.f32 %v1470, %v1669
      %v1671 = vpop.f32.mrb[0].mxu0
      %1672 = vmatprep.mubr.bf16.mxu0 0
      %1673 = vmatmul.mubr.bf16.gmra.mrb[0].mxu0 %v1448
      %v1674 = vpop.f32.mrb[0].mxu0
      %v1675 = vadd.f32 %v1470, %v1674
      %v1676 = vpop.f32.mrb[0].mxu0
      %v1677 = vpop.f32.mrb[0].mxu0
      %v1678 = vadd.f32 %v1470, %v1677
      %v1679 = vpop.f32.mrb[0].mxu0
      %1680 = vdwg.mxu0
      %v1681 = vld [vmem:[%s348] sm:$0xff]
      %v1682 = vld [vmem:[%s348 + $0x8] sm:$0xff]
      %v1683 = vld [vmem:[%s348 + $0x10] sm:$0xff]
      %v1684 = vld [vmem:[%s348 + $0x18] sm:$0xff]
      %v1685 = vld [vmem:[%s348 + $0x20] sm:$0xff]
      %v1686 = vld [vmem:[%s348 + $0x28] sm:$0xff]
      %v1687 = vld [vmem:[%s348 + $0x30] sm:$0xff]
      %v1688 = vld [vmem:[%s348 + $0x38] sm:$0xff]
      %v1689 = vld [vmem:[%s348 + $0x40] sm:$0xff]
      %v1690 = vld [vmem:[%s348 + $0x48] sm:$0xff]
      %v1691 = vld [vmem:[%s348 + $0x50] sm:$0xff]
      %v1692 = vld [vmem:[%s348 + $0x58] sm:$0xff]
      %v1693 = vld [vmem:[%s348 + $0x60] sm:$0xff]
      %v1694 = vld [vmem:[%s348 + $0x68] sm:$0xff]
      %v1695 = vld [vmem:[%s348 + $0x70] sm:$0xff]
      %v1696 = vld [vmem:[%s348 + $0x78] sm:$0xff]
      %v1697 = vld [vmem:[%s348 + $0x80] sm:$0xff]
      %v1698 = vld [vmem:[%s348 + $0x88] sm:$0xff]
      %v1699 = vld [vmem:[%s348 + $0x90] sm:$0xff]
      %v1700 = vld [vmem:[%s348 + $0x98] sm:$0xff]
      %v1701 = vld [vmem:[%s348 + $0xa0] sm:$0xff]
      %v1702 = vld [vmem:[%s348 + $0xa8] sm:$0xff]
      %v1703 = vld [vmem:[%s348 + $0xb0] sm:$0xff]
      %v1704 = vld [vmem:[%s348 + $0xb8] sm:$0xff]
      %v1705 = vld [vmem:[%s348 + $0xc0] sm:$0xff]
      %v1706 = vld [vmem:[%s348 + $0xc8] sm:$0xff]
      %v1707 = vld [vmem:[%s348 + $0xd0] sm:$0xff]
      %v1708 = vld [vmem:[%s348 + $0xd8] sm:$0xff]
      %v1709 = vld [vmem:[%s348 + $0xe0] sm:$0xff]
      %v1710 = vld [vmem:[%s348 + $0xe8] sm:$0xff]
      %v1711 = vld [vmem:[%s348 + $0xf0] sm:$0xff]
      %v1712 = vld [vmem:[%s348 + $0xf8] sm:$0xff]
      %v1713 = vlaneseq
      %v1714 = vand.u32 %v1713, 127
      %1715 = vset.pattern.permute.xlu0 0
      %1716 = vperm.xlu0 %1715, %v1681
      %v1717 = vpop.permute.xlu0 %1716
      %1718 = vset.pattern.permute.xlu0 0
      %1719 = vperm.xlu0 %1718, %v1682
      %v1720 = vpop.permute.xlu0 %1719
      %1721 = vset.pattern.permute.xlu0 0
      %1722 = vperm.xlu0 %1721, %v1683
      %v1723 = vpop.permute.xlu0 %1722
      %1724 = vset.pattern.permute.xlu0 0
      %1725 = vperm.xlu0 %1724, %v1684
      %v1726 = vpop.permute.xlu0 %1725
      %1727 = vset.pattern.permute.xlu0 0
      %1728 = vperm.xlu0 %1727, %v1685
      %v1729 = vpop.permute.xlu0 %1728
      %1730 = vset.pattern.permute.xlu0 0
      %1731 = vperm.xlu0 %1730, %v1686
      %v1732 = vpop.permute.xlu0 %1731
      %1733 = vset.pattern.permute.xlu0 0
      %1734 = vperm.xlu0 %1733, %v1687
      %v1735 = vpop.permute.xlu0 %1734
      %1736 = vset.pattern.permute.xlu0 0
      %1737 = vperm.xlu0 %1736, %v1688
      %v1738 = vpop.permute.xlu0 %1737
      %1739 = vset.pattern.permute.xlu0 0
      %1740 = vperm.xlu0 %1739, %v1689
      %v1741 = vpop.permute.xlu0 %1740
      %1742 = vset.pattern.permute.xlu0 0
      %1743 = vperm.xlu0 %1742, %v1690
      %v1744 = vpop.permute.xlu0 %1743
      %1745 = vset.pattern.permute.xlu0 0
      %1746 = vperm.xlu0 %1745, %v1691
      %v1747 = vpop.permute.xlu0 %1746
      %1748 = vset.pattern.permute.xlu0 0
      %1749 = vperm.xlu0 %1748, %v1692
      %v1750 = vpop.permute.xlu0 %1749
      %1751 = vset.pattern.permute.xlu0 0
      %1752 = vperm.xlu0 %1751, %v1693
      %v1753 = vpop.permute.xlu0 %1752
      %1754 = vset.pattern.permute.xlu0 0
      %1755 = vperm.xlu0 %1754, %v1694
      %v1756 = vpop.permute.xlu0 %1755
      %1757 = vset.pattern.permute.xlu0 0
      %1758 = vperm.xlu0 %1757, %v1695
      %v1759 = vpop.permute.xlu0 %1758
      %1760 = vset.pattern.permute.xlu0 0
      %1761 = vperm.xlu0 %1760, %v1696
      %v1762 = vpop.permute.xlu0 %1761
      %1763 = vset.pattern.permute.xlu0 0
      %1764 = vperm.xlu0 %1763, %v1697
      %v1765 = vpop.permute.xlu0 %1764
      %1766 = vset.pattern.permute.xlu0 0
      %1767 = vperm.xlu0 %1766, %v1698
      %v1768 = vpop.permute.xlu0 %1767
      %1769 = vset.pattern.permute.xlu0 0
      %1770 = vperm.xlu0 %1769, %v1699
      %v1771 = vpop.permute.xlu0 %1770
      %1772 = vset.pattern.permute.xlu0 0
      %1773 = vperm.xlu0 %1772, %v1700
      %v1774 = vpop.permute.xlu0 %1773
      %1775 = vset.pattern.permute.xlu0 0
      %1776 = vperm.xlu0 %1775, %v1701
      %v1777 = vpop.permute.xlu0 %1776
      %1778 = vset.pattern.permute.xlu0 0
      %1779 = vperm.xlu0 %1778, %v1702
      %v1780 = vpop.permute.xlu0 %1779
      %1781 = vset.pattern.permute.xlu0 0
      %1782 = vperm.xlu0 %1781, %v1703
      %v1783 = vpop.permute.xlu0 %1782
      %1784 = vset.pattern.permute.xlu0 0
      %1785 = vperm.xlu0 %1784, %v1704
      %v1786 = vpop.permute.xlu0 %1785
      %1787 = vset.pattern.permute.xlu0 0
      %1788 = vperm.xlu0 %1787, %v1705
      %v1789 = vpop.permute.xlu0 %1788
      %1790 = vset.pattern.permute.xlu0 0
      %1791 = vperm.xlu0 %1790, %v1706
      %v1792 = vpop.permute.xlu0 %1791
      %1793 = vset.pattern.permute.xlu0 0
      %1794 = vperm.xlu0 %1793, %v1707
      %v1795 = vpop.permute.xlu0 %1794
      %1796 = vset.pattern.permute.xlu0 0
      %1797 = vperm.xlu0 %1796, %v1708
      %v1798 = vpop.permute.xlu0 %1797
      %1799 = vset.pattern.permute.xlu0 0
      %1800 = vperm.xlu0 %1799, %v1709
      %v1801 = vpop.permute.xlu0 %1800
      %1802 = vset.pattern.permute.xlu0 0
      %1803 = vperm.xlu0 %1802, %v1710
      %v1804 = vpop.permute.xlu0 %1803
      %1805 = vset.pattern.permute.xlu0 0
      %1806 = vperm.xlu0 %1805, %v1711
      %v1807 = vpop.permute.xlu0 %1806
      %1808 = vset.pattern.permute.xlu0 0
      %1809 = vperm.xlu0 %1808, %v1712
      %v1810 = vpop.permute.xlu0 %1809
      %vm1811 = vcmp.eq.s32.totalorder %v1717, %v1714
      %vm1812 = vcmp.eq.s32.totalorder %v1720, %v1714
      %vm1813 = vcmp.eq.s32.totalorder %v1723, %v1714
      %vm1814 = vcmp.eq.s32.totalorder %v1726, %v1714
      %vm1815 = vcmp.eq.s32.totalorder %v1729, %v1714
      %vm1816 = vcmp.eq.s32.totalorder %v1732, %v1714
      %vm1817 = vcmp.eq.s32.totalorder %v1735, %v1714
      %vm1818 = vcmp.eq.s32.totalorder %v1738, %v1714
      %vm1819 = vcmp.eq.s32.totalorder %v1741, %v1714
      %vm1820 = vcmp.eq.s32.totalorder %v1744, %v1714
      %vm1821 = vcmp.eq.s32.totalorder %v1747, %v1714
      %vm1822 = vcmp.eq.s32.totalorder %v1750, %v1714
      %vm1823 = vcmp.eq.s32.totalorder %v1753, %v1714
      %vm1824 = vcmp.eq.s32.totalorder %v1756, %v1714
      %vm1825 = vcmp.eq.s32.totalorder %v1759, %v1714
      %vm1826 = vcmp.eq.s32.totalorder %v1762, %v1714
      %vm1827 = vcmp.eq.s32.totalorder %v1765, %v1714
      %vm1828 = vcmp.eq.s32.totalorder %v1768, %v1714
      %vm1829 = vcmp.eq.s32.totalorder %v1771, %v1714
      %vm1830 = vcmp.eq.s32.totalorder %v1774, %v1714
      %vm1831 = vcmp.eq.s32.totalorder %v1777, %v1714
      %vm1832 = vcmp.eq.s32.totalorder %v1780, %v1714
      %vm1833 = vcmp.eq.s32.totalorder %v1783, %v1714
      %vm1834 = vcmp.eq.s32.totalorder %v1786, %v1714
      %vm1835 = vcmp.eq.s32.totalorder %v1789, %v1714
      %vm1836 = vcmp.eq.s32.totalorder %v1792, %v1714
      %vm1837 = vcmp.eq.s32.totalorder %v1795, %v1714
      %vm1838 = vcmp.eq.s32.totalorder %v1798, %v1714
      %vm1839 = vcmp.eq.s32.totalorder %v1801, %v1714
      %vm1840 = vcmp.eq.s32.totalorder %v1804, %v1714
      %vm1841 = vcmp.eq.s32.totalorder %v1807, %v1714
      %vm1842 = vcmp.eq.s32.totalorder %v1810, %v1714
      %v1843 = vsel %vm1811, 1, 0
      %v1844 = vsel %vm1812, 1, 0
      %v1845 = vsel %vm1813, 1, 0
      %v1846 = vsel %vm1814, 1, 0
      %v1847 = vsel %vm1815, 1, 0
      %v1848 = vsel %vm1816, 1, 0
      %v1849 = vsel %vm1817, 1, 0
      %v1850 = vsel %vm1818, 1, 0
      %v1851 = vsel %vm1819, 1, 0
      %v1852 = vsel %vm1820, 1, 0
      %v1853 = vsel %vm1821, 1, 0
      %v1854 = vsel %vm1822, 1, 0
      %v1855 = vsel %vm1823, 1, 0
      %v1856 = vsel %vm1824, 1, 0
      %v1857 = vsel %vm1825, 1, 0
      %v1858 = vsel %vm1826, 1, 0
      %v1859 = vsel %vm1827, 1, 0
      %v1860 = vsel %vm1828, 1, 0
      %v1861 = vsel %vm1829, 1, 0
      %v1862 = vsel %vm1830, 1, 0
      %v1863 = vsel %vm1831, 1, 0
      %v1864 = vsel %vm1832, 1, 0
      %v1865 = vsel %vm1833, 1, 0
      %v1866 = vsel %vm1834, 1, 0
      %v1867 = vsel %vm1835, 1, 0
      %v1868 = vsel %vm1836, 1, 0
      %v1869 = vsel %vm1837, 1, 0
      %v1870 = vsel %vm1838, 1, 0
      %v1871 = vsel %vm1839, 1, 0
      %v1872 = vsel %vm1840, 1, 0
      %v1873 = vsel %vm1841, 1, 0
      %v1874 = vsel %vm1842, 1, 0
      %v1875 = vcvt.s32.f32 %v1843
      %v1876 = vcvt.s32.f32 %v1844
      %v1877 = vcvt.s32.f32 %v1845
      %v1878 = vcvt.s32.f32 %v1846
      %v1879 = vcvt.s32.f32 %v1847
      %v1880 = vcvt.s32.f32 %v1848
      %v1881 = vcvt.s32.f32 %v1849
      %v1882 = vcvt.s32.f32 %v1850
      %v1883 = vcvt.s32.f32 %v1851
      %v1884 = vcvt.s32.f32 %v1852
      %v1885 = vcvt.s32.f32 %v1853
      %v1886 = vcvt.s32.f32 %v1854
      %v1887 = vcvt.s32.f32 %v1855
      %v1888 = vcvt.s32.f32 %v1856
      %v1889 = vcvt.s32.f32 %v1857
      %v1890 = vcvt.s32.f32 %v1858
      %v1891 = vcvt.s32.f32 %v1859
      %v1892 = vcvt.s32.f32 %v1860
      %v1893 = vcvt.s32.f32 %v1861
      %v1894 = vcvt.s32.f32 %v1862
      %v1895 = vcvt.s32.f32 %v1863
      %v1896 = vcvt.s32.f32 %v1864
      %v1897 = vcvt.s32.f32 %v1865
      %v1898 = vcvt.s32.f32 %v1866
      %v1899 = vcvt.s32.f32 %v1867
      %v1900 = vcvt.s32.f32 %v1868
      %v1901 = vcvt.s32.f32 %v1869
      %v1902 = vcvt.s32.f32 %v1870
      %v1903 = vcvt.s32.f32 %v1871
      %v1904 = vcvt.s32.f32 %v1872
      %v1905 = vcvt.s32.f32 %v1873
      %v1906 = vcvt.s32.f32 %v1874
      %1907 = vxpose.xlu0.b32.start [1/16] %v1555, 128
      %1908 = vxpose.xlu0.b32.cont [2/16] %v1558, 128
      %1909 = vxpose.xlu0.b32.cont [3/16] %v1563, 128
      %1910 = vxpose.xlu0.b32.cont [4/16] %v1566, 128
      %1911 = vxpose.xlu0.b32.cont [5/16] %v1571, 128
      %1912 = vxpose.xlu0.b32.cont [6/16] %v1574, 128
      %1913 = vxpose.xlu0.b32.cont [7/16] %v1579, 128
      %1914 = vxpose.xlu0.b32.cont [8/16] %v1582, 128
      %1915 = vxpose.xlu0.b32.cont [9/16] %v1587, 128
      %1916 = vxpose.xlu0.b32.cont [10/16] %v1590, 128
      %1917 = vxpose.xlu0.b32.cont [11/16] %v1595, 128
      %1918 = vxpose.xlu0.b32.cont [12/16] %v1598, 128
      %1919 = vxpose.xlu0.b32.cont [13/16] %v1603, 128
      %1920 = vxpose.xlu0.b32.cont [14/16] %v1606, 128
      %1921 = vxpose.xlu0.b32.cont [15/16] %v1611, 128
      %1922 = vxpose.xlu0.b32.end [16/16] %v1614, 128
      %v1923 = vpop.trf.xlu0
      %v1924 = vpop.trf.xlu0
      %v1925 = vpop.trf.xlu0
      %v1926 = vpop.trf.xlu0
      %v1927 = vpop.trf.xlu0
      %v1928 = vpop.trf.xlu0
      %v1929 = vpop.trf.xlu0
      %v1930 = vpop.trf.xlu0
      %v1931 = vpop.trf.xlu0
      %v1932 = vpop.trf.xlu0
      %v1933 = vpop.trf.xlu0
      %v1934 = vpop.trf.xlu0
      %v1935 = vpop.trf.xlu0
      %v1936 = vpop.trf.xlu0
      %v1937 = vpop.trf.xlu0
      %v1938 = vpop.trf.xlu0
      %1939 = vxpose.xlu0.b32.start [1/16] %v1619, 128
      %1940 = vxpose.xlu0.b32.cont [2/16] %v1622, 128
      %1941 = vxpose.xlu0.b32.cont [3/16] %v1627, 128
      %1942 = vxpose.xlu0.b32.cont [4/16] %v1630, 128
      %1943 = vxpose.xlu0.b32.cont [5/16] %v1635, 128
      %1944 = vxpose.xlu0.b32.cont [6/16] %v1638, 128
      %1945 = vxpose.xlu0.b32.cont [7/16] %v1643, 128
      %1946 = vxpose.xlu0.b32.cont [8/16] %v1646, 128
      %1947 = vxpose.xlu0.b32.cont [9/16] %v1651, 128
      %1948 = vxpose.xlu0.b32.cont [10/16] %v1654, 128
      %1949 = vxpose.xlu0.b32.cont [11/16] %v1659, 128
      %1950 = vxpose.xlu0.b32.cont [12/16] %v1662, 128
      %1951 = vxpose.xlu0.b32.cont [13/16] %v1667, 128
      %1952 = vxpose.xlu0.b32.cont [14/16] %v1670, 128
      %1953 = vxpose.xlu0.b32.cont [15/16] %v1675, 128
      %1954 = vxpose.xlu0.b32.end [16/16] %v1678, 128
      %v1955 = vpop.trf.xlu0
      %v1956 = vpop.trf.xlu0
      %v1957 = vpop.trf.xlu0
      %v1958 = vpop.trf.xlu0
      %v1959 = vpop.trf.xlu0
      %v1960 = vpop.trf.xlu0
      %v1961 = vpop.trf.xlu0
      %v1962 = vpop.trf.xlu0
      %v1963 = vpop.trf.xlu0
      %v1964 = vpop.trf.xlu0
      %v1965 = vpop.trf.xlu0
      %v1966 = vpop.trf.xlu0
      %v1967 = vpop.trf.xlu0
      %v1968 = vpop.trf.xlu0
      %v1969 = vpop.trf.xlu0
      %v1970 = vpop.trf.xlu0
      %1971 = vmatprep.subr.mxu0 0.0
      %1972 = vmatpush1.msra.mxu0 %v1875
      %1973 = vmatprep.subr.mxu0 0.0
      %1974 = vmatpush1.msra.mxu0 %v1876
      %1975 = vmatprep.subr.mxu0 0.0
      %1976 = vmatpush1.msra.mxu0 %v1877
      %1977 = vmatprep.subr.mxu0 0.0
      %1978 = vmatpush1.msra.mxu0 %v1878
      %1979 = vmatprep.subr.mxu0 0.0
      %1980 = vmatpush1.msra.mxu0 %v1879
      %1981 = vmatprep.subr.mxu0 0.0
      %1982 = vmatpush1.msra.mxu0 %v1880
      %1983 = vmatprep.subr.mxu0 0.0
      %1984 = vmatpush1.msra.mxu0 %v1881
      %1985 = vmatprep.subr.mxu0 0.0
      %1986 = vmatpush1.msra.mxu0 %v1882
      %1987 = vmatprep.subr.mxu0 0.0
      %1988 = vmatpush1.msra.mxu0 %v1883
      %1989 = vmatprep.subr.mxu0 0.0
      %1990 = vmatpush1.msra.mxu0 %v1884
      %1991 = vmatprep.subr.mxu0 0.0
      %1992 = vmatpush1.msra.mxu0 %v1885
      %1993 = vmatprep.subr.mxu0 0.0
      %1994 = vmatpush1.msra.mxu0 %v1886
      %1995 = vmatprep.subr.mxu0 0.0
      %1996 = vmatpush1.msra.mxu0 %v1887
      %1997 = vmatprep.subr.mxu0 0.0
      %1998 = vmatpush1.msra.mxu0 %v1888
      %1999 = vmatprep.subr.mxu0 0.0
      %2000 = vmatpush1.msra.mxu0 %v1889
      %2001 = vmatprep.subr.mxu0 0.0
      %2002 = vmatpush1.msra.mxu0 %v1890
      %2003 = vmatprep.subr.mxu0 0.0
      %2004 = vmatpush1.msra.mxu0 %v1891
      %2005 = vmatprep.subr.mxu0 0.0
      %2006 = vmatpush1.msra.mxu0 %v1892
      %2007 = vmatprep.subr.mxu0 0.0
      %2008 = vmatpush1.msra.mxu0 %v1893
      %2009 = vmatprep.subr.mxu0 0.0
      %2010 = vmatpush1.msra.mxu0 %v1894
      %2011 = vmatprep.subr.mxu0 0.0
      %2012 = vmatpush1.msra.mxu0 %v1895
      %2013 = vmatprep.subr.mxu0 0.0
      %2014 = vmatpush1.msra.mxu0 %v1896
      %2015 = vmatprep.subr.mxu0 0.0
      %2016 = vmatpush1.msra.mxu0 %v1897
      %2017 = vmatprep.subr.mxu0 0.0
      %2018 = vmatpush1.msra.mxu0 %v1898
      %2019 = vmatprep.subr.mxu0 0.0
      %2020 = vmatpush1.msra.mxu0 %v1899
      %2021 = vmatprep.subr.mxu0 0.0
      %2022 = vmatpush1.msra.mxu0 %v1900
      %2023 = vmatprep.subr.mxu0 0.0
      %2024 = vmatpush1.msra.mxu0 %v1901
      %2025 = vmatprep.subr.mxu0 0.0
      %2026 = vmatpush1.msra.mxu0 %v1902
      %2027 = vmatprep.subr.mxu0 0.0
      %2028 = vmatpush1.msra.mxu0 %v1903
      %2029 = vmatprep.subr.mxu0 0.0
      %2030 = vmatpush1.msra.mxu0 %v1904
      %2031 = vmatprep.subr.mxu0 0.0
      %2032 = vmatpush1.msra.mxu0 %v1905
      %2033 = vmatprep.subr.mxu0 0.0
      %2034 = vmatpush1.msra.mxu0 %v1906
      %2035 = vmatprep.mubr.f32.mxu0 %v1955
      %2036 = vmatmul.mubr.f32.gmra.mrb[0].mxu0 %v1923
      %v2037 = vpop.f32.mrb[0].mxu0
      %v2038 = vadd.f32 0.0, %v2037
      %v2039 = vpop.f32.mrb[0].mxu0
      %2040 = vmatprep.mubr.f32.mxu0 %v1956
      %2041 = vmatmul.mubr.f32.gmra.mrb[0].mxu0 %v1924
      %v2042 = vpop.f32.mrb[0].mxu0
      %v2043 = vadd.f32 0.0, %v2042
      %v2044 = vpop.f32.mrb[0].mxu0
      %2045 = vmatprep.mubr.f32.mxu0 %v1957
      %2046 = vmatmul.mubr.f32.gmra.mrb[0].mxu0 %v1925
      %v2047 = vpop.f32.mrb[0].mxu0
      %v2048 = vadd.f32 0.0, %v2047
      %v2049 = vpop.f32.mrb[0].mxu0
      %2050 = vmatprep.mubr.f32.mxu0 %v1958
      %2051 = vmatmul.mubr.f32.gmra.mrb[0].mxu0 %v1926
      %v2052 = vpop.f32.mrb[0].mxu0
      %v2053 = vadd.f32 0.0, %v2052
      %v2054 = vpop.f32.mrb[0].mxu0
      %2055 = vmatprep.mubr.f32.mxu0 %v1959
      %2056 = vmatmul.mubr.f32.gmra.mrb[0].mxu0 %v1927
      %v2057 = vpop.f32.mrb[0].mxu0
      %v2058 = vadd.f32 0.0, %v2057
      %v2059 = vpop.f32.mrb[0].mxu0
      %2060 = vmatprep.mubr.f32.mxu0 %v1960
      %2061 = vmatmul.mubr.f32.gmra.mrb[0].mxu0 %v1928
      %v2062 = vpop.f32.mrb[0].mxu0
      %v2063 = vadd.f32 0.0, %v2062
      %v2064 = vpop.f32.mrb[0].mxu0
      %2065 = vmatprep.mubr.f32.mxu0 %v1961
      %2066 = vmatmul.mubr.f32.gmra.mrb[0].mxu0 %v1929
      %v2067 = vpop.f32.mrb[0].mxu0
      %v2068 = vadd.f32 0.0, %v2067
      %v2069 = vpop.f32.mrb[0].mxu0
      %2070 = vmatprep.mubr.f32.mxu0 %v1962
      %2071 = vmatmul.mubr.f32.gmra.mrb[0].mxu0 %v1930
      %v2072 = vpop.f32.mrb[0].mxu0
      %v2073 = vadd.f32 0.0, %v2072
      %v2074 = vpop.f32.mrb[0].mxu0
      %2075 = vmatprep.mubr.f32.mxu0 %v1963
      %2076 = vmatmul.mubr.f32.gmra.mrb[0].mxu0 %v1931
      %v2077 = vpop.f32.mrb[0].mxu0
      %v2078 = vadd.f32 0.0, %v2077
      %v2079 = vpop.f32.mrb[0].mxu0
      %2080 = vmatprep.mubr.f32.mxu0 %v1964
      %2081 = vmatmul.mubr.f32.gmra.mrb[0].mxu0 %v1932
      %v2082 = vpop.f32.mrb[0].mxu0
      %v2083 = vadd.f32 0.0, %v2082
      %v2084 = vpop.f32.mrb[0].mxu0
      %2085 = vmatprep.mubr.f32.mxu0 %v1965
      %2086 = vmatmul.mubr.f32.gmra.mrb[0].mxu0 %v1933
      %v2087 = vpop.f32.mrb[0].mxu0
      %v2088 = vadd.f32 0.0, %v2087
      %v2089 = vpop.f32.mrb[0].mxu0
      %2090 = vmatprep.mubr.f32.mxu0 %v1966
      %2091 = vmatmul.mubr.f32.gmra.mrb[0].mxu0 %v1934
      %v2092 = vpop.f32.mrb[0].mxu0
      %v2093 = vadd.f32 0.0, %v2092
      %v2094 = vpop.f32.mrb[0].mxu0
      %2095 = vmatprep.mubr.f32.mxu0 %v1967
      %2096 = vmatmul.mubr.f32.gmra.mrb[0].mxu0 %v1935
      %v2097 = vpop.f32.mrb[0].mxu0
      %v2098 = vadd.f32 0.0, %v2097
      %v2099 = vpop.f32.mrb[0].mxu0
      %2100 = vmatprep.mubr.f32.mxu0 %v1968
      %2101 = vmatmul.mubr.f32.gmra.mrb[0].mxu0 %v1936
      %v2102 = vpop.f32.mrb[0].mxu0
      %v2103 = vadd.f32 0.0, %v2102
      %v2104 = vpop.f32.mrb[0].mxu0
      %2105 = vmatprep.mubr.f32.mxu0 %v1969
      %2106 = vmatmul.mubr.f32.gmra.mrb[0].mxu0 %v1937
      %v2107 = vpop.f32.mrb[0].mxu0
      %v2108 = vadd.f32 0.0, %v2107
      %v2109 = vpop.f32.mrb[0].mxu0
      %2110 = vmatprep.mubr.f32.mxu0 %v1970
      %2111 = vmatmul.mubr.f32.gmra.mrb[0].mxu0 %v1938
      %v2112 = vpop.f32.mrb[0].mxu0
      %v2113 = vadd.f32 0.0, %v2112
      %v2114 = vpop.f32.mrb[0].mxu0
      %2115 = vdwg.mxu0
      %v2116 = vld [vmem:[%s355] sm:$0xff]
      %v2117 = vld [vmem:[%s355 + $0x8] sm:$0xff]
      %v2118 = vld [vmem:[%s355 + $0x10] sm:$0xff]
      %v2119 = vld [vmem:[%s355 + $0x18] sm:$0xff]
      %v2120 = vld [vmem:[%s355 + $0x20] sm:$0xff]
      %v2121 = vld [vmem:[%s355 + $0x28] sm:$0xff]
      %v2122 = vld [vmem:[%s355 + $0x30] sm:$0xff]
      %v2123 = vld [vmem:[%s355 + $0x38] sm:$0xff]
      %v2124 = vld [vmem:[%s355 + $0x40] sm:$0xff]
      %v2125 = vld [vmem:[%s355 + $0x48] sm:$0xff]
      %v2126 = vld [vmem:[%s355 + $0x50] sm:$0xff]
      %v2127 = vld [vmem:[%s355 + $0x58] sm:$0xff]
      %v2128 = vld [vmem:[%s355 + $0x60] sm:$0xff]
      %v2129 = vld [vmem:[%s355 + $0x68] sm:$0xff]
      %v2130 = vld [vmem:[%s355 + $0x70] sm:$0xff]
      %v2131 = vld [vmem:[%s355 + $0x78] sm:$0xff]
      %v2132 = vadd.f32 %v2116, %v2038
      %v2133 = vadd.f32 %v2117, %v2043
      %v2134 = vadd.f32 %v2118, %v2048
      %v2135 = vadd.f32 %v2119, %v2053
      %v2136 = vadd.f32 %v2120, %v2058
      %v2137 = vadd.f32 %v2121, %v2063
      %v2138 = vadd.f32 %v2122, %v2068
      %v2139 = vadd.f32 %v2123, %v2073
      %v2140 = vadd.f32 %v2124, %v2078
      %v2141 = vadd.f32 %v2125, %v2083
      %v2142 = vadd.f32 %v2126, %v2088
      %v2143 = vadd.f32 %v2127, %v2093
      %v2144 = vadd.f32 %v2128, %v2098
      %v2145 = vadd.f32 %v2129, %v2103
      %v2146 = vadd.f32 %v2130, %v2108
      %v2147 = vadd.f32 %v2131, %v2113
      %2148 = vst [vmem:[%s355] sm:$0xff] %v2132
      %2149 = vst [vmem:[%s355 + $0x8] sm:$0xff] %v2133
      %2150 = vst [vmem:[%s355 + $0x10] sm:$0xff] %v2134
      %2151 = vst [vmem:[%s355 + $0x18] sm:$0xff] %v2135
      %2152 = vst [vmem:[%s355 + $0x20] sm:$0xff] %v2136
      %2153 = vst [vmem:[%s355 + $0x28] sm:$0xff] %v2137
      %2154 = vst [vmem:[%s355 + $0x30] sm:$0xff] %v2138
      %2155 = vst [vmem:[%s355 + $0x38] sm:$0xff] %v2139
      %2156 = vst [vmem:[%s355 + $0x40] sm:$0xff] %v2140
      %2157 = vst [vmem:[%s355 + $0x48] sm:$0xff] %v2141
      %2158 = vst [vmem:[%s355 + $0x50] sm:$0xff] %v2142
      %2159 = vst [vmem:[%s355 + $0x58] sm:$0xff] %v2143
      %2160 = vst [vmem:[%s355 + $0x60] sm:$0xff] %v2144
      %2161 = vst [vmem:[%s355 + $0x68] sm:$0xff] %v2145
      %2162 = vst [vmem:[%s355 + $0x70] sm:$0xff] %v2146
      %2163 = vst [vmem:[%s355 + $0x78] sm:$0xff] %v2147
      %p2164 = scmp.lt.s32.totalorder %s23, 1
      %s2165 = scalar_select %p2164, %s23, 1
      %s2166 = smul.addr %s2165, 16
      %s2167 = smul.addr %s2166, 8
      %s2168 = scalar_lea.vmem %s8, %s2167
      // Predicated region
      $region57: #{qgnn_rot_perminv_layer.2} parent=51 // pred_check
        %p2169 = pneg %p231
      $region58: #{qgnn_rot_perminv_layer.2} parent=51 // pred_check_branch
        %2171 = sbr.rel (%p2169) target = $region60
      $region59: #{qgnn_rot_perminv_layer.2} parent=51 // pred_region
        _
      $region60: #{qgnn_rot_perminv_layer.2} parent=51 // pred_fallthru
        _
    $region52: #{qgnn_rot_perminv_layer.2} parent=5 // pred_fallthru
      _
    %p2172 = scmp.le.s32.totalorder 2, %s14
    // Predicated region
    $region61: #{qgnn_rot_perminv_layer.2} parent=5 // pred_check
      %p2173 = pneg %p2172
    $region62: #{qgnn_rot_perminv_layer.2} parent=5 // pred_check_branch
      %2175 = sbr.rel (%p2173) target = $region64
    $region63: #{qgnn_rot_perminv_layer.2} parent=5 // pred_region
      %s2176 = ssub.s32 %s14, 2
      // Predicated region
      $region65: #{qgnn_rot_perminv_layer.2} parent=63 // pred_check
        %p2177 = pneg %p237
      $region66: #{qgnn_rot_perminv_layer.2} parent=63 // pred_check_branch
        %2179 = sbr.rel (%p2177) target = $region68
      $region67: #{qgnn_rot_perminv_layer.2} parent=63 // pred_region
        %p2180 = scmp.lt.s32.totalorder %s25, 1
        %s2181 = scalar_select %p2180, %s25, 1
        %s2182 = smul.addr %s2181, 16
        %s2183 = smul.addr %s2182, 8
        %s2184 = scalar_lea.vmem %s8, %s2183
      $region68: #{qgnn_rot_perminv_layer.2} parent=63 // pred_fallthru
        _
    $region64: #{qgnn_rot_perminv_layer.2} parent=5 // pred_fallthru
      _
  $region6: #{qgnn_rot_perminv_layer.2} parent=0 // loop_footer
    %s18 = sadd.s32 1, %s14
  $region7: #{qgnn_rot_perminv_layer.2} parent=0 // loop_footer_branch
    %13 = sbr.rel target = $region3
  $region8: #{qgnn_rot_perminv_layer.2} parent=0 // loop_exit
    _

// kernel: qgnn_rot_perminv_layer.3
$region0: #{qgnn_rot_perminv_layer.3}
  #allocation0 [shape = 'u32[]', space=smem, size = 0x4, offset = 0x4, fixed_abs, tag = 'smem constant byte address 0x4 - core index']
  #allocation1 [shape = 'u32[144,128]{1,0:T(1,128)}', space=vmem, size = 0x12000, scoped, tag = 'internal scratch']
  %s0 = inlined_call_operand.vmem [shape: f32[4,4,128], index: 0, kind: input, shape index: {}]
  %s1 = inlined_call_operand.vmem [shape: f32[4,4,128], index: 1, kind: input, shape index: {}]
  %s2 = inlined_call_operand.vmem [shape: f32[1,128], index: 2, kind: input, shape index: {}]
  %s3 = inlined_call_operand.vmem [shape: f32[4,4,128], index: 3, kind: input, shape index: {}]
  %s4 = inlined_call_operand.hbm [shape: f32[4,4,128], index: 4, kind: output, shape index: {}]
  %s5 = sld [smem:[#allocation0]]
  $region26: #{qgnn_rot_perminv_layer.3} parent=0
    _
  %s7 = ssub.s32 1, %s5
  %s8 = scalar_select 0, %s7, %s5
  $region1: #{qgnn_rot_perminv_layer.3} parent=0
    #allocation2 [shape = 'u8[8192]{0}', space=vmem, size = 0x2000, scoped, tag = 'output window, operand 0, single buffered']
    #allocation3 [shape = 's32[1]{0}', space=sflag, size = 0x4, scoped, tag = 'scoped memory for qgnn_rot_perminv_layer.3']
    %9 = vsyncpa [#allocation3], 0
    // Predicated region
    $region2: #{qgnn_rot_perminv_layer.3} parent=1 // pred_check
      _
    $region3: #{qgnn_rot_perminv_layer.3} parent=1 // pred_check_branch
      %11 = sbr.rel (0) target = $region5
    $region4: #{qgnn_rot_perminv_layer.3} parent=1 // pred_region
      _
    $region5: #{qgnn_rot_perminv_layer.3} parent=1 // pred_fallthru
      _
    // Predicated region
    $region6: #{qgnn_rot_perminv_layer.3} parent=1 // pred_check
      _
    $region7: #{qgnn_rot_perminv_layer.3} parent=1 // pred_check_branch
      %13 = sbr.rel (0) target = $region9
    $region8: #{qgnn_rot_perminv_layer.3} parent=1 // pred_region
      _
    $region9: #{qgnn_rot_perminv_layer.3} parent=1 // pred_fallthru
      _
    // Predicated region
    $region10: #{qgnn_rot_perminv_layer.3} parent=1 // pred_check
      _
    $region11: #{qgnn_rot_perminv_layer.3} parent=1 // pred_check_branch
      %15 = sbr.rel (0) target = $region13
    $region12: #{qgnn_rot_perminv_layer.3} parent=1 // pred_region
      _
    $region13: #{qgnn_rot_perminv_layer.3} parent=1 // pred_fallthru
      _
    // Predicated region
    $region14: #{qgnn_rot_perminv_layer.3} parent=1 // pred_check
      _
    $region15: #{qgnn_rot_perminv_layer.3} parent=1 // pred_check_branch
      %17 = sbr.rel (0) target = $region17
    $region16: #{qgnn_rot_perminv_layer.3} parent=1 // pred_region
      _
    $region17: #{qgnn_rot_perminv_layer.3} parent=1 // pred_fallthru
      _
    %v18 = vld [vmem:[%s0] sm:$0xf]
    %v19 = vld [vmem:[%s0 + $0x4] sm:$0xf]
    %v20 = vld [vmem:[%s0 + $0x8] sm:$0xf]
    %v21 = vld [vmem:[%s0 + $0xc] sm:$0xf]
    %v22 = vld [vmem:[%s1] sm:$0xf]
    %v23 = vld [vmem:[%s1 + $0x4] sm:$0xf]
    %v24 = vld [vmem:[%s1 + $0x8] sm:$0xf]
    %v25 = vld [vmem:[%s1 + $0xc] sm:$0xf]
    %v26 = vld [vmem:[%s2] sm:$0x1]
    %v27 = vmax.f32 %v26, 1.0
    %v29 = vlaneseq
    %v30 = vshrl.u32 %v29, 7
    %v31 = vsub.s32 0, %v30
    %v32 = vrot.slane %v27, %v31
    %v34 = vrcp.pop %v32
    %v35 = vmul.f32 %v18, %v34
    %v36 = vmul.f32 %v19, %v34
    %v37 = vmul.f32 %v20, %v34
    %v38 = vmul.f32 %v21, %v34
    %v39 = vmul.f32 %v22, %v34
    %v40 = vmul.f32 %v23, %v34
    %v41 = vmul.f32 %v24, %v34
    %v42 = vmul.f32 %v25, %v34
    %v43 = vlaneseq
    %v44 = vshrl.u32 %v43, 7
    %vm45 = vcmp.eq.s32.totalorder %v44, 0
    %v46 = vsel %vm45, 1, 0
    %v47 = vcvt.s32.f32 %v46
    %vm48 = vcmp.eq.s32.totalorder %v44, 1
    %v49 = vsel %vm48, 1, 0
    %v50 = vcvt.s32.f32 %v49
    %vm51 = vcmp.eq.s32.totalorder %v44, 2
    %v52 = vsel %vm51, 1, 0
    %v53 = vcvt.s32.f32 %v52
    %vm54 = vcmp.eq.s32.totalorder %v44, 3
    %v55 = vsel %vm54, 1, 0
    %v56 = vcvt.s32.f32 %v55
    %v57 = vand.u32 2147483647, %v35
    %v58 = vand.u32 2147483647, %v36
    %v59 = vand.u32 2147483647, %v37
    %v60 = vand.u32 2147483647, %v38
    %vm61 = vcmask 1043456
    %v62 = vsel %vm61, %v57, 0.0
    %v63 = vsel %vm61, %v58, 0.0
    %v64 = vadd.f32 %v62, %v63
    %v65 = vsel %vm61, %v59, 0.0
    %v66 = vadd.f32 %v64, %v65
    %v67 = vsel %vm61, %v60, 0.0
    %v68 = vadd.f32 %v66, %v67
    %v69 = vsel %vm61, %v68, 0.0
    %v70 = vrot.slane %v69, 4
    %v71 = vadd.f32 %v69, %v70
    %v72 = vrot.slane %v71, 2
    %v73 = vadd.f32 %v71, %v72
    %v74 = vrot.slane %v73, 1
    %v75 = vadd.f32 %v73, %v74
    %vm76 = vcmp.eq.f32.partialorder %v75, 0.0
    %v77 = vsel %vm76, 1, 0
    %vm78 = vcmp.eq.s32.totalorder %v77, 1
    %v79 = vsel %vm78, %v47, %v35
    %v80 = vsel %vm78, %v50, %v36
    %v81 = vsel %vm78, %v53, %v37
    %v82 = vsel %vm78, %v56, %v38
    %v83 = vsel %vm78, %v47, %v39
    %v84 = vsel %vm78, %v50, %v40
    %v85 = vsel %vm78, %v53, %v41
    %v86 = vsel %vm78, %v56, %v42
    %v87 = vsub.f32 %v79, %v83
    %v88 = vsub.f32 %v80, %v84
    %v89 = vsub.f32 %v81, %v85
    %v90 = vsub.f32 %v82, %v86
    %v91 = vmul.f32 %v87, 0.5
    %v92 = vmul.f32 %v88, 0.5
    %v93 = vmul.f32 %v89, 0.5
    %v94 = vmul.f32 %v90, 0.5
    %v95 = vmul.f32 %v91, 0.015625
    %v96 = vmul.f32 %v92, 0.015625
    %v97 = vmul.f32 %v93, 0.015625
    %v98 = vmul.f32 %v94, 0.015625
    %v99 = vmul.f32 %v95, 0.125
    %v100 = vmul.f32 %v96, 0.125
    %v101 = vmul.f32 %v97, 0.125
    %v102 = vmul.f32 %v98, 0.125
    %v103 = vadd.f32 %v47, %v99
    %v104 = vadd.f32 %v50, %v100
    %v105 = vadd.f32 %v53, %v101
    %v106 = vadd.f32 %v56, %v102
    %v107 = vlaneseq
    %v108 = vshrl.u32 %v107, 7
    %v109 = vsub.s32 0, %v108
    %v110 = vrot.slane %v95, %v109
    %v111 = vlaneseq
    %v112 = vshrl.u32 %v111, 7
    %v113 = vsub.s32 0, %v112
    %v114 = vrot.slane %v96, %v113
    %v115 = vlaneseq
    %v116 = vshrl.u32 %v115, 7
    %v117 = vsub.s32 0, %v116
    %v118 = vrot.slane %v97, %v117
    %v119 = vlaneseq
    %v120 = vshrl.u32 %v119, 7
    %v121 = vsub.s32 0, %v120
    %v122 = vrot.slane %v98, %v121
    %v123 = vmul.f32 %v110, %v103
    %v124 = vmul.f32 %v114, %v103
    %v125 = vmul.f32 %v118, %v103
    %v126 = vmul.f32 %v122, %v103
    %v127 = vlaneseq
    %v128 = vshrl.u32 %v127, 7
    %v129 = vsub.s32 1, %v128
    %v130 = vrot.slane %v95, %v129
    %v131 = vlaneseq
    %v132 = vshrl.u32 %v131, 7
    %v133 = vsub.s32 1, %v132
    %v134 = vrot.slane %v96, %v133
    %v135 = vlaneseq
    %v136 = vshrl.u32 %v135, 7
    %v137 = vsub.s32 1, %v136
    %v138 = vrot.slane %v97, %v137
    %v139 = vlaneseq
    %v140 = vshrl.u32 %v139, 7
    %v141 = vsub.s32 1, %v140
    %v142 = vrot.slane %v98, %v141
    %v143 = vmul.f32 %v130, %v104
    %v144 = vmul.f32 %v134, %v104
    %v145 = vmul.f32 %v138, %v104
    %v146 = vmul.f32 %v142, %v104
    %v147 = vadd.f32 %v123, %v143
    %v148 = vadd.f32 %v124, %v144
    %v149 = vadd.f32 %v125, %v145
    %v150 = vadd.f32 %v126, %v146
    %v151 = vlaneseq
    %v152 = vshrl.u32 %v151, 7
    %v153 = vsub.s32 2, %v152
    %v154 = vrot.slane %v95, %v153
    %v155 = vlaneseq
    %v156 = vshrl.u32 %v155, 7
    %v157 = vsub.s32 2, %v156
    %v158 = vrot.slane %v96, %v157
    %v159 = vlaneseq
    %v160 = vshrl.u32 %v159, 7
    %v161 = vsub.s32 2, %v160
    %v162 = vrot.slane %v97, %v161
    %v163 = vlaneseq
    %v164 = vshrl.u32 %v163, 7
    %v165 = vsub.s32 2, %v164
    %v166 = vrot.slane %v98, %v165
    %v167 = vmul.f32 %v154, %v105
    %v168 = vmul.f32 %v158, %v105
    %v169 = vmul.f32 %v162, %v105
    %v170 = vmul.f32 %v166, %v105
    %v171 = vadd.f32 %v147, %v167
    %v172 = vadd.f32 %v148, %v168
    %v173 = vadd.f32 %v149, %v169
    %v174 = vadd.f32 %v150, %v170
    %v175 = vlaneseq
    %v176 = vshrl.u32 %v175, 7
    %v177 = vsub.s32 3, %v176
    %v178 = vrot.slane %v95, %v177
    %v179 = vlaneseq
    %v180 = vshrl.u32 %v179, 7
    %v181 = vsub.s32 3, %v180
    %v182 = vrot.slane %v96, %v181
    %v183 = vlaneseq
    %v184 = vshrl.u32 %v183, 7
    %v185 = vsub.s32 3, %v184
    %v186 = vrot.slane %v97, %v185
    %v187 = vlaneseq
    %v188 = vshrl.u32 %v187, 7
    %v189 = vsub.s32 3, %v188
    %v190 = vrot.slane %v98, %v189
    %v191 = vmul.f32 %v178, %v106
    %v192 = vmul.f32 %v182, %v106
    %v193 = vmul.f32 %v186, %v106
    %v194 = vmul.f32 %v190, %v106
    %v195 = vadd.f32 %v171, %v191
    %v196 = vadd.f32 %v172, %v192
    %v197 = vadd.f32 %v173, %v193
    %v198 = vadd.f32 %v174, %v194
    %v199 = vmul.f32 %v195, 0.14285715
    %v200 = vmul.f32 %v196, 0.14285715
    %v201 = vmul.f32 %v197, 0.14285715
    %v202 = vmul.f32 %v198, 0.14285715
    %v203 = vadd.f32 %v47, %v199
    %v204 = vadd.f32 %v50, %v200
    %v205 = vadd.f32 %v53, %v201
    %v206 = vadd.f32 %v56, %v202
    %v207 = vmul.f32 %v110, %v203
    %v208 = vmul.f32 %v114, %v203
    %v209 = vmul.f32 %v118, %v203
    %v210 = vmul.f32 %v122, %v203
    %v211 = vmul.f32 %v130, %v204
    %v212 = vmul.f32 %v134, %v204
    %v213 = vmul.f32 %v138, %v204
    %v214 = vmul.f32 %v142, %v204
    %v215 = vadd.f32 %v207, %v211
    %v216 = vadd.f32 %v208, %v212
    %v217 = vadd.f32 %v209, %v213
    %v218 = vadd.f32 %v210, %v214
    %v219 = vmul.f32 %v154, %v205
    %v220 = vmul.f32 %v158, %v205
    %v221 = vmul.f32 %v162, %v205
    %v222 = vmul.f32 %v166, %v205
    %v223 = vadd.f32 %v215, %v219
    %v224 = vadd.f32 %v216, %v220
    %v225 = vadd.f32 %v217, %v221
    %v226 = vadd.f32 %v218, %v222
    %v227 = vmul.f32 %v178, %v206
    %v228 = vmul.f32 %v182, %v206
    %v229 = vmul.f32 %v186, %v206
    %v230 = vmul.f32 %v190, %v206
    %v231 = vadd.f32 %v223, %v227
    %v232 = vadd.f32 %v224, %v228
    %v233 = vadd.f32 %v225, %v229
    %v234 = vadd.f32 %v226, %v230
    %v235 = vmul.f32 %v231, 0.16666667
    %v236 = vmul.f32 %v232, 0.16666667
    %v237 = vmul.f32 %v233, 0.16666667
    %v238 = vmul.f32 %v234, 0.16666667
    %v239 = vadd.f32 %v47, %v235
    %v240 = vadd.f32 %v50, %v236
    %v241 = vadd.f32 %v53, %v237
    %v242 = vadd.f32 %v56, %v238
    %v243 = vmul.f32 %v110, %v239
    %v244 = vmul.f32 %v114, %v239
    %v245 = vmul.f32 %v118, %v239
    %v246 = vmul.f32 %v122, %v239
    %v247 = vmul.f32 %v130, %v240
    %v248 = vmul.f32 %v134, %v240
    %v249 = vmul.f32 %v138, %v240
    %v250 = vmul.f32 %v142, %v240
    %v251 = vadd.f32 %v243, %v247
    %v252 = vadd.f32 %v244, %v248
    %v253 = vadd.f32 %v245, %v249
    %v254 = vadd.f32 %v246, %v250
    %v255 = vmul.f32 %v154, %v241
    %v256 = vmul.f32 %v158, %v241
    %v257 = vmul.f32 %v162, %v241
    %v258 = vmul.f32 %v166, %v241
    %v259 = vadd.f32 %v251, %v255
    %v260 = vadd.f32 %v252, %v256
    %v261 = vadd.f32 %v253, %v257
    %v262 = vadd.f32 %v254, %v258
    %v263 = vmul.f32 %v178, %v242
    %v264 = vmul.f32 %v182, %v242
    %v265 = vmul.f32 %v186, %v242
    %v266 = vmul.f32 %v190, %v242
    %v267 = vadd.f32 %v259, %v263
    %v268 = vadd.f32 %v260, %v264
    %v269 = vadd.f32 %v261, %v265
    %v270 = vadd.f32 %v262, %v266
    %v271 = vmul.f32 %v267, 0.2
    %v272 = vmul.f32 %v268, 0.2
    %v273 = vmul.f32 %v269, 0.2
    %v274 = vmul.f32 %v270, 0.2
    %v275 = vadd.f32 %v47, %v271
    %v276 = vadd.f32 %v50, %v272
    %v277 = vadd.f32 %v53, %v273
    %v278 = vadd.f32 %v56, %v274
    %v279 = vmul.f32 %v110, %v275
    %v280 = vmul.f32 %v114, %v275
    %v281 = vmul.f32 %v118, %v275
    %v282 = vmul.f32 %v122, %v275
    %v283 = vmul.f32 %v130, %v276
    %v284 = vmul.f32 %v134, %v276
    %v285 = vmul.f32 %v138, %v276
    %v286 = vmul.f32 %v142, %v276
    %v287 = vadd.f32 %v279, %v283
    %v288 = vadd.f32 %v280, %v284
    %v289 = vadd.f32 %v281, %v285
    %v290 = vadd.f32 %v282, %v286
    %v291 = vmul.f32 %v154, %v277
    %v292 = vmul.f32 %v158, %v277
    %v293 = vmul.f32 %v162, %v277
    %v294 = vmul.f32 %v166, %v277
    %v295 = vadd.f32 %v287, %v291
    %v296 = vadd.f32 %v288, %v292
    %v297 = vadd.f32 %v289, %v293
    %v298 = vadd.f32 %v290, %v294
    %v299 = vmul.f32 %v178, %v278
    %v300 = vmul.f32 %v182, %v278
    %v301 = vmul.f32 %v186, %v278
    %v302 = vmul.f32 %v190, %v278
    %v303 = vadd.f32 %v295, %v299
    %v304 = vadd.f32 %v296, %v300
    %v305 = vadd.f32 %v297, %v301
    %v306 = vadd.f32 %v298, %v302
    %v307 = vmul.f32 %v303, 0.25
    %v308 = vmul.f32 %v304, 0.25
    %v309 = vmul.f32 %v305, 0.25
    %v310 = vmul.f32 %v306, 0.25
    %v311 = vadd.f32 %v47, %v307
    %v312 = vadd.f32 %v50, %v308
    %v313 = vadd.f32 %v53, %v309
    %v314 = vadd.f32 %v56, %v310
    %v315 = vmul.f32 %v110, %v311
    %v316 = vmul.f32 %v114, %v311
    %v317 = vmul.f32 %v118, %v311
    %v318 = vmul.f32 %v122, %v311
    %v319 = vmul.f32 %v130, %v312
    %v320 = vmul.f32 %v134, %v312
    %v321 = vmul.f32 %v138, %v312
    %v322 = vmul.f32 %v142, %v312
    %v323 = vadd.f32 %v315, %v319
    %v324 = vadd.f32 %v316, %v320
    %v325 = vadd.f32 %v317, %v321
    %v326 = vadd.f32 %v318, %v322
    %v327 = vmul.f32 %v154, %v313
    %v328 = vmul.f32 %v158, %v313
    %v329 = vmul.f32 %v162, %v313
    %v330 = vmul.f32 %v166, %v313
    %v331 = vadd.f32 %v323, %v327
    %v332 = vadd.f32 %v324, %v328
    %v333 = vadd.f32 %v325, %v329
    %v334 = vadd.f32 %v326, %v330
    %v335 = vmul.f32 %v178, %v314
    %v336 = vmul.f32 %v182, %v314
    %v337 = vmul.f32 %v186, %v314
    %v338 = vmul.f32 %v190, %v314
    %v339 = vadd.f32 %v331, %v335
    %v340 = vadd.f32 %v332, %v336
    %v341 = vadd.f32 %v333, %v337
    %v342 = vadd.f32 %v334, %v338
    %v343 = vmul.f32 %v339, 0.33333334
    %v344 = vmul.f32 %v340, 0.33333334
    %v345 = vmul.f32 %v341, 0.33333334
    %v346 = vmul.f32 %v342, 0.33333334
    %v347 = vadd.f32 %v47, %v343
    %v348 = vadd.f32 %v50, %v344
    %v349 = vadd.f32 %v53, %v345
    %v350 = vadd.f32 %v56, %v346
    %v351 = vmul.f32 %v110, %v347
    %v352 = vmul.f32 %v114, %v347
    %v353 = vmul.f32 %v118, %v347
    %v354 = vmul.f32 %v122, %v347
    %v355 = vmul.f32 %v130, %v348
    %v356 = vmul.f32 %v134, %v348
    %v357 = vmul.f32 %v138, %v348
    %v358 = vmul.f32 %v142, %v348
    %v359 = vadd.f32 %v351, %v355
    %v360 = vadd.f32 %v352, %v356
    %v361 = vadd.f32 %v353, %v357
    %v362 = vadd.f32 %v354, %v358
    %v363 = vmul.f32 %v154, %v349
    %v364 = vmul.f32 %v158, %v349
    %v365 = vmul.f32 %v162, %v349
    %v366 = vmul.f32 %v166, %v349
    %v367 = vadd.f32 %v359, %v363
    %v368 = vadd.f32 %v360, %v364
    %v369 = vadd.f32 %v361, %v365
    %v370 = vadd.f32 %v362, %v366
    %v371 = vmul.f32 %v178, %v350
    %v372 = vmul.f32 %v182, %v350
    %v373 = vmul.f32 %v186, %v350
    %v374 = vmul.f32 %v190, %v350
    %v375 = vadd.f32 %v367, %v371
    %v376 = vadd.f32 %v368, %v372
    %v377 = vadd.f32 %v369, %v373
    %v378 = vadd.f32 %v370, %v374
    %v379 = vmul.f32 %v375, 0.5
    %v380 = vmul.f32 %v376, 0.5
    %v381 = vmul.f32 %v377, 0.5
    %v382 = vmul.f32 %v378, 0.5
    %v383 = vadd.f32 %v47, %v379
    %v384 = vadd.f32 %v50, %v380
    %v385 = vadd.f32 %v53, %v381
    %v386 = vadd.f32 %v56, %v382
    %v387 = vmul.f32 %v110, %v383
    %v388 = vmul.f32 %v114, %v383
    %v389 = vmul.f32 %v118, %v383
    %v390 = vmul.f32 %v122, %v383
    %v391 = vmul.f32 %v130, %v384
    %v392 = vmul.f32 %v134, %v384
    %v393 = vmul.f32 %v138, %v384
    %v394 = vmul.f32 %v142, %v384
    %v395 = vadd.f32 %v387, %v391
    %v396 = vadd.f32 %v388, %v392
    %v397 = vadd.f32 %v389, %v393
    %v398 = vadd.f32 %v390, %v394
    %v399 = vmul.f32 %v154, %v385
    %v400 = vmul.f32 %v158, %v385
    %v401 = vmul.f32 %v162, %v385
    %v402 = vmul.f32 %v166, %v385
    %v403 = vadd.f32 %v395, %v399
    %v404 = vadd.f32 %v396, %v400
    %v405 = vadd.f32 %v397, %v401
    %v406 = vadd.f32 %v398, %v402
    %v407 = vmul.f32 %v178, %v386
    %v408 = vmul.f32 %v182, %v386
    %v409 = vmul.f32 %v186, %v386
    %v410 = vmul.f32 %v190, %v386
    %v411 = vadd.f32 %v403, %v407
    %v412 = vadd.f32 %v404, %v408
    %v413 = vadd.f32 %v405, %v409
    %v414 = vadd.f32 %v406, %v410
    %v415 = vadd.f32 %v47, %v411
    %v416 = vadd.f32 %v50, %v412
    %v417 = vadd.f32 %v53, %v413
    %v418 = vadd.f32 %v56, %v414
    %v419 = vlaneseq
    %v420 = vshrl.u32 %v419, 7
    %v421 = vsub.s32 0, %v420
    %v422 = vrot.slane %v415, %v421
    %v423 = vlaneseq
    %v424 = vshrl.u32 %v423, 7
    %v425 = vsub.s32 0, %v424
    %v426 = vrot.slane %v416, %v425
    %v427 = vlaneseq
    %v428 = vshrl.u32 %v427, 7
    %v429 = vsub.s32 0, %v428
    %v430 = vrot.slane %v417, %v429
    %v431 = vlaneseq
    %v432 = vshrl.u32 %v431, 7
    %v433 = vsub.s32 0, %v432
    %v434 = vrot.slane %v418, %v433
    %v435 = vmul.f32 %v422, %v415
    %v436 = vmul.f32 %v426, %v415
    %v437 = vmul.f32 %v430, %v415
    %v438 = vmul.f32 %v434, %v415
    %v439 = vlaneseq
    %v440 = vshrl.u32 %v439, 7
    %v441 = vsub.s32 1, %v440
    %v442 = vrot.slane %v415, %v441
    %v443 = vlaneseq
    %v444 = vshrl.u32 %v443, 7
    %v445 = vsub.s32 1, %v444
    %v446 = vrot.slane %v416, %v445
    %v447 = vlaneseq
    %v448 = vshrl.u32 %v447, 7
    %v449 = vsub.s32 1, %v448
    %v450 = vrot.slane %v417, %v449
    %v451 = vlaneseq
    %v452 = vshrl.u32 %v451, 7
    %v453 = vsub.s32 1, %v452
    %v454 = vrot.slane %v418, %v453
    %v455 = vmul.f32 %v442, %v416
    %v456 = vmul.f32 %v446, %v416
    %v457 = vmul.f32 %v450, %v416
    %v458 = vmul.f32 %v454, %v416
    %v459 = vadd.f32 %v435, %v455
    %v460 = vadd.f32 %v436, %v456
    %v461 = vadd.f32 %v437, %v457
    %v462 = vadd.f32 %v438, %v458
    %v463 = vlaneseq
    %v464 = vshrl.u32 %v463, 7
    %v465 = vsub.s32 2, %v464
    %v466 = vrot.slane %v415, %v465
    %v467 = vlaneseq
    %v468 = vshrl.u32 %v467, 7
    %v469 = vsub.s32 2, %v468
    %v470 = vrot.slane %v416, %v469
    %v471 = vlaneseq
    %v472 = vshrl.u32 %v471, 7
    %v473 = vsub.s32 2, %v472
    %v474 = vrot.slane %v417, %v473
    %v475 = vlaneseq
    %v476 = vshrl.u32 %v475, 7
    %v477 = vsub.s32 2, %v476
    %v478 = vrot.slane %v418, %v477
    %v479 = vmul.f32 %v466, %v417
    %v480 = vmul.f32 %v470, %v417
    %v481 = vmul.f32 %v474, %v417
    %v482 = vmul.f32 %v478, %v417
    %v483 = vadd.f32 %v459, %v479
    %v484 = vadd.f32 %v460, %v480
    %v485 = vadd.f32 %v461, %v481
    %v486 = vadd.f32 %v462, %v482
    %v487 = vlaneseq
    %v488 = vshrl.u32 %v487, 7
    %v489 = vsub.s32 3, %v488
    %v490 = vrot.slane %v415, %v489
    %v491 = vlaneseq
    %v492 = vshrl.u32 %v491, 7
    %v493 = vsub.s32 3, %v492
    %v494 = vrot.slane %v416, %v493
    %v495 = vlaneseq
    %v496 = vshrl.u32 %v495, 7
    %v497 = vsub.s32 3, %v496
    %v498 = vrot.slane %v417, %v497
    %v499 = vlaneseq
    %v500 = vshrl.u32 %v499, 7
    %v501 = vsub.s32 3, %v500
    %v502 = vrot.slane %v418, %v501
    %v503 = vmul.f32 %v490, %v418
    %v504 = vmul.f32 %v494, %v418
    %v505 = vmul.f32 %v498, %v418
    %v506 = vmul.f32 %v502, %v418
    %v507 = vadd.f32 %v483, %v503
    %v508 = vadd.f32 %v484, %v504
    %v509 = vadd.f32 %v485, %v505
    %v510 = vadd.f32 %v486, %v506
    %v511 = vlaneseq
    %v512 = vshrl.u32 %v511, 7
    %v513 = vsub.s32 0, %v512
    %v514 = vrot.slane %v507, %v513
    %v515 = vlaneseq
    %v516 = vshrl.u32 %v515, 7
    %v517 = vsub.s32 0, %v516
    %v518 = vrot.slane %v508, %v517
    %v519 = vlaneseq
    %v520 = vshrl.u32 %v519, 7
    %v521 = vsub.s32 0, %v520
    %v522 = vrot.slane %v509, %v521
    %v523 = vlaneseq
    %v524 = vshrl.u32 %v523, 7
    %v525 = vsub.s32 0, %v524
    %v526 = vrot.slane %v510, %v525
    %v527 = vmul.f32 %v514, %v507
    %v528 = vmul.f32 %v518, %v507
    %v529 = vmul.f32 %v522, %v507
    %v530 = vmul.f32 %v526, %v507
    %v531 = vlaneseq
    %v532 = vshrl.u32 %v531, 7
    %v533 = vsub.s32 1, %v532
    %v534 = vrot.slane %v507, %v533
    %v535 = vlaneseq
    %v536 = vshrl.u32 %v535, 7
    %v537 = vsub.s32 1, %v536
    %v538 = vrot.slane %v508, %v537
    %v539 = vlaneseq
    %v540 = vshrl.u32 %v539, 7
    %v541 = vsub.s32 1, %v540
    %v542 = vrot.slane %v509, %v541
    %v543 = vlaneseq
    %v544 = vshrl.u32 %v543, 7
    %v545 = vsub.s32 1, %v544
    %v546 = vrot.slane %v510, %v545
    %v547 = vmul.f32 %v534, %v508
    %v548 = vmul.f32 %v538, %v508
    %v549 = vmul.f32 %v542, %v508
    %v550 = vmul.f32 %v546, %v508
    %v551 = vadd.f32 %v527, %v547
    %v552 = vadd.f32 %v528, %v548
    %v553 = vadd.f32 %v529, %v549
    %v554 = vadd.f32 %v530, %v550
    %v555 = vlaneseq
    %v556 = vshrl.u32 %v555, 7
    %v557 = vsub.s32 2, %v556
    %v558 = vrot.slane %v507, %v557
    %v559 = vlaneseq
    %v560 = vshrl.u32 %v559, 7
    %v561 = vsub.s32 2, %v560
    %v562 = vrot.slane %v508, %v561
    %v563 = vlaneseq
    %v564 = vshrl.u32 %v563, 7
    %v565 = vsub.s32 2, %v564
    %v566 = vrot.slane %v509, %v565
    %v567 = vlaneseq
    %v568 = vshrl.u32 %v567, 7
    %v569 = vsub.s32 2, %v568
    %v570 = vrot.slane %v510, %v569
    %v571 = vmul.f32 %v558, %v509
    %v572 = vmul.f32 %v562, %v509
    %v573 = vmul.f32 %v566, %v509
    %v574 = vmul.f32 %v570, %v509
    %v575 = vadd.f32 %v551, %v571
    %v576 = vadd.f32 %v552, %v572
    %v577 = vadd.f32 %v553, %v573
    %v578 = vadd.f32 %v554, %v574
    %v579 = vlaneseq
    %v580 = vshrl.u32 %v579, 7
    %v581 = vsub.s32 3, %v580
    %v582 = vrot.slane %v507, %v581
    %v583 = vlaneseq
    %v584 = vshrl.u32 %v583, 7
    %v585 = vsub.s32 3, %v584
    %v586 = vrot.slane %v508, %v585
    %v587 = vlaneseq
    %v588 = vshrl.u32 %v587, 7
    %v589 = vsub.s32 3, %v588
    %v590 = vrot.slane %v509, %v589
    %v591 = vlaneseq
    %v592 = vshrl.u32 %v591, 7
    %v593 = vsub.s32 3, %v592
    %v594 = vrot.slane %v510, %v593
    %v595 = vmul.f32 %v582, %v510
    %v596 = vmul.f32 %v586, %v510
    %v597 = vmul.f32 %v590, %v510
    %v598 = vmul.f32 %v594, %v510
    %v599 = vadd.f32 %v575, %v595
    %v600 = vadd.f32 %v576, %v596
    %v601 = vadd.f32 %v577, %v597
    %v602 = vadd.f32 %v578, %v598
    %v603 = vlaneseq
    %v604 = vshrl.u32 %v603, 7
    %v605 = vsub.s32 0, %v604
    %v606 = vrot.slane %v599, %v605
    %v607 = vlaneseq
    %v608 = vshrl.u32 %v607, 7
    %v609 = vsub.s32 0, %v608
    %v610 = vrot.slane %v600, %v609
    %v611 = vlaneseq
    %v612 = vshrl.u32 %v611, 7
    %v613 = vsub.s32 0, %v612
    %v614 = vrot.slane %v601, %v613
    %v615 = vlaneseq
    %v616 = vshrl.u32 %v615, 7
    %v617 = vsub.s32 0, %v616
    %v618 = vrot.slane %v602, %v617
    %v619 = vmul.f32 %v606, %v599
    %v620 = vmul.f32 %v610, %v599
    %v621 = vmul.f32 %v614, %v599
    %v622 = vmul.f32 %v618, %v599
    %v623 = vlaneseq
    %v624 = vshrl.u32 %v623, 7
    %v625 = vsub.s32 1, %v624
    %v626 = vrot.slane %v599, %v625
    %v627 = vlaneseq
    %v628 = vshrl.u32 %v627, 7
    %v629 = vsub.s32 1, %v628
    %v630 = vrot.slane %v600, %v629
    %v631 = vlaneseq
    %v632 = vshrl.u32 %v631, 7
    %v633 = vsub.s32 1, %v632
    %v634 = vrot.slane %v601, %v633
    %v635 = vlaneseq
    %v636 = vshrl.u32 %v635, 7
    %v637 = vsub.s32 1, %v636
    %v638 = vrot.slane %v602, %v637
    %v639 = vmul.f32 %v626, %v600
    %v640 = vmul.f32 %v630, %v600
    %v641 = vmul.f32 %v634, %v600
    %v642 = vmul.f32 %v638, %v600
    %v643 = vadd.f32 %v619, %v639
    %v644 = vadd.f32 %v620, %v640
    %v645 = vadd.f32 %v621, %v641
    %v646 = vadd.f32 %v622, %v642
    %v647 = vlaneseq
    %v648 = vshrl.u32 %v647, 7
    %v649 = vsub.s32 2, %v648
    %v650 = vrot.slane %v599, %v649
    %v651 = vlaneseq
    %v652 = vshrl.u32 %v651, 7
    %v653 = vsub.s32 2, %v652
    %v654 = vrot.slane %v600, %v653
    %v655 = vlaneseq
    %v656 = vshrl.u32 %v655, 7
    %v657 = vsub.s32 2, %v656
    %v658 = vrot.slane %v601, %v657
    %v659 = vlaneseq
    %v660 = vshrl.u32 %v659, 7
    %v661 = vsub.s32 2, %v660
    %v662 = vrot.slane %v602, %v661
    %v663 = vmul.f32 %v650, %v601
    %v664 = vmul.f32 %v654, %v601
    %v665 = vmul.f32 %v658, %v601
    %v666 = vmul.f32 %v662, %v601
    %v667 = vadd.f32 %v643, %v663
    %v668 = vadd.f32 %v644, %v664
    %v669 = vadd.f32 %v645, %v665
    %v670 = vadd.f32 %v646, %v666
    %v671 = vlaneseq
    %v672 = vshrl.u32 %v671, 7
    %v673 = vsub.s32 3, %v672
    %v674 = vrot.slane %v599, %v673
    %v675 = vlaneseq
    %v676 = vshrl.u32 %v675, 7
    %v677 = vsub.s32 3, %v676
    %v678 = vrot.slane %v600, %v677
    %v679 = vlaneseq
    %v680 = vshrl.u32 %v679, 7
    %v681 = vsub.s32 3, %v680
    %v682 = vrot.slane %v601, %v681
    %v683 = vlaneseq
    %v684 = vshrl.u32 %v683, 7
    %v685 = vsub.s32 3, %v684
    %v686 = vrot.slane %v602, %v685
    %v687 = vmul.f32 %v674, %v602
    %v688 = vmul.f32 %v678, %v602
    %v689 = vmul.f32 %v682, %v602
    %v690 = vmul.f32 %v686, %v602
    %v691 = vadd.f32 %v667, %v687
    %v692 = vadd.f32 %v668, %v688
    %v693 = vadd.f32 %v669, %v689
    %v694 = vadd.f32 %v670, %v690
    %v695 = vlaneseq
    %v696 = vshrl.u32 %v695, 7
    %v697 = vsub.s32 0, %v696
    %v698 = vrot.slane %v691, %v697
    %v699 = vlaneseq
    %v700 = vshrl.u32 %v699, 7
    %v701 = vsub.s32 0, %v700
    %v702 = vrot.slane %v692, %v701
    %v703 = vlaneseq
    %v704 = vshrl.u32 %v703, 7
    %v705 = vsub.s32 0, %v704
    %v706 = vrot.slane %v693, %v705
    %v707 = vlaneseq
    %v708 = vshrl.u32 %v707, 7
    %v709 = vsub.s32 0, %v708
    %v710 = vrot.slane %v694, %v709
    %v711 = vmul.f32 %v698, %v691
    %v712 = vmul.f32 %v702, %v691
    %v713 = vmul.f32 %v706, %v691
    %v714 = vmul.f32 %v710, %v691
    %v715 = vlaneseq
    %v716 = vshrl.u32 %v715, 7
    %v717 = vsub.s32 1, %v716
    %v718 = vrot.slane %v691, %v717
    %v719 = vlaneseq
    %v720 = vshrl.u32 %v719, 7
    %v721 = vsub.s32 1, %v720
    %v722 = vrot.slane %v692, %v721
    %v723 = vlaneseq
    %v724 = vshrl.u32 %v723, 7
    %v725 = vsub.s32 1, %v724
    %v726 = vrot.slane %v693, %v725
    %v727 = vlaneseq
    %v728 = vshrl.u32 %v727, 7
    %v729 = vsub.s32 1, %v728
    %v730 = vrot.slane %v694, %v729
    %v731 = vmul.f32 %v718, %v692
    %v732 = vmul.f32 %v722, %v692
    %v733 = vmul.f32 %v726, %v692
    %v734 = vmul.f32 %v730, %v692
    %v735 = vadd.f32 %v711, %v731
    %v736 = vadd.f32 %v712, %v732
    %v737 = vadd.f32 %v713, %v733
    %v738 = vadd.f32 %v714, %v734
    %v739 = vlaneseq
    %v740 = vshrl.u32 %v739, 7
    %v741 = vsub.s32 2, %v740
    %v742 = vrot.slane %v691, %v741
    %v743 = vlaneseq
    %v744 = vshrl.u32 %v743, 7
    %v745 = vsub.s32 2, %v744
    %v746 = vrot.slane %v692, %v745
    %v747 = vlaneseq
    %v748 = vshrl.u32 %v747, 7
    %v749 = vsub.s32 2, %v748
    %v750 = vrot.slane %v693, %v749
    %v751 = vlaneseq
    %v752 = vshrl.u32 %v751, 7
    %v753 = vsub.s32 2, %v752
    %v754 = vrot.slane %v694, %v753
    %v755 = vmul.f32 %v742, %v693
    %v756 = vmul.f32 %v746, %v693
    %v757 = vmul.f32 %v750, %v693
    %v758 = vmul.f32 %v754, %v693
    %v759 = vadd.f32 %v735, %v755
    %v760 = vadd.f32 %v736, %v756
    %v761 = vadd.f32 %v737, %v757
    %v762 = vadd.f32 %v738, %v758
    %v763 = vlaneseq
    %v764 = vshrl.u32 %v763, 7
    %v765 = vsub.s32 3, %v764
    %v766 = vrot.slane %v691, %v765
    %v767 = vlaneseq
    %v768 = vshrl.u32 %v767, 7
    %v769 = vsub.s32 3, %v768
    %v770 = vrot.slane %v692, %v769
    %v771 = vlaneseq
    %v772 = vshrl.u32 %v771, 7
    %v773 = vsub.s32 3, %v772
    %v774 = vrot.slane %v693, %v773
    %v775 = vlaneseq
    %v776 = vshrl.u32 %v775, 7
    %v777 = vsub.s32 3, %v776
    %v778 = vrot.slane %v694, %v777
    %v779 = vmul.f32 %v766, %v694
    %v780 = vmul.f32 %v770, %v694
    %v781 = vmul.f32 %v774, %v694
    %v782 = vmul.f32 %v778, %v694
    %v783 = vadd.f32 %v759, %v779
    %v784 = vadd.f32 %v760, %v780
    %v785 = vadd.f32 %v761, %v781
    %v786 = vadd.f32 %v762, %v782
    %v787 = vlaneseq
    %v788 = vshrl.u32 %v787, 7
    %v789 = vsub.s32 0, %v788
    %v790 = vrot.slane %v783, %v789
    %v791 = vlaneseq
    %v792 = vshrl.u32 %v791, 7
    %v793 = vsub.s32 0, %v792
    %v794 = vrot.slane %v784, %v793
    %v795 = vlaneseq
    %v796 = vshrl.u32 %v795, 7
    %v797 = vsub.s32 0, %v796
    %v798 = vrot.slane %v785, %v797
    %v799 = vlaneseq
    %v800 = vshrl.u32 %v799, 7
    %v801 = vsub.s32 0, %v800
    %v802 = vrot.slane %v786, %v801
    %v803 = vmul.f32 %v790, %v783
    %v804 = vmul.f32 %v794, %v783
    %v805 = vmul.f32 %v798, %v783
    %v806 = vmul.f32 %v802, %v783
    %v807 = vlaneseq
    %v808 = vshrl.u32 %v807, 7
    %v809 = vsub.s32 1, %v808
    %v810 = vrot.slane %v783, %v809
    %v811 = vlaneseq
    %v812 = vshrl.u32 %v811, 7
    %v813 = vsub.s32 1, %v812
    %v814 = vrot.slane %v784, %v813
    %v815 = vlaneseq
    %v816 = vshrl.u32 %v815, 7
    %v817 = vsub.s32 1, %v816
    %v818 = vrot.slane %v785, %v817
    %v819 = vlaneseq
    %v820 = vshrl.u32 %v819, 7
    %v821 = vsub.s32 1, %v820
    %v822 = vrot.slane %v786, %v821
    %v823 = vmul.f32 %v810, %v784
    %v824 = vmul.f32 %v814, %v784
    %v825 = vmul.f32 %v818, %v784
    %v826 = vmul.f32 %v822, %v784
    %v827 = vadd.f32 %v803, %v823
    %v828 = vadd.f32 %v804, %v824
    %v829 = vadd.f32 %v805, %v825
    %v830 = vadd.f32 %v806, %v826
    %v831 = vlaneseq
    %v832 = vshrl.u32 %v831, 7
    %v833 = vsub.s32 2, %v832
    %v834 = vrot.slane %v783, %v833
    %v835 = vlaneseq
    %v836 = vshrl.u32 %v835, 7
    %v837 = vsub.s32 2, %v836
    %v838 = vrot.slane %v784, %v837
    %v839 = vlaneseq
    %v840 = vshrl.u32 %v839, 7
    %v841 = vsub.s32 2, %v840
    %v842 = vrot.slane %v785, %v841
    %v843 = vlaneseq
    %v844 = vshrl.u32 %v843, 7
    %v845 = vsub.s32 2, %v844
    %v846 = vrot.slane %v786, %v845
    %v847 = vmul.f32 %v834, %v785
    %v848 = vmul.f32 %v838, %v785
    %v849 = vmul.f32 %v842, %v785
    %v850 = vmul.f32 %v846, %v785
    %v851 = vadd.f32 %v827, %v847
    %v852 = vadd.f32 %v828, %v848
    %v853 = vadd.f32 %v829, %v849
    %v854 = vadd.f32 %v830, %v850
    %v855 = vlaneseq
    %v856 = vshrl.u32 %v855, 7
    %v857 = vsub.s32 3, %v856
    %v858 = vrot.slane %v783, %v857
    %v859 = vlaneseq
    %v860 = vshrl.u32 %v859, 7
    %v861 = vsub.s32 3, %v860
    %v862 = vrot.slane %v784, %v861
    %v863 = vlaneseq
    %v864 = vshrl.u32 %v863, 7
    %v865 = vsub.s32 3, %v864
    %v866 = vrot.slane %v785, %v865
    %v867 = vlaneseq
    %v868 = vshrl.u32 %v867, 7
    %v869 = vsub.s32 3, %v868
    %v870 = vrot.slane %v786, %v869
    %v871 = vmul.f32 %v858, %v786
    %v872 = vmul.f32 %v862, %v786
    %v873 = vmul.f32 %v866, %v786
    %v874 = vmul.f32 %v870, %v786
    %v875 = vadd.f32 %v851, %v871
    %v876 = vadd.f32 %v852, %v872
    %v877 = vadd.f32 %v853, %v873
    %v878 = vadd.f32 %v854, %v874
    %v879 = vlaneseq
    %v880 = vshrl.u32 %v879, 7
    %v881 = vsub.s32 0, %v880
    %v882 = vrot.slane %v875, %v881
    %v883 = vlaneseq
    %v884 = vshrl.u32 %v883, 7
    %v885 = vsub.s32 0, %v884
    %v886 = vrot.slane %v876, %v885
    %v887 = vlaneseq
    %v888 = vshrl.u32 %v887, 7
    %v889 = vsub.s32 0, %v888
    %v890 = vrot.slane %v877, %v889
    %v891 = vlaneseq
    %v892 = vshrl.u32 %v891, 7
    %v893 = vsub.s32 0, %v892
    %v894 = vrot.slane %v878, %v893
    %v895 = vmul.f32 %v882, %v875
    %v896 = vmul.f32 %v886, %v875
    %v897 = vmul.f32 %v890, %v875
    %v898 = vmul.f32 %v894, %v875
    %v899 = vlaneseq
    %v900 = vshrl.u32 %v899, 7
    %v901 = vsub.s32 1, %v900
    %v902 = vrot.slane %v875, %v901
    %v903 = vlaneseq
    %v904 = vshrl.u32 %v903, 7
    %v905 = vsub.s32 1, %v904
    %v906 = vrot.slane %v876, %v905
    %v907 = vlaneseq
    %v908 = vshrl.u32 %v907, 7
    %v909 = vsub.s32 1, %v908
    %v910 = vrot.slane %v877, %v909
    %v911 = vlaneseq
    %v912 = vshrl.u32 %v911, 7
    %v913 = vsub.s32 1, %v912
    %v914 = vrot.slane %v878, %v913
    %v915 = vmul.f32 %v902, %v876
    %v916 = vmul.f32 %v906, %v876
    %v917 = vmul.f32 %v910, %v876
    %v918 = vmul.f32 %v914, %v876
    %v919 = vadd.f32 %v895, %v915
    %v920 = vadd.f32 %v896, %v916
    %v921 = vadd.f32 %v897, %v917
    %v922 = vadd.f32 %v898, %v918
    %v923 = vlaneseq
    %v924 = vshrl.u32 %v923, 7
    %v925 = vsub.s32 2, %v924
    %v926 = vrot.slane %v875, %v925
    %v927 = vlaneseq
    %v928 = vshrl.u32 %v927, 7
    %v929 = vsub.s32 2, %v928
    %v930 = vrot.slane %v876, %v929
    %v931 = vlaneseq
    %v932 = vshrl.u32 %v931, 7
    %v933 = vsub.s32 2, %v932
    %v934 = vrot.slane %v877, %v933
    %v935 = vlaneseq
    %v936 = vshrl.u32 %v935, 7
    %v937 = vsub.s32 2, %v936
    %v938 = vrot.slane %v878, %v937
    %v939 = vmul.f32 %v926, %v877
    %v940 = vmul.f32 %v930, %v877
    %v941 = vmul.f32 %v934, %v877
    %v942 = vmul.f32 %v938, %v877
    %v943 = vadd.f32 %v919, %v939
    %v944 = vadd.f32 %v920, %v940
    %v945 = vadd.f32 %v921, %v941
    %v946 = vadd.f32 %v922, %v942
    %v947 = vlaneseq
    %v948 = vshrl.u32 %v947, 7
    %v949 = vsub.s32 3, %v948
    %v950 = vrot.slane %v875, %v949
    %v951 = vlaneseq
    %v952 = vshrl.u32 %v951, 7
    %v953 = vsub.s32 3, %v952
    %v954 = vrot.slane %v876, %v953
    %v955 = vlaneseq
    %v956 = vshrl.u32 %v955, 7
    %v957 = vsub.s32 3, %v956
    %v958 = vrot.slane %v877, %v957
    %v959 = vlaneseq
    %v960 = vshrl.u32 %v959, 7
    %v961 = vsub.s32 3, %v960
    %v962 = vrot.slane %v878, %v961
    %v963 = vmul.f32 %v950, %v878
    %v964 = vmul.f32 %v954, %v878
    %v965 = vmul.f32 %v958, %v878
    %v966 = vmul.f32 %v962, %v878
    %v967 = vadd.f32 %v943, %v963
    %v968 = vadd.f32 %v944, %v964
    %v969 = vadd.f32 %v945, %v965
    %v970 = vadd.f32 %v946, %v966
    %v971 = vsub.f32 0.0, %v95
    %v972 = vsub.f32 0.0, %v96
    %v973 = vsub.f32 0.0, %v97
    %v974 = vsub.f32 0.0, %v98
    %v975 = vmul.f32 %v971, 0.125
    %v976 = vmul.f32 %v972, 0.125
    %v977 = vmul.f32 %v973, 0.125
    %v978 = vmul.f32 %v974, 0.125
    %v979 = vadd.f32 %v47, %v975
    %v980 = vadd.f32 %v50, %v976
    %v981 = vadd.f32 %v53, %v977
    %v982 = vadd.f32 %v56, %v978
    %v983 = vlaneseq
    %v984 = vshrl.u32 %v983, 7
    %v985 = vsub.s32 0, %v984
    %v986 = vrot.slane %v971, %v985
    %v987 = vlaneseq
    %v988 = vshrl.u32 %v987, 7
    %v989 = vsub.s32 0, %v988
    %v990 = vrot.slane %v972, %v989
    %v991 = vlaneseq
    %v992 = vshrl.u32 %v991, 7
    %v993 = vsub.s32 0, %v992
    %v994 = vrot.slane %v973, %v993
    %v995 = vlaneseq
    %v996 = vshrl.u32 %v995, 7
    %v997 = vsub.s32 0, %v996
    %v998 = vrot.slane %v974, %v997
    %v999 = vmul.f32 %v986, %v979
    %v1000 = vmul.f32 %v990, %v979
    %v1001 = vmul.f32 %v994, %v979
    %v1002 = vmul.f32 %v998, %v979
    %v1003 = vlaneseq
    %v1004 = vshrl.u32 %v1003, 7
    %v1005 = vsub.s32 1, %v1004
    %v1006 = vrot.slane %v971, %v1005
    %v1007 = vlaneseq
    %v1008 = vshrl.u32 %v1007, 7
    %v1009 = vsub.s32 1, %v1008
    %v1010 = vrot.slane %v972, %v1009
    %v1011 = vlaneseq
    %v1012 = vshrl.u32 %v1011, 7
    %v1013 = vsub.s32 1, %v1012
    %v1014 = vrot.slane %v973, %v1013
    %v1015 = vlaneseq
    %v1016 = vshrl.u32 %v1015, 7
    %v1017 = vsub.s32 1, %v1016
    %v1018 = vrot.slane %v974, %v1017
    %v1019 = vmul.f32 %v1006, %v980
    %v1020 = vmul.f32 %v1010, %v980
    %v1021 = vmul.f32 %v1014, %v980
    %v1022 = vmul.f32 %v1018, %v980
    %v1023 = vadd.f32 %v999, %v1019
    %v1024 = vadd.f32 %v1000, %v1020
    %v1025 = vadd.f32 %v1001, %v1021
    %v1026 = vadd.f32 %v1002, %v1022
    %v1027 = vlaneseq
    %v1028 = vshrl.u32 %v1027, 7
    %v1029 = vsub.s32 2, %v1028
    %v1030 = vrot.slane %v971, %v1029
    %v1031 = vlaneseq
    %v1032 = vshrl.u32 %v1031, 7
    %v1033 = vsub.s32 2, %v1032
    %v1034 = vrot.slane %v972, %v1033
    %v1035 = vlaneseq
    %v1036 = vshrl.u32 %v1035, 7
    %v1037 = vsub.s32 2, %v1036
    %v1038 = vrot.slane %v973, %v1037
    %v1039 = vlaneseq
    %v1040 = vshrl.u32 %v1039, 7
    %v1041 = vsub.s32 2, %v1040
    %v1042 = vrot.slane %v974, %v1041
    %v1043 = vmul.f32 %v1030, %v981
    %v1044 = vmul.f32 %v1034, %v981
    %v1045 = vmul.f32 %v1038, %v981
    %v1046 = vmul.f32 %v1042, %v981
    %v1047 = vadd.f32 %v1023, %v1043
    %v1048 = vadd.f32 %v1024, %v1044
    %v1049 = vadd.f32 %v1025, %v1045
    %v1050 = vadd.f32 %v1026, %v1046
    %v1051 = vlaneseq
    %v1052 = vshrl.u32 %v1051, 7
    %v1053 = vsub.s32 3, %v1052
    %v1054 = vrot.slane %v971, %v1053
    %v1055 = vlaneseq
    %v1056 = vshrl.u32 %v1055, 7
    %v1057 = vsub.s32 3, %v1056
    %v1058 = vrot.slane %v972, %v1057
    %v1059 = vlaneseq
    %v1060 = vshrl.u32 %v1059, 7
    %v1061 = vsub.s32 3, %v1060
    %v1062 = vrot.slane %v973, %v1061
    %v1063 = vlaneseq
    %v1064 = vshrl.u32 %v1063, 7
    %v1065 = vsub.s32 3, %v1064
    %v1066 = vrot.slane %v974, %v1065
    %v1067 = vmul.f32 %v1054, %v982
    %v1068 = vmul.f32 %v1058, %v982
    %v1069 = vmul.f32 %v1062, %v982
    %v1070 = vmul.f32 %v1066, %v982
    %v1071 = vadd.f32 %v1047, %v1067
    %v1072 = vadd.f32 %v1048, %v1068
    %v1073 = vadd.f32 %v1049, %v1069
    %v1074 = vadd.f32 %v1050, %v1070
    %v1075 = vmul.f32 %v1071, 0.14285715
    %v1076 = vmul.f32 %v1072, 0.14285715
    %v1077 = vmul.f32 %v1073, 0.14285715
    %v1078 = vmul.f32 %v1074, 0.14285715
    %v1079 = vadd.f32 %v47, %v1075
    %v1080 = vadd.f32 %v50, %v1076
    %v1081 = vadd.f32 %v53, %v1077
    %v1082 = vadd.f32 %v56, %v1078
    %v1083 = vmul.f32 %v986, %v1079
    %v1084 = vmul.f32 %v990, %v1079
    %v1085 = vmul.f32 %v994, %v1079
    %v1086 = vmul.f32 %v998, %v1079
    %v1087 = vmul.f32 %v1006, %v1080
    %v1088 = vmul.f32 %v1010, %v1080
    %v1089 = vmul.f32 %v1014, %v1080
    %v1090 = vmul.f32 %v1018, %v1080
    %v1091 = vadd.f32 %v1083, %v1087
    %v1092 = vadd.f32 %v1084, %v1088
    %v1093 = vadd.f32 %v1085, %v1089
    %v1094 = vadd.f32 %v1086, %v1090
    %v1095 = vmul.f32 %v1030, %v1081
    %v1096 = vmul.f32 %v1034, %v1081
    %v1097 = vmul.f32 %v1038, %v1081
    %v1098 = vmul.f32 %v1042, %v1081
    %v1099 = vadd.f32 %v1091, %v1095
    %v1100 = vadd.f32 %v1092, %v1096
    %v1101 = vadd.f32 %v1093, %v1097
    %v1102 = vadd.f32 %v1094, %v1098
    %v1103 = vmul.f32 %v1054, %v1082
    %v1104 = vmul.f32 %v1058, %v1082
    %v1105 = vmul.f32 %v1062, %v1082
    %v1106 = vmul.f32 %v1066, %v1082
    %v1107 = vadd.f32 %v1099, %v1103
    %v1108 = vadd.f32 %v1100, %v1104
    %v1109 = vadd.f32 %v1101, %v1105
    %v1110 = vadd.f32 %v1102, %v1106
    %v1111 = vmul.f32 %v1107, 0.16666667
    %v1112 = vmul.f32 %v1108, 0.16666667
    %v1113 = vmul.f32 %v1109, 0.16666667
    %v1114 = vmul.f32 %v1110, 0.16666667
    %v1115 = vadd.f32 %v47, %v1111
    %v1116 = vadd.f32 %v50, %v1112
    %v1117 = vadd.f32 %v53, %v1113
    %v1118 = vadd.f32 %v56, %v1114
    %v1119 = vmul.f32 %v986, %v1115
    %v1120 = vmul.f32 %v990, %v1115
    %v1121 = vmul.f32 %v994, %v1115
    %v1122 = vmul.f32 %v998, %v1115
    %v1123 = vmul.f32 %v1006, %v1116
    %v1124 = vmul.f32 %v1010, %v1116
    %v1125 = vmul.f32 %v1014, %v1116
    %v1126 = vmul.f32 %v1018, %v1116
    %v1127 = vadd.f32 %v1119, %v1123
    %v1128 = vadd.f32 %v1120, %v1124
    %v1129 = vadd.f32 %v1121, %v1125
    %v1130 = vadd.f32 %v1122, %v1126
    %v1131 = vmul.f32 %v1030, %v1117
    %v1132 = vmul.f32 %v1034, %v1117
    %v1133 = vmul.f32 %v1038, %v1117
    %v1134 = vmul.f32 %v1042, %v1117
    %v1135 = vadd.f32 %v1127, %v1131
    %v1136 = vadd.f32 %v1128, %v1132
    %v1137 = vadd.f32 %v1129, %v1133
    %v1138 = vadd.f32 %v1130, %v1134
    %v1139 = vmul.f32 %v1054, %v1118
    %v1140 = vmul.f32 %v1058, %v1118
    %v1141 = vmul.f32 %v1062, %v1118
    %v1142 = vmul.f32 %v1066, %v1118
    %v1143 = vadd.f32 %v1135, %v1139
    %v1144 = vadd.f32 %v1136, %v1140
    %v1145 = vadd.f32 %v1137, %v1141
    %v1146 = vadd.f32 %v1138, %v1142
    %v1147 = vmul.f32 %v1143, 0.2
    %v1148 = vmul.f32 %v1144, 0.2
    %v1149 = vmul.f32 %v1145, 0.2
    %v1150 = vmul.f32 %v1146, 0.2
    %v1151 = vadd.f32 %v47, %v1147
    %v1152 = vadd.f32 %v50, %v1148
    %v1153 = vadd.f32 %v53, %v1149
    %v1154 = vadd.f32 %v56, %v1150
    %v1155 = vmul.f32 %v986, %v1151
    %v1156 = vmul.f32 %v990, %v1151
    %v1157 = vmul.f32 %v994, %v1151
    %v1158 = vmul.f32 %v998, %v1151
    %v1159 = vmul.f32 %v1006, %v1152
    %v1160 = vmul.f32 %v1010, %v1152
    %v1161 = vmul.f32 %v1014, %v1152
    %v1162 = vmul.f32 %v1018, %v1152
    %v1163 = vadd.f32 %v1155, %v1159
    %v1164 = vadd.f32 %v1156, %v1160
    %v1165 = vadd.f32 %v1157, %v1161
    %v1166 = vadd.f32 %v1158, %v1162
    %v1167 = vmul.f32 %v1030, %v1153
    %v1168 = vmul.f32 %v1034, %v1153
    %v1169 = vmul.f32 %v1038, %v1153
    %v1170 = vmul.f32 %v1042, %v1153
    %v1171 = vadd.f32 %v1163, %v1167
    %v1172 = vadd.f32 %v1164, %v1168
    %v1173 = vadd.f32 %v1165, %v1169
    %v1174 = vadd.f32 %v1166, %v1170
    %v1175 = vmul.f32 %v1054, %v1154
    %v1176 = vmul.f32 %v1058, %v1154
    %v1177 = vmul.f32 %v1062, %v1154
    %v1178 = vmul.f32 %v1066, %v1154
    %v1179 = vadd.f32 %v1171, %v1175
    %v1180 = vadd.f32 %v1172, %v1176
    %v1181 = vadd.f32 %v1173, %v1177
    %v1182 = vadd.f32 %v1174, %v1178
    %v1183 = vmul.f32 %v1179, 0.25
    %v1184 = vmul.f32 %v1180, 0.25
    %v1185 = vmul.f32 %v1181, 0.25
    %v1186 = vmul.f32 %v1182, 0.25
    %v1187 = vadd.f32 %v47, %v1183
    %v1188 = vadd.f32 %v50, %v1184
    %v1189 = vadd.f32 %v53, %v1185
    %v1190 = vadd.f32 %v56, %v1186
    %v1191 = vmul.f32 %v986, %v1187
    %v1192 = vmul.f32 %v990, %v1187
    %v1193 = vmul.f32 %v994, %v1187
    %v1194 = vmul.f32 %v998, %v1187
    %v1195 = vmul.f32 %v1006, %v1188
    %v1196 = vmul.f32 %v1010, %v1188
    %v1197 = vmul.f32 %v1014, %v1188
    %v1198 = vmul.f32 %v1018, %v1188
    %v1199 = vadd.f32 %v1191, %v1195
    %v1200 = vadd.f32 %v1192, %v1196
    %v1201 = vadd.f32 %v1193, %v1197
    %v1202 = vadd.f32 %v1194, %v1198
    %v1203 = vmul.f32 %v1030, %v1189
    %v1204 = vmul.f32 %v1034, %v1189
    %v1205 = vmul.f32 %v1038, %v1189
    %v1206 = vmul.f32 %v1042, %v1189
    %v1207 = vadd.f32 %v1199, %v1203
    %v1208 = vadd.f32 %v1200, %v1204
    %v1209 = vadd.f32 %v1201, %v1205
    %v1210 = vadd.f32 %v1202, %v1206
    %v1211 = vmul.f32 %v1054, %v1190
    %v1212 = vmul.f32 %v1058, %v1190
    %v1213 = vmul.f32 %v1062, %v1190
    %v1214 = vmul.f32 %v1066, %v1190
    %v1215 = vadd.f32 %v1207, %v1211
    %v1216 = vadd.f32 %v1208, %v1212
    %v1217 = vadd.f32 %v1209, %v1213
    %v1218 = vadd.f32 %v1210, %v1214
    %v1219 = vmul.f32 %v1215, 0.33333334
    %v1220 = vmul.f32 %v1216, 0.33333334
    %v1221 = vmul.f32 %v1217, 0.33333334
    %v1222 = vmul.f32 %v1218, 0.33333334
    %v1223 = vadd.f32 %v47, %v1219
    %v1224 = vadd.f32 %v50, %v1220
    %v1225 = vadd.f32 %v53, %v1221
    %v1226 = vadd.f32 %v56, %v1222
    %v1227 = vmul.f32 %v986, %v1223
    %v1228 = vmul.f32 %v990, %v1223
    %v1229 = vmul.f32 %v994, %v1223
    %v1230 = vmul.f32 %v998, %v1223
    %v1231 = vmul.f32 %v1006, %v1224
    %v1232 = vmul.f32 %v1010, %v1224
    %v1233 = vmul.f32 %v1014, %v1224
    %v1234 = vmul.f32 %v1018, %v1224
    %v1235 = vadd.f32 %v1227, %v1231
    %v1236 = vadd.f32 %v1228, %v1232
    %v1237 = vadd.f32 %v1229, %v1233
    %v1238 = vadd.f32 %v1230, %v1234
    %v1239 = vmul.f32 %v1030, %v1225
    %v1240 = vmul.f32 %v1034, %v1225
    %v1241 = vmul.f32 %v1038, %v1225
    %v1242 = vmul.f32 %v1042, %v1225
    %v1243 = vadd.f32 %v1235, %v1239
    %v1244 = vadd.f32 %v1236, %v1240
    %v1245 = vadd.f32 %v1237, %v1241
    %v1246 = vadd.f32 %v1238, %v1242
    %v1247 = vmul.f32 %v1054, %v1226
    %v1248 = vmul.f32 %v1058, %v1226
    %v1249 = vmul.f32 %v1062, %v1226
    %v1250 = vmul.f32 %v1066, %v1226
    %v1251 = vadd.f32 %v1243, %v1247
    %v1252 = vadd.f32 %v1244, %v1248
    %v1253 = vadd.f32 %v1245, %v1249
    %v1254 = vadd.f32 %v1246, %v1250
    %v1255 = vmul.f32 %v1251, 0.5
    %v1256 = vmul.f32 %v1252, 0.5
    %v1257 = vmul.f32 %v1253, 0.5
    %v1258 = vmul.f32 %v1254, 0.5
    %v1259 = vadd.f32 %v47, %v1255
    %v1260 = vadd.f32 %v50, %v1256
    %v1261 = vadd.f32 %v53, %v1257
    %v1262 = vadd.f32 %v56, %v1258
    %v1263 = vmul.f32 %v986, %v1259
    %v1264 = vmul.f32 %v990, %v1259
    %v1265 = vmul.f32 %v994, %v1259
    %v1266 = vmul.f32 %v998, %v1259
    %v1267 = vmul.f32 %v1006, %v1260
    %v1268 = vmul.f32 %v1010, %v1260
    %v1269 = vmul.f32 %v1014, %v1260
    %v1270 = vmul.f32 %v1018, %v1260
    %v1271 = vadd.f32 %v1263, %v1267
    %v1272 = vadd.f32 %v1264, %v1268
    %v1273 = vadd.f32 %v1265, %v1269
    %v1274 = vadd.f32 %v1266, %v1270
    %v1275 = vmul.f32 %v1030, %v1261
    %v1276 = vmul.f32 %v1034, %v1261
    %v1277 = vmul.f32 %v1038, %v1261
    %v1278 = vmul.f32 %v1042, %v1261
    %v1279 = vadd.f32 %v1271, %v1275
    %v1280 = vadd.f32 %v1272, %v1276
    %v1281 = vadd.f32 %v1273, %v1277
    %v1282 = vadd.f32 %v1274, %v1278
    %v1283 = vmul.f32 %v1054, %v1262
    %v1284 = vmul.f32 %v1058, %v1262
    %v1285 = vmul.f32 %v1062, %v1262
    %v1286 = vmul.f32 %v1066, %v1262
    %v1287 = vadd.f32 %v1279, %v1283
    %v1288 = vadd.f32 %v1280, %v1284
    %v1289 = vadd.f32 %v1281, %v1285
    %v1290 = vadd.f32 %v1282, %v1286
    %v1291 = vadd.f32 %v47, %v1287
    %v1292 = vadd.f32 %v50, %v1288
    %v1293 = vadd.f32 %v53, %v1289
    %v1294 = vadd.f32 %v56, %v1290
    %v1295 = vlaneseq
    %v1296 = vshrl.u32 %v1295, 7
    %v1297 = vsub.s32 0, %v1296
    %v1298 = vrot.slane %v1291, %v1297
    %v1299 = vlaneseq
    %v1300 = vshrl.u32 %v1299, 7
    %v1301 = vsub.s32 0, %v1300
    %v1302 = vrot.slane %v1292, %v1301
    %v1303 = vlaneseq
    %v1304 = vshrl.u32 %v1303, 7
    %v1305 = vsub.s32 0, %v1304
    %v1306 = vrot.slane %v1293, %v1305
    %v1307 = vlaneseq
    %v1308 = vshrl.u32 %v1307, 7
    %v1309 = vsub.s32 0, %v1308
    %v1310 = vrot.slane %v1294, %v1309
    %v1311 = vmul.f32 %v1298, %v1291
    %v1312 = vmul.f32 %v1302, %v1291
    %v1313 = vmul.f32 %v1306, %v1291
    %v1314 = vmul.f32 %v1310, %v1291
    %v1315 = vlaneseq
    %v1316 = vshrl.u32 %v1315, 7
    %v1317 = vsub.s32 1, %v1316
    %v1318 = vrot.slane %v1291, %v1317
    %v1319 = vlaneseq
    %v1320 = vshrl.u32 %v1319, 7
    %v1321 = vsub.s32 1, %v1320
    %v1322 = vrot.slane %v1292, %v1321
    %v1323 = vlaneseq
    %v1324 = vshrl.u32 %v1323, 7
    %v1325 = vsub.s32 1, %v1324
    %v1326 = vrot.slane %v1293, %v1325
    %v1327 = vlaneseq
    %v1328 = vshrl.u32 %v1327, 7
    %v1329 = vsub.s32 1, %v1328
    %v1330 = vrot.slane %v1294, %v1329
    %v1331 = vmul.f32 %v1318, %v1292
    %v1332 = vmul.f32 %v1322, %v1292
    %v1333 = vmul.f32 %v1326, %v1292
    %v1334 = vmul.f32 %v1330, %v1292
    %v1335 = vadd.f32 %v1311, %v1331
    %v1336 = vadd.f32 %v1312, %v1332
    %v1337 = vadd.f32 %v1313, %v1333
    %v1338 = vadd.f32 %v1314, %v1334
    %v1339 = vlaneseq
    %v1340 = vshrl.u32 %v1339, 7
    %v1341 = vsub.s32 2, %v1340
    %v1342 = vrot.slane %v1291, %v1341
    %v1343 = vlaneseq
    %v1344 = vshrl.u32 %v1343, 7
    %v1345 = vsub.s32 2, %v1344
    %v1346 = vrot.slane %v1292, %v1345
    %v1347 = vlaneseq
    %v1348 = vshrl.u32 %v1347, 7
    %v1349 = vsub.s32 2, %v1348
    %v1350 = vrot.slane %v1293, %v1349
    %v1351 = vlaneseq
    %v1352 = vshrl.u32 %v1351, 7
    %v1353 = vsub.s32 2, %v1352
    %v1354 = vrot.slane %v1294, %v1353
    %v1355 = vmul.f32 %v1342, %v1293
    %v1356 = vmul.f32 %v1346, %v1293
    %v1357 = vmul.f32 %v1350, %v1293
    %v1358 = vmul.f32 %v1354, %v1293
    %v1359 = vadd.f32 %v1335, %v1355
    %v1360 = vadd.f32 %v1336, %v1356
    %v1361 = vadd.f32 %v1337, %v1357
    %v1362 = vadd.f32 %v1338, %v1358
    %v1363 = vlaneseq
    %v1364 = vshrl.u32 %v1363, 7
    %v1365 = vsub.s32 3, %v1364
    %v1366 = vrot.slane %v1291, %v1365
    %v1367 = vlaneseq
    %v1368 = vshrl.u32 %v1367, 7
    %v1369 = vsub.s32 3, %v1368
    %v1370 = vrot.slane %v1292, %v1369
    %v1371 = vlaneseq
    %v1372 = vshrl.u32 %v1371, 7
    %v1373 = vsub.s32 3, %v1372
    %v1374 = vrot.slane %v1293, %v1373
    %v1375 = vlaneseq
    %v1376 = vshrl.u32 %v1375, 7
    %v1377 = vsub.s32 3, %v1376
    %v1378 = vrot.slane %v1294, %v1377
    %v1379 = vmul.f32 %v1366, %v1294
    %v1380 = vmul.f32 %v1370, %v1294
    %v1381 = vmul.f32 %v1374, %v1294
    %v1382 = vmul.f32 %v1378, %v1294
    %v1383 = vadd.f32 %v1359, %v1379
    %v1384 = vadd.f32 %v1360, %v1380
    %v1385 = vadd.f32 %v1361, %v1381
    %v1386 = vadd.f32 %v1362, %v1382
    %v1387 = vlaneseq
    %v1388 = vshrl.u32 %v1387, 7
    %v1389 = vsub.s32 0, %v1388
    %v1390 = vrot.slane %v1383, %v1389
    %v1391 = vlaneseq
    %v1392 = vshrl.u32 %v1391, 7
    %v1393 = vsub.s32 0, %v1392
    %v1394 = vrot.slane %v1384, %v1393
    %v1395 = vlaneseq
    %v1396 = vshrl.u32 %v1395, 7
    %v1397 = vsub.s32 0, %v1396
    %v1398 = vrot.slane %v1385, %v1397
    %v1399 = vlaneseq
    %v1400 = vshrl.u32 %v1399, 7
    %v1401 = vsub.s32 0, %v1400
    %v1402 = vrot.slane %v1386, %v1401
    %v1403 = vmul.f32 %v1390, %v1383
    %v1404 = vmul.f32 %v1394, %v1383
    %v1405 = vmul.f32 %v1398, %v1383
    %v1406 = vmul.f32 %v1402, %v1383
    %v1407 = vlaneseq
    %v1408 = vshrl.u32 %v1407, 7
    %v1409 = vsub.s32 1, %v1408
    %v1410 = vrot.slane %v1383, %v1409
    %v1411 = vlaneseq
    %v1412 = vshrl.u32 %v1411, 7
    %v1413 = vsub.s32 1, %v1412
    %v1414 = vrot.slane %v1384, %v1413
    %v1415 = vlaneseq
    %v1416 = vshrl.u32 %v1415, 7
    %v1417 = vsub.s32 1, %v1416
    %v1418 = vrot.slane %v1385, %v1417
    %v1419 = vlaneseq
    %v1420 = vshrl.u32 %v1419, 7
    %v1421 = vsub.s32 1, %v1420
    %v1422 = vrot.slane %v1386, %v1421
    %v1423 = vmul.f32 %v1410, %v1384
    %v1424 = vmul.f32 %v1414, %v1384
    %v1425 = vmul.f32 %v1418, %v1384
    %v1426 = vmul.f32 %v1422, %v1384
    %v1427 = vadd.f32 %v1403, %v1423
    %v1428 = vadd.f32 %v1404, %v1424
    %v1429 = vadd.f32 %v1405, %v1425
    %v1430 = vadd.f32 %v1406, %v1426
    %v1431 = vlaneseq
    %v1432 = vshrl.u32 %v1431, 7
    %v1433 = vsub.s32 2, %v1432
    %v1434 = vrot.slane %v1383, %v1433
    %v1435 = vlaneseq
    %v1436 = vshrl.u32 %v1435, 7
    %v1437 = vsub.s32 2, %v1436
    %v1438 = vrot.slane %v1384, %v1437
    %v1439 = vlaneseq
    %v1440 = vshrl.u32 %v1439, 7
    %v1441 = vsub.s32 2, %v1440
    %v1442 = vrot.slane %v1385, %v1441
    %v1443 = vlaneseq
    %v1444 = vshrl.u32 %v1443, 7
    %v1445 = vsub.s32 2, %v1444
    %v1446 = vrot.slane %v1386, %v1445
    %v1447 = vmul.f32 %v1434, %v1385
    %v1448 = vmul.f32 %v1438, %v1385
    %v1449 = vmul.f32 %v1442, %v1385
    %v1450 = vmul.f32 %v1446, %v1385
    %v1451 = vadd.f32 %v1427, %v1447
    %v1452 = vadd.f32 %v1428, %v1448
    %v1453 = vadd.f32 %v1429, %v1449
    %v1454 = vadd.f32 %v1430, %v1450
    %v1455 = vlaneseq
    %v1456 = vshrl.u32 %v1455, 7
    %v1457 = vsub.s32 3, %v1456
    %v1458 = vrot.slane %v1383, %v1457
    %v1459 = vlaneseq
    %v1460 = vshrl.u32 %v1459, 7
    %v1461 = vsub.s32 3, %v1460
    %v1462 = vrot.slane %v1384, %v1461
    %v1463 = vlaneseq
    %v1464 = vshrl.u32 %v1463, 7
    %v1465 = vsub.s32 3, %v1464
    %v1466 = vrot.slane %v1385, %v1465
    %v1467 = vlaneseq
    %v1468 = vshrl.u32 %v1467, 7
    %v1469 = vsub.s32 3, %v1468
    %v1470 = vrot.slane %v1386, %v1469
    %v1471 = vmul.f32 %v1458, %v1386
    %v1472 = vmul.f32 %v1462, %v1386
    %v1473 = vmul.f32 %v1466, %v1386
    %v1474 = vmul.f32 %v1470, %v1386
    %v1475 = vadd.f32 %v1451, %v1471
    %v1476 = vadd.f32 %v1452, %v1472
    %v1477 = vadd.f32 %v1453, %v1473
    %v1478 = vadd.f32 %v1454, %v1474
    %v1479 = vlaneseq
    %v1480 = vshrl.u32 %v1479, 7
    %v1481 = vsub.s32 0, %v1480
    %v1482 = vrot.slane %v1475, %v1481
    %v1483 = vlaneseq
    %v1484 = vshrl.u32 %v1483, 7
    %v1485 = vsub.s32 0, %v1484
    %v1486 = vrot.slane %v1476, %v1485
    %v1487 = vlaneseq
    %v1488 = vshrl.u32 %v1487, 7
    %v1489 = vsub.s32 0, %v1488
    %v1490 = vrot.slane %v1477, %v1489
    %v1491 = vlaneseq
    %v1492 = vshrl.u32 %v1491, 7
    %v1493 = vsub.s32 0, %v1492
    %v1494 = vrot.slane %v1478, %v1493
    %v1495 = vmul.f32 %v1482, %v1475
    %v1496 = vmul.f32 %v1486, %v1475
    %v1497 = vmul.f32 %v1490, %v1475
    %v1498 = vmul.f32 %v1494, %v1475
    %v1499 = vlaneseq
    %v1500 = vshrl.u32 %v1499, 7
    %v1501 = vsub.s32 1, %v1500
    %v1502 = vrot.slane %v1475, %v1501
    %v1503 = vlaneseq
    %v1504 = vshrl.u32 %v1503, 7
    %v1505 = vsub.s32 1, %v1504
    %v1506 = vrot.slane %v1476, %v1505
    %v1507 = vlaneseq
    %v1508 = vshrl.u32 %v1507, 7
    %v1509 = vsub.s32 1, %v1508
    %v1510 = vrot.slane %v1477, %v1509
    %v1511 = vlaneseq
    %v1512 = vshrl.u32 %v1511, 7
    %v1513 = vsub.s32 1, %v1512
    %v1514 = vrot.slane %v1478, %v1513
    %v1515 = vmul.f32 %v1502, %v1476
    %v1516 = vmul.f32 %v1506, %v1476
    %v1517 = vmul.f32 %v1510, %v1476
    %v1518 = vmul.f32 %v1514, %v1476
    %v1519 = vadd.f32 %v1495, %v1515
    %v1520 = vadd.f32 %v1496, %v1516
    %v1521 = vadd.f32 %v1497, %v1517
    %v1522 = vadd.f32 %v1498, %v1518
    %v1523 = vlaneseq
    %v1524 = vshrl.u32 %v1523, 7
    %v1525 = vsub.s32 2, %v1524
    %v1526 = vrot.slane %v1475, %v1525
    %v1527 = vlaneseq
    %v1528 = vshrl.u32 %v1527, 7
    %v1529 = vsub.s32 2, %v1528
    %v1530 = vrot.slane %v1476, %v1529
    %v1531 = vlaneseq
    %v1532 = vshrl.u32 %v1531, 7
    %v1533 = vsub.s32 2, %v1532
    %v1534 = vrot.slane %v1477, %v1533
    %v1535 = vlaneseq
    %v1536 = vshrl.u32 %v1535, 7
    %v1537 = vsub.s32 2, %v1536
    %v1538 = vrot.slane %v1478, %v1537
    %v1539 = vmul.f32 %v1526, %v1477
    %v1540 = vmul.f32 %v1530, %v1477
    %v1541 = vmul.f32 %v1534, %v1477
    %v1542 = vmul.f32 %v1538, %v1477
    %v1543 = vadd.f32 %v1519, %v1539
    %v1544 = vadd.f32 %v1520, %v1540
    %v1545 = vadd.f32 %v1521, %v1541
    %v1546 = vadd.f32 %v1522, %v1542
    %v1547 = vlaneseq
    %v1548 = vshrl.u32 %v1547, 7
    %v1549 = vsub.s32 3, %v1548
    %v1550 = vrot.slane %v1475, %v1549
    %v1551 = vlaneseq
    %v1552 = vshrl.u32 %v1551, 7
    %v1553 = vsub.s32 3, %v1552
    %v1554 = vrot.slane %v1476, %v1553
    %v1555 = vlaneseq
    %v1556 = vshrl.u32 %v1555, 7
    %v1557 = vsub.s32 3, %v1556
    %v1558 = vrot.slane %v1477, %v1557
    %v1559 = vlaneseq
    %v1560 = vshrl.u32 %v1559, 7
    %v1561 = vsub.s32 3, %v1560
    %v1562 = vrot.slane %v1478, %v1561
    %v1563 = vmul.f32 %v1550, %v1478
    %v1564 = vmul.f32 %v1554, %v1478
    %v1565 = vmul.f32 %v1558, %v1478
    %v1566 = vmul.f32 %v1562, %v1478
    %v1567 = vadd.f32 %v1543, %v1563
    %v1568 = vadd.f32 %v1544, %v1564
    %v1569 = vadd.f32 %v1545, %v1565
    %v1570 = vadd.f32 %v1546, %v1566
    %v1571 = vlaneseq
    %v1572 = vshrl.u32 %v1571, 7
    %v1573 = vsub.s32 0, %v1572
    %v1574 = vrot.slane %v1567, %v1573
    %v1575 = vlaneseq
    %v1576 = vshrl.u32 %v1575, 7
    %v1577 = vsub.s32 0, %v1576
    %v1578 = vrot.slane %v1568, %v1577
    %v1579 = vlaneseq
    %v1580 = vshrl.u32 %v1579, 7
    %v1581 = vsub.s32 0, %v1580
    %v1582 = vrot.slane %v1569, %v1581
    %v1583 = vlaneseq
    %v1584 = vshrl.u32 %v1583, 7
    %v1585 = vsub.s32 0, %v1584
    %v1586 = vrot.slane %v1570, %v1585
    %v1587 = vmul.f32 %v1574, %v1567
    %v1588 = vmul.f32 %v1578, %v1567
    %v1589 = vmul.f32 %v1582, %v1567
    %v1590 = vmul.f32 %v1586, %v1567
    %v1591 = vlaneseq
    %v1592 = vshrl.u32 %v1591, 7
    %v1593 = vsub.s32 1, %v1592
    %v1594 = vrot.slane %v1567, %v1593
    %v1595 = vlaneseq
    %v1596 = vshrl.u32 %v1595, 7
    %v1597 = vsub.s32 1, %v1596
    %v1598 = vrot.slane %v1568, %v1597
    %v1599 = vlaneseq
    %v1600 = vshrl.u32 %v1599, 7
    %v1601 = vsub.s32 1, %v1600
    %v1602 = vrot.slane %v1569, %v1601
    %v1603 = vlaneseq
    %v1604 = vshrl.u32 %v1603, 7
    %v1605 = vsub.s32 1, %v1604
    %v1606 = vrot.slane %v1570, %v1605
    %v1607 = vmul.f32 %v1594, %v1568
    %v1608 = vmul.f32 %v1598, %v1568
    %v1609 = vmul.f32 %v1602, %v1568
    %v1610 = vmul.f32 %v1606, %v1568
    %v1611 = vadd.f32 %v1587, %v1607
    %v1612 = vadd.f32 %v1588, %v1608
    %v1613 = vadd.f32 %v1589, %v1609
    %v1614 = vadd.f32 %v1590, %v1610
    %v1615 = vlaneseq
    %v1616 = vshrl.u32 %v1615, 7
    %v1617 = vsub.s32 2, %v1616
    %v1618 = vrot.slane %v1567, %v1617
    %v1619 = vlaneseq
    %v1620 = vshrl.u32 %v1619, 7
    %v1621 = vsub.s32 2, %v1620
    %v1622 = vrot.slane %v1568, %v1621
    %v1623 = vlaneseq
    %v1624 = vshrl.u32 %v1623, 7
    %v1625 = vsub.s32 2, %v1624
    %v1626 = vrot.slane %v1569, %v1625
    %v1627 = vlaneseq
    %v1628 = vshrl.u32 %v1627, 7
    %v1629 = vsub.s32 2, %v1628
    %v1630 = vrot.slane %v1570, %v1629
    %v1631 = vmul.f32 %v1618, %v1569
    %v1632 = vmul.f32 %v1622, %v1569
    %v1633 = vmul.f32 %v1626, %v1569
    %v1634 = vmul.f32 %v1630, %v1569
    %v1635 = vadd.f32 %v1611, %v1631
    %v1636 = vadd.f32 %v1612, %v1632
    %v1637 = vadd.f32 %v1613, %v1633
    %v1638 = vadd.f32 %v1614, %v1634
    %v1639 = vlaneseq
    %v1640 = vshrl.u32 %v1639, 7
    %v1641 = vsub.s32 3, %v1640
    %v1642 = vrot.slane %v1567, %v1641
    %v1643 = vlaneseq
    %v1644 = vshrl.u32 %v1643, 7
    %v1645 = vsub.s32 3, %v1644
    %v1646 = vrot.slane %v1568, %v1645
    %v1647 = vlaneseq
    %v1648 = vshrl.u32 %v1647, 7
    %v1649 = vsub.s32 3, %v1648
    %v1650 = vrot.slane %v1569, %v1649
    %v1651 = vlaneseq
    %v1652 = vshrl.u32 %v1651, 7
    %v1653 = vsub.s32 3, %v1652
    %v1654 = vrot.slane %v1570, %v1653
    %v1655 = vmul.f32 %v1642, %v1570
    %v1656 = vmul.f32 %v1646, %v1570
    %v1657 = vmul.f32 %v1650, %v1570
    %v1658 = vmul.f32 %v1654, %v1570
    %v1659 = vadd.f32 %v1635, %v1655
    %v1660 = vadd.f32 %v1636, %v1656
    %v1661 = vadd.f32 %v1637, %v1657
    %v1662 = vadd.f32 %v1638, %v1658
    %v1663 = vlaneseq
    %v1664 = vshrl.u32 %v1663, 7
    %v1665 = vsub.s32 0, %v1664
    %v1666 = vrot.slane %v1659, %v1665
    %v1667 = vlaneseq
    %v1668 = vshrl.u32 %v1667, 7
    %v1669 = vsub.s32 0, %v1668
    %v1670 = vrot.slane %v1660, %v1669
    %v1671 = vlaneseq
    %v1672 = vshrl.u32 %v1671, 7
    %v1673 = vsub.s32 0, %v1672
    %v1674 = vrot.slane %v1661, %v1673
    %v1675 = vlaneseq
    %v1676 = vshrl.u32 %v1675, 7
    %v1677 = vsub.s32 0, %v1676
    %v1678 = vrot.slane %v1662, %v1677
    %v1679 = vmul.f32 %v1666, %v1659
    %v1680 = vmul.f32 %v1670, %v1659
    %v1681 = vmul.f32 %v1674, %v1659
    %v1682 = vmul.f32 %v1678, %v1659
    %v1683 = vlaneseq
    %v1684 = vshrl.u32 %v1683, 7
    %v1685 = vsub.s32 1, %v1684
    %v1686 = vrot.slane %v1659, %v1685
    %v1687 = vlaneseq
    %v1688 = vshrl.u32 %v1687, 7
    %v1689 = vsub.s32 1, %v1688
    %v1690 = vrot.slane %v1660, %v1689
    %v1691 = vlaneseq
    %v1692 = vshrl.u32 %v1691, 7
    %v1693 = vsub.s32 1, %v1692
    %v1694 = vrot.slane %v1661, %v1693
    %v1695 = vlaneseq
    %v1696 = vshrl.u32 %v1695, 7
    %v1697 = vsub.s32 1, %v1696
    %v1698 = vrot.slane %v1662, %v1697
    %v1699 = vmul.f32 %v1686, %v1660
    %v1700 = vmul.f32 %v1690, %v1660
    %v1701 = vmul.f32 %v1694, %v1660
    %v1702 = vmul.f32 %v1698, %v1660
    %v1703 = vadd.f32 %v1679, %v1699
    %v1704 = vadd.f32 %v1680, %v1700
    %v1705 = vadd.f32 %v1681, %v1701
    %v1706 = vadd.f32 %v1682, %v1702
    %v1707 = vlaneseq
    %v1708 = vshrl.u32 %v1707, 7
    %v1709 = vsub.s32 2, %v1708
    %v1710 = vrot.slane %v1659, %v1709
    %v1711 = vlaneseq
    %v1712 = vshrl.u32 %v1711, 7
    %v1713 = vsub.s32 2, %v1712
    %v1714 = vrot.slane %v1660, %v1713
    %v1715 = vlaneseq
    %v1716 = vshrl.u32 %v1715, 7
    %v1717 = vsub.s32 2, %v1716
    %v1718 = vrot.slane %v1661, %v1717
    %v1719 = vlaneseq
    %v1720 = vshrl.u32 %v1719, 7
    %v1721 = vsub.s32 2, %v1720
    %v1722 = vrot.slane %v1662, %v1721
    %v1723 = vmul.f32 %v1710, %v1661
    %v1724 = vmul.f32 %v1714, %v1661
    %v1725 = vmul.f32 %v1718, %v1661
    %v1726 = vmul.f32 %v1722, %v1661
    %v1727 = vadd.f32 %v1703, %v1723
    %v1728 = vadd.f32 %v1704, %v1724
    %v1729 = vadd.f32 %v1705, %v1725
    %v1730 = vadd.f32 %v1706, %v1726
    %v1731 = vlaneseq
    %v1732 = vshrl.u32 %v1731, 7
    %v1733 = vsub.s32 3, %v1732
    %v1734 = vrot.slane %v1659, %v1733
    %v1735 = vlaneseq
    %v1736 = vshrl.u32 %v1735, 7
    %v1737 = vsub.s32 3, %v1736
    %v1738 = vrot.slane %v1660, %v1737
    %v1739 = vlaneseq
    %v1740 = vshrl.u32 %v1739, 7
    %v1741 = vsub.s32 3, %v1740
    %v1742 = vrot.slane %v1661, %v1741
    %v1743 = vlaneseq
    %v1744 = vshrl.u32 %v1743, 7
    %v1745 = vsub.s32 3, %v1744
    %v1746 = vrot.slane %v1662, %v1745
    %v1747 = vmul.f32 %v1734, %v1662
    %v1748 = vmul.f32 %v1738, %v1662
    %v1749 = vmul.f32 %v1742, %v1662
    %v1750 = vmul.f32 %v1746, %v1662
    %v1751 = vadd.f32 %v1727, %v1747
    %v1752 = vadd.f32 %v1728, %v1748
    %v1753 = vadd.f32 %v1729, %v1749
    %v1754 = vadd.f32 %v1730, %v1750
    %v1755 = vlaneseq
    %v1756 = vshrl.u32 %v1755, 7
    %v1757 = vsub.s32 0, %v1756
    %v1758 = vrot.slane %v1751, %v1757
    %v1759 = vlaneseq
    %v1760 = vshrl.u32 %v1759, 7
    %v1761 = vsub.s32 0, %v1760
    %v1762 = vrot.slane %v1752, %v1761
    %v1763 = vlaneseq
    %v1764 = vshrl.u32 %v1763, 7
    %v1765 = vsub.s32 0, %v1764
    %v1766 = vrot.slane %v1753, %v1765
    %v1767 = vlaneseq
    %v1768 = vshrl.u32 %v1767, 7
    %v1769 = vsub.s32 0, %v1768
    %v1770 = vrot.slane %v1754, %v1769
    %v1771 = vmul.f32 %v1758, %v1751
    %v1772 = vmul.f32 %v1762, %v1751
    %v1773 = vmul.f32 %v1766, %v1751
    %v1774 = vmul.f32 %v1770, %v1751
    %v1775 = vlaneseq
    %v1776 = vshrl.u32 %v1775, 7
    %v1777 = vsub.s32 1, %v1776
    %v1778 = vrot.slane %v1751, %v1777
    %v1779 = vlaneseq
    %v1780 = vshrl.u32 %v1779, 7
    %v1781 = vsub.s32 1, %v1780
    %v1782 = vrot.slane %v1752, %v1781
    %v1783 = vlaneseq
    %v1784 = vshrl.u32 %v1783, 7
    %v1785 = vsub.s32 1, %v1784
    %v1786 = vrot.slane %v1753, %v1785
    %v1787 = vlaneseq
    %v1788 = vshrl.u32 %v1787, 7
    %v1789 = vsub.s32 1, %v1788
    %v1790 = vrot.slane %v1754, %v1789
    %v1791 = vmul.f32 %v1778, %v1752
    %v1792 = vmul.f32 %v1782, %v1752
    %v1793 = vmul.f32 %v1786, %v1752
    %v1794 = vmul.f32 %v1790, %v1752
    %v1795 = vadd.f32 %v1771, %v1791
    %v1796 = vadd.f32 %v1772, %v1792
    %v1797 = vadd.f32 %v1773, %v1793
    %v1798 = vadd.f32 %v1774, %v1794
    %v1799 = vlaneseq
    %v1800 = vshrl.u32 %v1799, 7
    %v1801 = vsub.s32 2, %v1800
    %v1802 = vrot.slane %v1751, %v1801
    %v1803 = vlaneseq
    %v1804 = vshrl.u32 %v1803, 7
    %v1805 = vsub.s32 2, %v1804
    %v1806 = vrot.slane %v1752, %v1805
    %v1807 = vlaneseq
    %v1808 = vshrl.u32 %v1807, 7
    %v1809 = vsub.s32 2, %v1808
    %v1810 = vrot.slane %v1753, %v1809
    %v1811 = vlaneseq
    %v1812 = vshrl.u32 %v1811, 7
    %v1813 = vsub.s32 2, %v1812
    %v1814 = vrot.slane %v1754, %v1813
    %v1815 = vmul.f32 %v1802, %v1753
    %v1816 = vmul.f32 %v1806, %v1753
    %v1817 = vmul.f32 %v1810, %v1753
    %v1818 = vmul.f32 %v1814, %v1753
    %v1819 = vadd.f32 %v1795, %v1815
    %v1820 = vadd.f32 %v1796, %v1816
    %v1821 = vadd.f32 %v1797, %v1817
    %v1822 = vadd.f32 %v1798, %v1818
    %v1823 = vlaneseq
    %v1824 = vshrl.u32 %v1823, 7
    %v1825 = vsub.s32 3, %v1824
    %v1826 = vrot.slane %v1751, %v1825
    %v1827 = vlaneseq
    %v1828 = vshrl.u32 %v1827, 7
    %v1829 = vsub.s32 3, %v1828
    %v1830 = vrot.slane %v1752, %v1829
    %v1831 = vlaneseq
    %v1832 = vshrl.u32 %v1831, 7
    %v1833 = vsub.s32 3, %v1832
    %v1834 = vrot.slane %v1753, %v1833
    %v1835 = vlaneseq
    %v1836 = vshrl.u32 %v1835, 7
    %v1837 = vsub.s32 3, %v1836
    %v1838 = vrot.slane %v1754, %v1837
    %v1839 = vmul.f32 %v1826, %v1754
    %v1840 = vmul.f32 %v1830, %v1754
    %v1841 = vmul.f32 %v1834, %v1754
    %v1842 = vmul.f32 %v1838, %v1754
    %v1843 = vadd.f32 %v1819, %v1839
    %v1844 = vadd.f32 %v1820, %v1840
    %v1845 = vadd.f32 %v1821, %v1841
    %v1846 = vadd.f32 %v1822, %v1842
    %v1847 = vld [vmem:[%s3] sm:$0xf]
    %v1848 = vld [vmem:[%s3 + $0x4] sm:$0xf]
    %v1849 = vld [vmem:[%s3 + $0x8] sm:$0xf]
    %v1850 = vld [vmem:[%s3 + $0xc] sm:$0xf]
    %v1851 = vlaneseq
    %v1852 = vshrl.u32 %v1851, 7
    %v1853 = vsub.s32 0, %v1852
    %v1854 = vrot.slane %v1847, %v1853
    %v1855 = vlaneseq
    %v1856 = vshrl.u32 %v1855, 7
    %v1857 = vsub.s32 0, %v1856
    %v1858 = vrot.slane %v1848, %v1857
    %v1859 = vlaneseq
    %v1860 = vshrl.u32 %v1859, 7
    %v1861 = vsub.s32 0, %v1860
    %v1862 = vrot.slane %v1849, %v1861
    %v1863 = vlaneseq
    %v1864 = vshrl.u32 %v1863, 7
    %v1865 = vsub.s32 0, %v1864
    %v1866 = vrot.slane %v1850, %v1865
    %v1867 = vmul.f32 %v1854, %v1843
    %v1868 = vmul.f32 %v1858, %v1843
    %v1869 = vmul.f32 %v1862, %v1843
    %v1870 = vmul.f32 %v1866, %v1843
    %v1871 = vlaneseq
    %v1872 = vshrl.u32 %v1871, 7
    %v1873 = vsub.s32 1, %v1872
    %v1874 = vrot.slane %v1847, %v1873
    %v1875 = vlaneseq
    %v1876 = vshrl.u32 %v1875, 7
    %v1877 = vsub.s32 1, %v1876
    %v1878 = vrot.slane %v1848, %v1877
    %v1879 = vlaneseq
    %v1880 = vshrl.u32 %v1879, 7
    %v1881 = vsub.s32 1, %v1880
    %v1882 = vrot.slane %v1849, %v1881
    %v1883 = vlaneseq
    %v1884 = vshrl.u32 %v1883, 7
    %v1885 = vsub.s32 1, %v1884
    %v1886 = vrot.slane %v1850, %v1885
    %v1887 = vmul.f32 %v1874, %v1844
    %v1888 = vmul.f32 %v1878, %v1844
    %v1889 = vmul.f32 %v1882, %v1844
    %v1890 = vmul.f32 %v1886, %v1844
    %v1891 = vadd.f32 %v1867, %v1887
    %v1892 = vadd.f32 %v1868, %v1888
    %v1893 = vadd.f32 %v1869, %v1889
    %v1894 = vadd.f32 %v1870, %v1890
    %v1895 = vlaneseq
    %v1896 = vshrl.u32 %v1895, 7
    %v1897 = vsub.s32 2, %v1896
    %v1898 = vrot.slane %v1847, %v1897
    %v1899 = vlaneseq
    %v1900 = vshrl.u32 %v1899, 7
    %v1901 = vsub.s32 2, %v1900
    %v1902 = vrot.slane %v1848, %v1901
    %v1903 = vlaneseq
    %v1904 = vshrl.u32 %v1903, 7
    %v1905 = vsub.s32 2, %v1904
    %v1906 = vrot.slane %v1849, %v1905
    %v1907 = vlaneseq
    %v1908 = vshrl.u32 %v1907, 7
    %v1909 = vsub.s32 2, %v1908
    %v1910 = vrot.slane %v1850, %v1909
    %v1911 = vmul.f32 %v1898, %v1845
    %v1912 = vmul.f32 %v1902, %v1845
    %v1913 = vmul.f32 %v1906, %v1845
    %v1914 = vmul.f32 %v1910, %v1845
    %v1915 = vadd.f32 %v1891, %v1911
    %v1916 = vadd.f32 %v1892, %v1912
    %v1917 = vadd.f32 %v1893, %v1913
    %v1918 = vadd.f32 %v1894, %v1914
    %v1919 = vlaneseq
    %v1920 = vshrl.u32 %v1919, 7
    %v1921 = vsub.s32 3, %v1920
    %v1922 = vrot.slane %v1847, %v1921
    %v1923 = vlaneseq
    %v1924 = vshrl.u32 %v1923, 7
    %v1925 = vsub.s32 3, %v1924
    %v1926 = vrot.slane %v1848, %v1925
    %v1927 = vlaneseq
    %v1928 = vshrl.u32 %v1927, 7
    %v1929 = vsub.s32 3, %v1928
    %v1930 = vrot.slane %v1849, %v1929
    %v1931 = vlaneseq
    %v1932 = vshrl.u32 %v1931, 7
    %v1933 = vsub.s32 3, %v1932
    %v1934 = vrot.slane %v1850, %v1933
    %v1935 = vmul.f32 %v1922, %v1846
    %v1936 = vmul.f32 %v1926, %v1846
    %v1937 = vmul.f32 %v1930, %v1846
    %v1938 = vmul.f32 %v1934, %v1846
    %v1939 = vadd.f32 %v1915, %v1935
    %v1940 = vadd.f32 %v1916, %v1936
    %v1941 = vadd.f32 %v1917, %v1937
    %v1942 = vadd.f32 %v1918, %v1938
    %v1943 = vlaneseq
    %v1944 = vshrl.u32 %v1943, 7
    %v1945 = vsub.s32 0, %v1944
    %v1946 = vrot.slane %v967, %v1945
    %v1947 = vlaneseq
    %v1948 = vshrl.u32 %v1947, 7
    %v1949 = vsub.s32 0, %v1948
    %v1950 = vrot.slane %v968, %v1949
    %v1951 = vlaneseq
    %v1952 = vshrl.u32 %v1951, 7
    %v1953 = vsub.s32 0, %v1952
    %v1954 = vrot.slane %v969, %v1953
    %v1955 = vlaneseq
    %v1956 = vshrl.u32 %v1955, 7
    %v1957 = vsub.s32 0, %v1956
    %v1958 = vrot.slane %v970, %v1957
    %v1959 = vmul.f32 %v1946, %v1939
    %v1960 = vmul.f32 %v1950, %v1939
    %v1961 = vmul.f32 %v1954, %v1939
    %v1962 = vmul.f32 %v1958, %v1939
    %v1963 = vlaneseq
    %v1964 = vshrl.u32 %v1963, 7
    %v1965 = vsub.s32 1, %v1964
    %v1966 = vrot.slane %v967, %v1965
    %v1967 = vlaneseq
    %v1968 = vshrl.u32 %v1967, 7
    %v1969 = vsub.s32 1, %v1968
    %v1970 = vrot.slane %v968, %v1969
    %v1971 = vlaneseq
    %v1972 = vshrl.u32 %v1971, 7
    %v1973 = vsub.s32 1, %v1972
    %v1974 = vrot.slane %v969, %v1973
    %v1975 = vlaneseq
    %v1976 = vshrl.u32 %v1975, 7
    %v1977 = vsub.s32 1, %v1976
    %v1978 = vrot.slane %v970, %v1977
    %v1979 = vmul.f32 %v1966, %v1940
    %v1980 = vmul.f32 %v1970, %v1940
    %v1981 = vmul.f32 %v1974, %v1940
    %v1982 = vmul.f32 %v1978, %v1940
    %v1983 = vadd.f32 %v1959, %v1979
    %v1984 = vadd.f32 %v1960, %v1980
    %v1985 = vadd.f32 %v1961, %v1981
    %v1986 = vadd.f32 %v1962, %v1982
    %v1987 = vlaneseq
    %v1988 = vshrl.u32 %v1987, 7
    %v1989 = vsub.s32 2, %v1988
    %v1990 = vrot.slane %v967, %v1989
    %v1991 = vlaneseq
    %v1992 = vshrl.u32 %v1991, 7
    %v1993 = vsub.s32 2, %v1992
    %v1994 = vrot.slane %v968, %v1993
    %v1995 = vlaneseq
    %v1996 = vshrl.u32 %v1995, 7
    %v1997 = vsub.s32 2, %v1996
    %v1998 = vrot.slane %v969, %v1997
    %v1999 = vlaneseq
    %v2000 = vshrl.u32 %v1999, 7
    %v2001 = vsub.s32 2, %v2000
    %v2002 = vrot.slane %v970, %v2001
    %v2003 = vmul.f32 %v1990, %v1941
    %v2004 = vmul.f32 %v1994, %v1941
    %v2005 = vmul.f32 %v1998, %v1941
    %v2006 = vmul.f32 %v2002, %v1941
    %v2007 = vadd.f32 %v1983, %v2003
    %v2008 = vadd.f32 %v1984, %v2004
    %v2009 = vadd.f32 %v1985, %v2005
    %v2010 = vadd.f32 %v1986, %v2006
    %v2011 = vlaneseq
    %v2012 = vshrl.u32 %v2011, 7
    %v2013 = vsub.s32 3, %v2012
    %v2014 = vrot.slane %v967, %v2013
    %v2015 = vlaneseq
    %v2016 = vshrl.u32 %v2015, 7
    %v2017 = vsub.s32 3, %v2016
    %v2018 = vrot.slane %v968, %v2017
    %v2019 = vlaneseq
    %v2020 = vshrl.u32 %v2019, 7
    %v2021 = vsub.s32 3, %v2020
    %v2022 = vrot.slane %v969, %v2021
    %v2023 = vlaneseq
    %v2024 = vshrl.u32 %v2023, 7
    %v2025 = vsub.s32 3, %v2024
    %v2026 = vrot.slane %v970, %v2025
    %v2027 = vmul.f32 %v2014, %v1942
    %v2028 = vmul.f32 %v2018, %v1942
    %v2029 = vmul.f32 %v2022, %v1942
    %v2030 = vmul.f32 %v2026, %v1942
    %v2031 = vadd.f32 %v2007, %v2027
    %v2032 = vadd.f32 %v2008, %v2028
    %v2033 = vadd.f32 %v2009, %v2029
    %v2034 = vadd.f32 %v2010, %v2030
    %2035 = vst [vmem:[#allocation2] sm:$0xf] %v2031
    %2036 = vst [vmem:[#allocation2 + $0x4] sm:$0xf] %v2032
    %2037 = vst [vmem:[#allocation2 + $0x8] sm:$0xf] %v2033
    %2038 = vst [vmem:[#allocation2 + $0xc] sm:$0xf] %v2034
    // Predicated region
    $region18: #{qgnn_rot_perminv_layer.3} parent=1 // pred_check
      _
    $region19: #{qgnn_rot_perminv_layer.3} parent=1 // pred_check_branch
      %2040 = sbr.rel (0) target = $region21
    $region20: #{qgnn_rot_perminv_layer.3} parent=1 // pred_region
      %s2042 = ssub.s32 256, 256
      %2043 = vsyncadd [#allocation3], %s2042
      %s2044 = sshll.u32 [#allocation2], 4
      %s2045 = int_to_ptr.vmem [resolvable:$true] %s2044
      %2050 = dma.vmem_to_hbm [thread:$0]  %s2045, 256, %s4, [#allocation3], 64, 64, 4
    $region21: #{qgnn_rot_perminv_layer.3} parent=1 // pred_fallthru
      _
    // Predicated region
    $region22: #{qgnn_rot_perminv_layer.3} parent=1 // pred_check
      _
    $region23: #{qgnn_rot_perminv_layer.3} parent=1 // pred_check_branch
      %2052 = sbr.rel (0) target = $region25
    $region24: #{qgnn_rot_perminv_layer.3} parent=1 // pred_region
      %2053 = dma.done [#allocation3], 256
    $region25: #{qgnn_rot_perminv_layer.3} parent=1 // pred_fallthru
      _
    %2054 = vsyncpa [#allocation3], 1

</llo_original>
